<compile_context>
chip_gen: v5e
topology: v5e:2x2
jax: 0.10.0
libtpu: 0.0.40
codegen_flags: <defaults>
</compile_context>

<pallas_src>
import functools

import jax
import jax.numpy as jnp
from jax import lax
from jax.experimental import pallas as pl
from jax.experimental.pallas import tpu as pltpu


def _fused_conv_relu_x2_kernel(x_ref, band1_ref, b1_ref, band2_ref, b2_ref,
                               o_ref, y1_ref, *, B, H, KH, OH1, OH2):
    """Fused [Conv2d(1,C1,K)+ReLU] -> [Conv2d(C1,C2,K)+ReLU] for B images.

    x_ref    : (B*H, W)            f32   input rows, W on the lane axis
    band1_ref: (KH, W, OW1*C1)     f32   banded conv1 weights (contract over W)
    b1_ref   : (1, OW1*C1)         f32   conv1 bias tiled over OW1
    band2_ref: (KH, OW1*C1, OW2*C2) bf16 banded conv2 weights
    b2_ref   : (1, OW2*C2)         f32   conv2 bias tiled over OW2
    o_ref    : (B, OH2, OW2*C2)    f32   channels-last output (lane-dense 512)
    y1_ref   : (B, H, OW1*C1)      bf16  scratch: y1 padded to H rows/image
    """
    OW1C1 = band1_ref.shape[-1]
    OW2C2 = band2_ref.shape[-1]

    x = x_ref[...]                                              # (B*H, W)

    # ---- conv1 + ReLU: KH banded matmuls over the W (lane) axis ------------
    # prod[dh][b, h, j*C1+c] = sum_dw x[b, h, j+dw] * w1[dh, dw, 0, c]
    acc1 = None
    for dh in range(KH):
        p = jnp.dot(x, band1_ref[dh],
                    preferred_element_type=jnp.float32)         # (B*H, OW1*C1)
        p = p.reshape(B, H, OW1C1)[:, dh:dh + OH1, :]           # row shift by dh
        acc1 = p if acc1 is None else acc1 + p
    y1 = jnp.maximum(acc1 + b1_ref[...], 0.0)                   # (B, OH1, 240) f32

    # Stage y1 in a H-rows-per-image bf16 scratch so the next matmul's LHS has
    # an 8-aligned sublane extent (tile-preserving reshape, no relayout).
    y1_ref[:, 0:OH1, :] = y1.astype(y1_ref.dtype)
    y1_ref[:, OH1:H, :] = jnp.zeros((B, H - OH1, OW1C1), y1_ref.dtype)
    y1_full = y1_ref[...].reshape(B * H, OW1C1)                 # (B*H, 240) bf16

    # ---- conv2 + ReLU: KH banded matmuls over the (j, c) lane axis ----------
    # prod[dh][b, h, j2*C2+c2] = sum_{dw,c} y1[b, h, (j2+dw)*C1+c] * w2[dh,dw,c,c2]
    acc2 = None
    for dh in range(KH):
        p = jnp.dot(y1_full, band2_ref[dh],
                    preferred_element_type=jnp.float32)         # (B*H, OW2*C2)
        p = p.reshape(B, H, OW2C2)[:, dh:dh + OH2, :]           # row shift by dh
        acc2 = p if acc2 is None else acc2 + p
    o_ref[...] = jnp.maximum(acc2 + b2_ref[...], 0.0)           # (B, OH2, 512)


def _make_band1(w1, W, OW1):
    """band1[dh, w, j*C1+c] = w1[dh, w-j, 0, c] if 0 <= w-j < KW else 0."""
    KH, KW, _, C1 = w1.shape
    w1_k = w1[:, :, 0, :]                                       # (KH, KW, C1)
    dw = jnp.arange(W)[:, None] - jnp.arange(OW1)[None, :]      # (W, OW1)
    valid = (dw >= 0) & (dw < KW)
    idx = jnp.clip(dw, 0, KW - 1)
    bands = []
    for dh in range(KH):
        g = w1_k[dh][idx]                                       # (W, OW1, C1)
        g = jnp.where(valid[:, :, None], g, 0.0)
        bands.append(g.reshape(W, OW1 * C1))
    return jnp.stack(bands, axis=0)                             # (KH, W, OW1*C1)


def _make_band2(w2, OW1, OW2):
    """band2[dh, j*C1+c, j2*C2+c2] = w2[dh, j-j2, c, c2] if 0 <= j-j2 < KW else 0."""
    KH, KW, C1, C2 = w2.shape
    dw = jnp.arange(OW1)[:, None] - jnp.arange(OW2)[None, :]    # (OW1, OW2)
    valid = (dw >= 0) & (dw < KW)
    idx = jnp.clip(dw, 0, KW - 1)
    bands = []
    for dh in range(KH):
        g = w2[dh][idx]                                         # (OW1, OW2, C1, C2)
        g = jnp.where(valid[:, :, None, None], g, 0.0)
        g = jnp.transpose(g, (0, 2, 1, 3)).reshape(OW1 * C1, OW2 * C2)
        bands.append(g)
    return jnp.stack(bands, axis=0)                             # (KH, OW1*C1, OW2*C2)


def init_params(key):
    """Deterministic synthetic weights for Conv2d(1,20,5) and Conv2d(20,64,5)."""
    k1, k2, k3, k4 = jax.random.split(key, 4)
    return {
        "w1": 0.1 * jax.random.normal(k1, (5, 5, 1, 20), jnp.float32),    # HWIO
        "b1": 0.1 * jax.random.normal(k2, (20,), jnp.float32),
        "w2": 0.05 * jax.random.normal(k3, (5, 5, 20, 64), jnp.float32),  # HWIO
        "b2": 0.05 * jax.random.normal(k4, (64,), jnp.float32),
    }


def sequential_module_forward(x_nchw, params, *, block_batch=None,
                              channels_last=False):
    """Equivalent of SequentialModule.forward for the docstring layer stack."""
    N, Cin, H, W = x_nchw.shape
    assert Cin == 1, "docstring stack starts with Conv2d(1, 20, 5)"
    w1, b1 = params["w1"], params["b1"]            # (KH, KW, 1, C1), (C1,)
    w2, b2 = params["w2"], params["b2"]            # (KH, KW, C1, C2), (C2,)
    KH, KW, _, C1 = w1.shape
    C2 = w2.shape[-1]
    OH1, OW1 = H - KH + 1, W - KW + 1
    OH2, OW2 = OH1 - KH + 1, OW1 - KW + 1
    assert H % 8 == 0, "H must be a multiple of 8 for tile-preserving reshapes"

    # Images per grid step: half the batch by default so grid >= 2 (keeps both
    # v7x TensorCores busy); capped so live VMEM per step stays small.
    if block_batch is None:
        block_batch = min(32, max(1, -(-N // 2)))
    grid_n = -(-N // block_batch)
    n_pad = grid_n * block_batch

    # ---- layout / weight plumbing only (no conv compute hoisted) -----------
    x_rows = x_nchw.reshape(N, H, W).astype(jnp.float32)        # Cin=1 squeezed
    if n_pad != N:
        x_rows = jnp.concatenate(
            [x_rows, jnp.zeros((n_pad - N, H, W), jnp.float32)], axis=0)
    x_rows = x_rows.reshape(n_pad * H, W)

    band1 = _make_band1(w1.astype(jnp.float32), W, OW1)                 # f32
    band2 = _make_band2(w2.astype(jnp.float32), OW1, OW2).astype(jnp.bfloat16)
    b1_row = jnp.tile(b1.astype(jnp.float32), OW1).reshape(1, OW1 * C1)
    b2_row = jnp.tile(b2.astype(jnp.float32), OW2).reshape(1, OW2 * C2)

    flops = grid_n * (2 * KH * (block_batch * H) * W * (OW1 * C1)
                      + 2 * KH * (block_batch * H) * (OW1 * C1) * (OW2 * C2))
    bytes_accessed = (x_rows.size * 4 + band1.size * 4 + band2.size * 2
                      + b1_row.size * 4 + b2_row.size * 4
                      + n_pad * OH2 * OW2 * C2 * 4)

    kernel = functools.partial(_fused_conv_relu_x2_kernel,
                               B=block_batch, H=H, KH=KH, OH1=OH1, OH2=OH2)
    out = pl.pallas_call(
        kernel,
        out_shape=jax.ShapeDtypeStruct((n_pad, OH2, OW2 * C2), jnp.float32),
        grid=(grid_n,),
        in_specs=[
            pl.BlockSpec((block_batch * H, W), lambda n: (n, 0)),
            pl.BlockSpec((KH, W, OW1 * C1), lambda n: (0, 0, 0)),
            pl.BlockSpec((1, OW1 * C1), lambda n: (0, 0)),
            pl.BlockSpec((KH, OW1 * C1, OW2 * C2), lambda n: (0, 0, 0)),
            pl.BlockSpec((1, OW2 * C2), lambda n: (0, 0)),
        ],
        out_specs=pl.BlockSpec((block_batch, OH2, OW2 * C2),
                               lambda n: (n, 0, 0)),
        scratch_shapes=[pltpu.VMEM((block_batch, H, OW1 * C1), jnp.bfloat16)],
        compiler_params=pltpu.CompilerParams(
            dimension_semantics=("parallel",)),     # grid steps -> v7x's 2 TCs
        cost_estimate=pl.CostEstimate(flops=flops, transcendentals=0,
                                      bytes_accessed=bytes_accessed),
    )(x_rows, band1, b1_row, band2, b2_row)

    out = out[:N].reshape(N, OH2, OW2, C2)          # lane index = j2*C2 + c2
    if channels_last:
        return out
    return jnp.transpose(out, (0, 3, 1, 2))         # NHWC -> NCHW (parity only)


def _reference_forward(x_nchw, params):
    """Pure-JAX reference (lax conv) for correctness checking."""
    def conv(x, w, b):
        y = lax.conv_general_dilated(
            x, w, window_strides=(1, 1), padding="VALID",
            dimension_numbers=("NHWC", "HWIO", "NHWC"))
        return jnp.maximum(y + b.reshape(1, 1, 1, -1), 0.0)

    x = jnp.transpose(x_nchw, (0, 2, 3, 1))
    x = conv(x, params["w1"], params["b1"])
    x = conv(x, params["w2"], params["b2"])
    return jnp.transpose(x, (0, 3, 1, 2))


if __name__ == "__main__":
    key = jax.random.PRNGKey(0)
    kx, kp = jax.random.split(key)

    # NCHW input matching the docstring stack (Conv2d(1,20,5) expects 1 channel).
    N, H, W = 16, 16, 16
    x = jax.random.normal(kx, (N, 1, H, W), jnp.float32)
    params = init_params(kp)

    out = jax.block_until_ready(sequential_module_forward(x, params))
    ref = jax.block_until_ready(_reference_forward(x, params))

    assert out.shape == (N, 64, 8, 8), out.shape
    max_err = float(jnp.max(jnp.abs(out - ref)))
    # bf16 MXU operands in conv2 -> loosened tolerance vs the f32 reference.
    assert jnp.allclose(out, ref, atol=2e-2, rtol=2e-2), \
        f"mismatch vs JAX reference (max abs err {max_err})"

    # TODO(synk): SequentialModule is a generic container; only the docstring's
    # example layer stack (Conv2d/ReLU x2) is materialized here.
    print("KERNEL_OK")
</pallas_src>

<mosaic_0001>
module attributes {stable_mosaic.version = 11 : i64} {
  func.func @_fused_conv_relu_x2_kernel(%arg0: i32, %arg1: memref<128x16xf32, #tpu.memory_space<vmem>>, %arg2: memref<5x16x240xf32, #tpu.memory_space<vmem>>, %arg3: memref<1x240xf32, #tpu.memory_space<vmem>>, %arg4: memref<5x240x512xbf16, #tpu.memory_space<vmem>>, %arg5: memref<1x512xf32, #tpu.memory_space<vmem>>, %arg6: memref<8x8x512xf32, #tpu.memory_space<vmem>>, %arg7: memref<8x16x240xbf16, #tpu.memory_space<vmem>>) attributes {dimension_semantics = [#tpu.dimension_semantics<parallel>], iteration_bounds = array<i64: 2>, scalar_prefetch = 0 : i64, scratch_operands = 1 : i64, tpu.core_type = #tpu.core_type<tc>, window_params = [{transform_indices = @transform_0, window_bounds = array<i64: 128, 16>}, {pipeline_mode = #tpu.pipeline_mode<synchronous>, transform_indices = @transform_1, window_bounds = array<i64: 5, 16, 240>}, {pipeline_mode = #tpu.pipeline_mode<synchronous>, transform_indices = @transform_2, window_bounds = array<i64: 1, 240>}, {pipeline_mode = #tpu.pipeline_mode<synchronous>, transform_indices = @transform_3, window_bounds = array<i64: 5, 240, 512>}, {pipeline_mode = #tpu.pipeline_mode<synchronous>, transform_indices = @transform_4, window_bounds = array<i64: 1, 512>}, {transform_indices = @transform_5, window_bounds = array<i64: 8, 8, 512>}]} {
    %c0 = arith.constant 0 : index
    %c0_0 = arith.constant 0 : index
    %0 = vector.load %arg1[%c0, %c0_0] : memref<128x16xf32, #tpu.memory_space<vmem>>, vector<128x16xf32>
    %c0_1 = arith.constant 0 : index
    %c0_2 = arith.constant 0 : index
    %c0_3 = arith.constant 0 : index
    %1 = vector.load %arg2[%c0_1, %c0_2, %c0_3] : memref<5x16x240xf32, #tpu.memory_space<vmem>>, vector<1x16x240xf32>
    %2 = vector.shape_cast %1 : vector<1x16x240xf32> to vector<16x240xf32>
    %cst = arith.constant dense<0.000000e+00> : vector<128x240xf32>
    %3 = tpu.matmul %0, %2, %cst {dimension_numbers = #tpu.dot_dimension_numbers<[1], [0], [0], [1], [0, 0, 1, 1], [], []>} : vector<128x16xf32>, vector<16x240xf32>, vector<128x240xf32> -> vector<128x240xf32>
    %4 = vector.shape_cast %3 : vector<128x240xf32> to vector<8x16x240xf32>
    %5 = vector.extract_strided_slice %4 {offsets = [0, 0, 0], sizes = [8, 12, 240], strides = [1, 1, 1]} : vector<8x16x240xf32> to vector<8x12x240xf32>
    %c1 = arith.constant 1 : index
    %c0_4 = arith.constant 0 : index
    %c0_5 = arith.constant 0 : index
    %6 = vector.load %arg2[%c1, %c0_4, %c0_5] : memref<5x16x240xf32, #tpu.memory_space<vmem>>, vector<1x16x240xf32>
    %7 = vector.shape_cast %6 : vector<1x16x240xf32> to vector<16x240xf32>
    %cst_6 = arith.constant dense<0.000000e+00> : vector<128x240xf32>
    %8 = tpu.matmul %0, %7, %cst_6 {dimension_numbers = #tpu.dot_dimension_numbers<[1], [0], [0], [1], [0, 0, 1, 1], [], []>} : vector<128x16xf32>, vector<16x240xf32>, vector<128x240xf32> -> vector<128x240xf32>
    %9 = vector.shape_cast %8 : vector<128x240xf32> to vector<8x16x240xf32>
    %10 = vector.extract_strided_slice %9 {offsets = [0, 1, 0], sizes = [8, 12, 240], strides = [1, 1, 1]} : vector<8x16x240xf32> to vector<8x12x240xf32>
    %11 = arith.addf %5, %10 : vector<8x12x240xf32>
    %c2 = arith.constant 2 : index
    %c0_7 = arith.constant 0 : index
    %c0_8 = arith.constant 0 : index
    %12 = vector.load %arg2[%c2, %c0_7, %c0_8] : memref<5x16x240xf32, #tpu.memory_space<vmem>>, vector<1x16x240xf32>
    %13 = vector.shape_cast %12 : vector<1x16x240xf32> to vector<16x240xf32>
    %cst_9 = arith.constant dense<0.000000e+00> : vector<128x240xf32>
    %14 = tpu.matmul %0, %13, %cst_9 {dimension_numbers = #tpu.dot_dimension_numbers<[1], [0], [0], [1], [0, 0, 1, 1], [], []>} : vector<128x16xf32>, vector<16x240xf32>, vector<128x240xf32> -> vector<128x240xf32>
    %15 = vector.shape_cast %14 : vector<128x240xf32> to vector<8x16x240xf32>
    %16 = vector.extract_strided_slice %15 {offsets = [0, 2, 0], sizes = [8, 12, 240], strides = [1, 1, 1]} : vector<8x16x240xf32> to vector<8x12x240xf32>
    %17 = arith.addf %11, %16 : vector<8x12x240xf32>
    %c3 = arith.constant 3 : index
    %c0_10 = arith.constant 0 : index
    %c0_11 = arith.constant 0 : index
    %18 = vector.load %arg2[%c3, %c0_10, %c0_11] : memref<5x16x240xf32, #tpu.memory_space<vmem>>, vector<1x16x240xf32>
    %19 = vector.shape_cast %18 : vector<1x16x240xf32> to vector<16x240xf32>
    %cst_12 = arith.constant dense<0.000000e+00> : vector<128x240xf32>
    %20 = tpu.matmul %0, %19, %cst_12 {dimension_numbers = #tpu.dot_dimension_numbers<[1], [0], [0], [1], [0, 0, 1, 1], [], []>} : vector<128x16xf32>, vector<16x240xf32>, vector<128x240xf32> -> vector<128x240xf32>
    %21 = vector.shape_cast %20 : vector<128x240xf32> to vector<8x16x240xf32>
    %22 = vector.extract_strided_slice %21 {offsets = [0, 3, 0], sizes = [8, 12, 240], strides = [1, 1, 1]} : vector<8x16x240xf32> to vector<8x12x240xf32>
    %23 = arith.addf %17, %22 : vector<8x12x240xf32>
    %c4 = arith.constant 4 : index
    %c0_13 = arith.constant 0 : index
    %c0_14 = arith.constant 0 : index
    %24 = vector.load %arg2[%c4, %c0_13, %c0_14] : memref<5x16x240xf32, #tpu.memory_space<vmem>>, vector<1x16x240xf32>
    %25 = vector.shape_cast %24 : vector<1x16x240xf32> to vector<16x240xf32>
    %cst_15 = arith.constant dense<0.000000e+00> : vector<128x240xf32>
    %26 = tpu.matmul %0, %25, %cst_15 {dimension_numbers = #tpu.dot_dimension_numbers<[1], [0], [0], [1], [0, 0, 1, 1], [], []>} : vector<128x16xf32>, vector<16x240xf32>, vector<128x240xf32> -> vector<128x240xf32>
    %27 = vector.shape_cast %26 : vector<128x240xf32> to vector<8x16x240xf32>
    %28 = vector.extract_strided_slice %27 {offsets = [0, 4, 0], sizes = [8, 12, 240], strides = [1, 1, 1]} : vector<8x16x240xf32> to vector<8x12x240xf32>
    %29 = arith.addf %23, %28 : vector<8x12x240xf32>
    %c0_16 = arith.constant 0 : index
    %c0_17 = arith.constant 0 : index
    %30 = vector.load %arg3[%c0_16, %c0_17] : memref<1x240xf32, #tpu.memory_space<vmem>>, vector<1x240xf32>
    %31 = vector.shape_cast %30 : vector<1x240xf32> to vector<1x1x240xf32>
    %32 = vector.broadcast %31 : vector<1x1x240xf32> to vector<8x12x240xf32>
    %33 = arith.addf %29, %32 : vector<8x12x240xf32>
    %cst_18 = arith.constant 0.000000e+00 : f32
    %34 = vector.broadcast %cst_18 : f32 to vector<8x12x240xf32>
    %35 = arith.maximumf %33, %34 : vector<8x12x240xf32>
    %36 = arith.truncf %35 : vector<8x12x240xf32> to vector<8x12x240xbf16>
    %c0_19 = arith.constant 0 : index
    %c0_20 = arith.constant 0 : index
    %c0_21 = arith.constant 0 : index
    %37 = vector.load %arg7[%c0_19, %c0_20, %c0_21] : memref<8x16x240xbf16, #tpu.memory_space<vmem>>, vector<8x12x240xbf16>
    tpu.vector_store %arg7[%c0_19, %c0_20, %c0_21], %36 {strides = array<i32>} : memref<8x16x240xbf16, #tpu.memory_space<vmem>>, vector<8x12x240xbf16>,
    %cst_22 = arith.constant 0.000000e+00 : bf16
    %38 = vector.broadcast %cst_22 : bf16 to vector<8x4x240xbf16>
    %c0_23 = arith.constant 0 : index
    %c12 = arith.constant 12 : index
    %c0_24 = arith.constant 0 : index
    %39 = vector.load %arg7[%c0_23, %c12, %c0_24] : memref<8x16x240xbf16, #tpu.memory_space<vmem>>, vector<8x4x240xbf16>
    tpu.vector_store %arg7[%c0_23, %c12, %c0_24], %38 {strides = array<i32>} : memref<8x16x240xbf16, #tpu.memory_space<vmem>>, vector<8x4x240xbf16>,
    %c0_25 = arith.constant 0 : index
    %c0_26 = arith.constant 0 : index
    %c0_27 = arith.constant 0 : index
    %40 = vector.load %arg7[%c0_25, %c0_26, %c0_27] : memref<8x16x240xbf16, #tpu.memory_space<vmem>>, vector<8x16x240xbf16>
    %41 = vector.shape_cast %40 : vector<8x16x240xbf16> to vector<128x240xbf16>
    %c0_28 = arith.constant 0 : index
    %c0_29 = arith.constant 0 : index
    %c0_30 = arith.constant 0 : index
    %42 = vector.load %arg4[%c0_28, %c0_29, %c0_30] : memref<5x240x512xbf16, #tpu.memory_space<vmem>>, vector<1x240x512xbf16>
    %43 = vector.shape_cast %42 : vector<1x240x512xbf16> to vector<240x512xbf16>
    %cst_31 = arith.constant dense<0.000000e+00> : vector<128x512xf32>
    %44 = tpu.matmul %41, %43, %cst_31 {dimension_numbers = #tpu.dot_dimension_numbers<[1], [0], [0], [1], [0, 0, 1, 1], [], []>} : vector<128x240xbf16>, vector<240x512xbf16>, vector<128x512xf32> -> vector<128x512xf32>
    %45 = vector.shape_cast %44 : vector<128x512xf32> to vector<8x16x512xf32>
    %46 = vector.extract_strided_slice %45 {offsets = [0, 0, 0], sizes = [8, 8, 512], strides = [1, 1, 1]} : vector<8x16x512xf32> to vector<8x8x512xf32>
    %c1_32 = arith.constant 1 : index
    %c0_33 = arith.constant 0 : index
    %c0_34 = arith.constant 0 : index
    %47 = vector.load %arg4[%c1_32, %c0_33, %c0_34] : memref<5x240x512xbf16, #tpu.memory_space<vmem>>, vector<1x240x512xbf16>
    %48 = vector.shape_cast %47 : vector<1x240x512xbf16> to vector<240x512xbf16>
    %cst_35 = arith.constant dense<0.000000e+00> : vector<128x512xf32>
    %49 = tpu.matmul %41, %48, %cst_35 {dimension_numbers = #tpu.dot_dimension_numbers<[1], [0], [0], [1], [0, 0, 1, 1], [], []>} : vector<128x240xbf16>, vector<240x512xbf16>, vector<128x512xf32> -> vector<128x512xf32>
    %50 = vector.shape_cast %49 : vector<128x512xf32> to vector<8x16x512xf32>
    %51 = vector.extract_strided_slice %50 {offsets = [0, 1, 0], sizes = [8, 8, 512], strides = [1, 1, 1]} : vector<8x16x512xf32> to vector<8x8x512xf32>
    %52 = arith.addf %46, %51 : vector<8x8x512xf32>
    %c2_36 = arith.constant 2 : index
    %c0_37 = arith.constant 0 : index
    %c0_38 = arith.constant 0 : index
    %53 = vector.load %arg4[%c2_36, %c0_37, %c0_38] : memref<5x240x512xbf16, #tpu.memory_space<vmem>>, vector<1x240x512xbf16>
    %54 = vector.shape_cast %53 : vector<1x240x512xbf16> to vector<240x512xbf16>
    %cst_39 = arith.constant dense<0.000000e+00> : vector<128x512xf32>
    %55 = tpu.matmul %41, %54, %cst_39 {dimension_numbers = #tpu.dot_dimension_numbers<[1], [0], [0], [1], [0, 0, 1, 1], [], []>} : vector<128x240xbf16>, vector<240x512xbf16>, vector<128x512xf32> -> vector<128x512xf32>
    %56 = vector.shape_cast %55 : vector<128x512xf32> to vector<8x16x512xf32>
    %57 = vector.extract_strided_slice %56 {offsets = [0, 2, 0], sizes = [8, 8, 512], strides = [1, 1, 1]} : vector<8x16x512xf32> to vector<8x8x512xf32>
    %58 = arith.addf %52, %57 : vector<8x8x512xf32>
    %c3_40 = arith.constant 3 : index
    %c0_41 = arith.constant 0 : index
    %c0_42 = arith.constant 0 : index
    %59 = vector.load %arg4[%c3_40, %c0_41, %c0_42] : memref<5x240x512xbf16, #tpu.memory_space<vmem>>, vector<1x240x512xbf16>
    %60 = vector.shape_cast %59 : vector<1x240x512xbf16> to vector<240x512xbf16>
    %cst_43 = arith.constant dense<0.000000e+00> : vector<128x512xf32>
    %61 = tpu.matmul %41, %60, %cst_43 {dimension_numbers = #tpu.dot_dimension_numbers<[1], [0], [0], [1], [0, 0, 1, 1], [], []>} : vector<128x240xbf16>, vector<240x512xbf16>, vector<128x512xf32> -> vector<128x512xf32>
    %62 = vector.shape_cast %61 : vector<128x512xf32> to vector<8x16x512xf32>
    %63 = vector.extract_strided_slice %62 {offsets = [0, 3, 0], sizes = [8, 8, 512], strides = [1, 1, 1]} : vector<8x16x512xf32> to vector<8x8x512xf32>
    %64 = arith.addf %58, %63 : vector<8x8x512xf32>
    %c4_44 = arith.constant 4 : index
    %c0_45 = arith.constant 0 : index
    %c0_46 = arith.constant 0 : index
    %65 = vector.load %arg4[%c4_44, %c0_45, %c0_46] : memref<5x240x512xbf16, #tpu.memory_space<vmem>>, vector<1x240x512xbf16>
    %66 = vector.shape_cast %65 : vector<1x240x512xbf16> to vector<240x512xbf16>
    %cst_47 = arith.constant dense<0.000000e+00> : vector<128x512xf32>
    %67 = tpu.matmul %41, %66, %cst_47 {dimension_numbers = #tpu.dot_dimension_numbers<[1], [0], [0], [1], [0, 0, 1, 1], [], []>} : vector<128x240xbf16>, vector<240x512xbf16>, vector<128x512xf32> -> vector<128x512xf32>
    %68 = vector.shape_cast %67 : vector<128x512xf32> to vector<8x16x512xf32>
    %69 = vector.extract_strided_slice %68 {offsets = [0, 4, 0], sizes = [8, 8, 512], strides = [1, 1, 1]} : vector<8x16x512xf32> to vector<8x8x512xf32>
    %70 = arith.addf %64, %69 : vector<8x8x512xf32>
    %c0_48 = arith.constant 0 : index
    %c0_49 = arith.constant 0 : index
    %71 = vector.load %arg5[%c0_48, %c0_49] : memref<1x512xf32, #tpu.memory_space<vmem>>, vector<1x512xf32>
    %72 = vector.shape_cast %71 : vector<1x512xf32> to vector<1x1x512xf32>
    %73 = vector.broadcast %72 : vector<1x1x512xf32> to vector<8x8x512xf32>
    %74 = arith.addf %70, %73 : vector<8x8x512xf32>
    %cst_50 = arith.constant 0.000000e+00 : f32
    %75 = vector.broadcast %cst_50 : f32 to vector<8x8x512xf32>
    %76 = arith.maximumf %74, %75 : vector<8x8x512xf32>
    %c0_51 = arith.constant 0 : index
    %c0_52 = arith.constant 0 : index
    %c0_53 = arith.constant 0 : index
    %77 = vector.load %arg6[%c0_51, %c0_52, %c0_53] : memref<8x8x512xf32, #tpu.memory_space<vmem>>, vector<8x8x512xf32>
    tpu.vector_store %arg6[%c0_51, %c0_52, %c0_53], %76 {strides = array<i32>} : memref<8x8x512xf32, #tpu.memory_space<vmem>>, vector<8x8x512xf32>,
    return
  }
  func.func @transform_0(%arg0: i32) -> (i32, i32) {
    %c0_i32 = arith.constant 0 : i32
    %c0_i32_0 = arith.constant 0 : i32
    return %arg0, %c0_i32 : i32, i32
  }
  func.func @transform_1(%arg0: i32) -> (i32, i32, i32) {
    %c0_i32 = arith.constant 0 : i32
    %c0_i32_0 = arith.constant 0 : i32
    %c0_i32_1 = arith.constant 0 : i32
    %c0_i32_2 = arith.constant 0 : i32
    return %c0_i32, %c0_i32_0, %c0_i32_1 : i32, i32, i32
  }
  func.func @transform_2(%arg0: i32) -> (i32, i32) {
    %c0_i32 = arith.constant 0 : i32
    %c0_i32_0 = arith.constant 0 : i32
    %c0_i32_1 = arith.constant 0 : i32
    return %c0_i32, %c0_i32_0 : i32, i32
  }
  func.func @transform_3(%arg0: i32) -> (i32, i32, i32) {
    %c0_i32 = arith.constant 0 : i32
    %c0_i32_0 = arith.constant 0 : i32
    %c0_i32_1 = arith.constant 0 : i32
    %c0_i32_2 = arith.constant 0 : i32
    return %c0_i32, %c0_i32_0, %c0_i32_1 : i32, i32, i32
  }
  func.func @transform_4(%arg0: i32) -> (i32, i32) {
    %c0_i32 = arith.constant 0 : i32
    %c0_i32_0 = arith.constant 0 : i32
    %c0_i32_1 = arith.constant 0 : i32
    return %c0_i32, %c0_i32_0 : i32, i32
  }
  func.func @transform_5(%arg0: i32) -> (i32, i32, i32) {
    %c0_i32 = arith.constant 0 : i32
    %c0_i32_0 = arith.constant 0 : i32
    %c0_i32_1 = arith.constant 0 : i32
    return %arg0, %c0_i32, %c0_i32_0 : i32, i32, i32
  }
}

</mosaic_0001>

<llo_original>
// kernel: tpu_custom_call.1
$region0: #{tpu_custom_call.1}
  #allocation0 [shape = 'u32[]', space=smem, size = 0x4, offset = 0x4, fixed_abs, tag = 'smem constant byte address 0x4 - core index']
  #allocation1 [shape = 'u32[72,128]{1,0:T(1,128)}', space=vmem, size = 0x9000, scoped, tag = 'internal scratch']
  #allocation2 [shape = 'bf16[8,16,240]{2,1,0:T(8,128)(2,1)}', space=vmem, size = 0x10000, scoped, tag = 'scratch operand']
  %s0 = inlined_call_operand.vmem [shape: f32[256,16], index: 0, kind: input, shape index: {}]
  %s1 = inlined_call_operand.hbm [shape: f32[5,16,240], index: 1, kind: input, shape index: {}]
  %s2 = inlined_call_operand.hbm [shape: f32[1,240], index: 2, kind: input, shape index: {}]
  %s3 = inlined_call_operand.hbm [shape: bf16[5,240,512], index: 3, kind: input, shape index: {}]
  %s4 = inlined_call_operand.hbm [shape: f32[1,512], index: 4, kind: input, shape index: {}]
  %s5 = inlined_call_operand.hbm [shape: f32[16,8,512], index: 5, kind: output, shape index: {}]
  %s6 = sld [smem:[#allocation0]]
  $region69: #{tpu_custom_call.1} parent=0
    _
  %s8 = ssub.s32 1, %s6
  %s9 = scalar_select 0, %s8, %s6
  $region1: #{tpu_custom_call.1} parent=0
    #allocation3 [shape = 'u8[81920]{0}', space=vmem, size = 0x14000, scoped, tag = 'input window, operand 1, single buffered']
    #allocation4 [shape = 's32[2]{0}', space=sflag, size = 0x8, scoped, tag = 'scoped memory for tpu_custom_call.1']
    #allocation5 [shape = 's32[2]{0}', space=sflag, size = 0x8, scoped, tag = 'scoped memory for tpu_custom_call.1']
    #allocation6 [shape = 'u8[1024]{0}', space=vmem, size = 0x400, scoped, tag = 'input window, operand 2, single buffered']
    #allocation7 [shape = 's32[1]{0}', space=sflag, size = 0x4, scoped, tag = 'scoped memory for tpu_custom_call.1']
    #allocation8 [shape = 'u8[1228800]{0}', space=vmem, size = 0x12c000, scoped, tag = 'input window, operand 3, single buffered']
    #allocation9 [shape = 'u8[2048]{0}', space=vmem, size = 0x800, scoped, tag = 'input window, operand 4, single buffered']
    #allocation10 [shape = 's32[1]{0}', space=sflag, size = 0x4, scoped, tag = 'scoped memory for tpu_custom_call.1']
    #allocation11 [shape = 'u8[262144]{0}', space=vmem, size = 0x40000, scoped, tag = 'output window, operand 0']
    %10 = vsyncpa [#allocation4], 0
    %11 = vsyncpa [#allocation7], 0
    %12 = vsyncpa [#allocation10], 0
    %13 = vsyncpa [#allocation5], 0
    %s14 = scalar_lea.sflag [#allocation5], 1
    %15 = vsyncpa %s14, 0
    loop: start=0, step=1, limit=4
    $region2: #{tpu_custom_call.1} parent=1 // loop_pre_header
      _
    $region3: #{tpu_custom_call.1} parent=1 // loop_header
      %s17 = sphi 0, %s21
      %p18 = scmp.ge.s32.totalorder %s17, 4
      %s27 = sphi 0, %s29
      %s30 = sphi 0, %s27
      %s31 = sphi 0, %s30
      %s47 = sphi 0, %s31
      %s51 = sphi 0, %s51
      %s53 = sphi 0, %s51
      %s54 = sphi 0, %s53
      %s68 = sphi 0, %s54
      %s72 = sphi 0, %s72
      %s74 = sphi 0, %s72
      %s75 = sphi 0, %s74
      %s89 = sphi 0, %s75
      %s93 = sphi 0, %s93
      %s95 = sphi 0, %s93
      %s96 = sphi 0, %s95
      %s110 = sphi 0, %s96
      %s114 = sphi 0, %s114
      %s116 = sphi 0, %s114
      %s117 = sphi 0, %s116
      %s131 = sphi 0, %s117
      %s137 = sphi 0, %s139
      %s140 = sphi 0, %s137
      %s141 = sphi 0, %s140
      %s157 = sphi 0, %s141
    $region4: #{tpu_custom_call.1} parent=1 // loop_header_branch
      %20 = sbr.rel (%p18) target = $region8
    $region5: #{tpu_custom_call.1} parent=1 // loop_body
      %s22 = ssub.s32 %s17, 1
      %s23 = ssub.s32 %s17, 2
      %s24 = sadd.s32 %s17, 1
      %s25 = ssub.s32 %s17, %s24
      %p26 = scmp.eq.s32.totalorder %s25, 0
      %s28 = sadd.s32 %s27, 1
      %s29 = scalar_select %p26, %s27, %s28
      %p32 = pneg %p26
      %p33 = scmp.eq.s32.totalorder %s17, 1
      %p34 = por %p32, %p33
      %p35 = scmp.ne.s32.totalorder %s27, %s30
      %p36 = scmp.eq.s32.totalorder %s17, 0
      %p37 = por %p35, %p36
      %p38 = scmp.ne.s32.totalorder %s27, %s30
      %p39 = scmp.eq.s32.totalorder %s22, 1
      %p40 = por %p38, %p39
      %p41 = scmp.ne.s32.totalorder %s30, %s31
      %p42 = scmp.eq.s32.totalorder %s22, 0
      %p43 = por %p41, %p42
      %p44 = scmp.ne.s32.totalorder %s30, %s31
      %p45 = scmp.eq.s32.totalorder %s23, 1
      %p46 = por %p44, %p45
      %p48 = scmp.ne.s32.totalorder %s31, %s47
      %p49 = scmp.eq.s32.totalorder %s23, 0
      %p50 = por %p48, %p49
      %s52 = sadd.s32 %s51, 1
      %p55 = scmp.eq.s32.totalorder %s17, 1
      %p56 = scmp.ne.s32.totalorder %s51, %s53
      %p57 = scmp.eq.s32.totalorder %s17, 0
      %p58 = por %p56, %p57
      %p59 = scmp.ne.s32.totalorder %s51, %s53
      %p60 = scmp.eq.s32.totalorder %s22, 1
      %p61 = por %p59, %p60
      %p62 = scmp.ne.s32.totalorder %s53, %s54
      %p63 = scmp.eq.s32.totalorder %s22, 0
      %p64 = por %p62, %p63
      %p65 = scmp.ne.s32.totalorder %s53, %s54
      %p66 = scmp.eq.s32.totalorder %s23, 1
      %p67 = por %p65, %p66
      %p69 = scmp.ne.s32.totalorder %s54, %s68
      %p70 = scmp.eq.s32.totalorder %s23, 0
      %p71 = por %p69, %p70
      %s73 = sadd.s32 %s72, 1
      %p76 = scmp.eq.s32.totalorder %s17, 1
      %p77 = scmp.ne.s32.totalorder %s72, %s74
      %p78 = scmp.eq.s32.totalorder %s17, 0
      %p79 = por %p77, %p78
      %p80 = scmp.ne.s32.totalorder %s72, %s74
      %p81 = scmp.eq.s32.totalorder %s22, 1
      %p82 = por %p80, %p81
      %p83 = scmp.ne.s32.totalorder %s74, %s75
      %p84 = scmp.eq.s32.totalorder %s22, 0
      %p85 = por %p83, %p84
      %p86 = scmp.ne.s32.totalorder %s74, %s75
      %p87 = scmp.eq.s32.totalorder %s23, 1
      %p88 = por %p86, %p87
      %p90 = scmp.ne.s32.totalorder %s75, %s89
      %p91 = scmp.eq.s32.totalorder %s23, 0
      %p92 = por %p90, %p91
      %s94 = sadd.s32 %s93, 1
      %p97 = scmp.eq.s32.totalorder %s17, 1
      %p98 = scmp.ne.s32.totalorder %s93, %s95
      %p99 = scmp.eq.s32.totalorder %s17, 0
      %p100 = por %p98, %p99
      %p101 = scmp.ne.s32.totalorder %s93, %s95
      %p102 = scmp.eq.s32.totalorder %s22, 1
      %p103 = por %p101, %p102
      %p104 = scmp.ne.s32.totalorder %s95, %s96
      %p105 = scmp.eq.s32.totalorder %s22, 0
      %p106 = por %p104, %p105
      %p107 = scmp.ne.s32.totalorder %s95, %s96
      %p108 = scmp.eq.s32.totalorder %s23, 1
      %p109 = por %p107, %p108
      %p111 = scmp.ne.s32.totalorder %s96, %s110
      %p112 = scmp.eq.s32.totalorder %s23, 0
      %p113 = por %p111, %p112
      %s115 = sadd.s32 %s114, 1
      %p118 = scmp.eq.s32.totalorder %s17, 1
      %p119 = scmp.ne.s32.totalorder %s114, %s116
      %p120 = scmp.eq.s32.totalorder %s17, 0
      %p121 = por %p119, %p120
      %p122 = scmp.ne.s32.totalorder %s114, %s116
      %p123 = scmp.eq.s32.totalorder %s22, 1
      %p124 = por %p122, %p123
      %p125 = scmp.ne.s32.totalorder %s116, %s117
      %p126 = scmp.eq.s32.totalorder %s22, 0
      %p127 = por %p125, %p126
      %p128 = scmp.ne.s32.totalorder %s116, %s117
      %p129 = scmp.eq.s32.totalorder %s23, 1
      %p130 = por %p128, %p129
      %p132 = scmp.ne.s32.totalorder %s117, %s131
      %p133 = scmp.eq.s32.totalorder %s23, 0
      %p134 = por %p132, %p133
      %s135 = ssub.s32 %s17, %s24
      %p136 = scmp.eq.s32.totalorder %s135, 0
      %s138 = sadd.s32 %s137, 1
      %s139 = scalar_select %p136, %s137, %s138
      %p142 = pneg %p136
      %p143 = scmp.eq.s32.totalorder %s17, 1
      %p144 = por %p142, %p143
      %p145 = scmp.ne.s32.totalorder %s137, %s140
      %p146 = scmp.eq.s32.totalorder %s17, 0
      %p147 = por %p145, %p146
      %p148 = scmp.ne.s32.totalorder %s137, %s140
      %p149 = scmp.eq.s32.totalorder %s22, 1
      %p150 = por %p148, %p149
      %p151 = scmp.ne.s32.totalorder %s140, %s141
      %p152 = scmp.eq.s32.totalorder %s22, 0
      %p153 = por %p151, %p152
      %p154 = scmp.ne.s32.totalorder %s140, %s141
      %p155 = scmp.eq.s32.totalorder %s23, 1
      %p156 = por %p154, %p155
      %p158 = scmp.ne.s32.totalorder %s141, %s157
      %p159 = scmp.eq.s32.totalorder %s23, 0
      %p160 = por %p158, %p159
      %p161 = scmp.le.s32.totalorder 1, %s17
      %p162 = scmp.lt.s32.totalorder %s17, 3
      %p163 = pnand %p161, %p162
      %p164 = pneg %p163
      // Predicated region
      $region9: #{tpu_custom_call.1} parent=5 // pred_check
        _
      $region10: #{tpu_custom_call.1} parent=5 // pred_check_branch
        %166 = sbr.rel (%p163) target = $region12
      $region11: #{tpu_custom_call.1} parent=5 // pred_region
        %s167 = ssub.s32 %s17, 1
        // Predicated region
        $region13: #{tpu_custom_call.1} parent=11 // pred_check
          %p168 = pneg %p64
        $region14: #{tpu_custom_call.1} parent=11 // pred_check_branch
          %170 = sbr.rel (%p168) target = $region16
        $region15: #{tpu_custom_call.1} parent=11 // pred_region
          %172 = vsyncadd [#allocation4], 0
          %s173 = sshll.u32 %s1, 4
          %s174 = int_to_ptr.hbm [resolvable:$true] %s173
          %s175 = sshll.u32 [#allocation3], 4
          %s176 = int_to_ptr.vmem [resolvable:$true] %s175
          %181 = dma.hbm_to_vmem [thread:$0]  %s174, 2560, %s176, [#allocation4], 256, 256, 16
        $region16: #{tpu_custom_call.1} parent=11 // pred_fallthru
          _
        // Predicated region
        $region17: #{tpu_custom_call.1} parent=11 // pred_check
          %p182 = pneg %p85
        $region18: #{tpu_custom_call.1} parent=11 // pred_check_branch
          %184 = sbr.rel (%p182) target = $region20
        $region19: #{tpu_custom_call.1} parent=11 // pred_region
          %186 = vsyncadd [#allocation7], 0
          %s188 = sshll.u32 %s2, 4
          %s189 = int_to_ptr.hbm [resolvable:$true] %s188
          %s190 = sshll.u32 [#allocation6], 4
          %s191 = int_to_ptr.vmem [resolvable:$true] %s190
          %193 = dma.hbm_to_vmem [thread:$0]  %s189, 32, %s191, [#allocation7]
        $region20: #{tpu_custom_call.1} parent=11 // pred_fallthru
          _
        // Predicated region
        $region21: #{tpu_custom_call.1} parent=11 // pred_check
          %p194 = pneg %p106
        $region22: #{tpu_custom_call.1} parent=11 // pred_check_branch
          %196 = sbr.rel (%p194) target = $region24
        $region23: #{tpu_custom_call.1} parent=11 // pred_region
          %198 = vsyncadd [#allocation7], 0
          %s199 = sshll.u32 %s3, 4
          %s200 = int_to_ptr.hbm [resolvable:$true] %s199
          %s201 = sshll.u32 [#allocation8], 4
          %s202 = int_to_ptr.vmem [resolvable:$true] %s201
          %207 = dma.hbm_to_vmem [thread:$0]  %s200, 38400, %s202, [#allocation7], 256, 256, 16
        $region24: #{tpu_custom_call.1} parent=11 // pred_fallthru
          _
        // Predicated region
        $region25: #{tpu_custom_call.1} parent=11 // pred_check
          %p208 = pneg %p127
        $region26: #{tpu_custom_call.1} parent=11 // pred_check_branch
          %210 = sbr.rel (%p208) target = $region28
        $region27: #{tpu_custom_call.1} parent=11 // pred_region
          %212 = vsyncadd [#allocation10], 0
          %s214 = sshll.u32 %s4, 4
          %s215 = int_to_ptr.hbm [resolvable:$true] %s214
          %s216 = sshll.u32 [#allocation9], 4
          %s217 = int_to_ptr.vmem [resolvable:$true] %s216
          %219 = dma.hbm_to_vmem [thread:$0]  %s215, 64, %s217, [#allocation10]
        $region28: #{tpu_custom_call.1} parent=11 // pred_fallthru
          _
      $region12: #{tpu_custom_call.1} parent=5 // pred_fallthru
        _
      %p220 = scmp.lt.s32.totalorder %s17, 2
      // Predicated region
      $region29: #{tpu_custom_call.1} parent=5 // pred_check
        %p221 = pneg %p220
      $region30: #{tpu_custom_call.1} parent=5 // pred_check_branch
        %223 = sbr.rel (%p221) target = $region32
      $region31: #{tpu_custom_call.1} parent=5 // pred_region
        // Predicated region
        $region33: #{tpu_custom_call.1} parent=31 // pred_check
          %p224 = pneg %p37
        $region34: #{tpu_custom_call.1} parent=31 // pred_check_branch
          %226 = sbr.rel (%p224) target = $region36
        $region35: #{tpu_custom_call.1} parent=31 // pred_region
          %s227 = smul.u32 16, %s17
          %p228 = scmp.lt.s32.totalorder %s227, 31
          %s229 = scalar_select %p228, %s227, 31
          %s230 = smul.addr %s229, 8
          %s231 = scalar_lea.vmem %s0, %s230
          %s232 = smul.u32 16, %s17
        $region36: #{tpu_custom_call.1} parent=31 // pred_fallthru
          _
      $region32: #{tpu_custom_call.1} parent=5 // pred_fallthru
        _
      %p233 = scmp.le.s32.totalorder 1, %s17
      %p234 = scmp.lt.s32.totalorder %s17, 3
      %p235 = pnand %p233, %p234
      %p236 = pneg %p235
      // Predicated region
      $region37: #{tpu_custom_call.1} parent=5 // pred_check
        _
      $region38: #{tpu_custom_call.1} parent=5 // pred_check_branch
        %238 = sbr.rel (%p235) target = $region40
      $region39: #{tpu_custom_call.1} parent=5 // pred_region
        %s239 = ssub.s32 %s17, 1
        // Predicated region
        $region41: #{tpu_custom_call.1} parent=39 // pred_check
          %p240 = pneg %p64
        $region42: #{tpu_custom_call.1} parent=39 // pred_check_branch
          %242 = sbr.rel (%p240) target = $region44
        $region43: #{tpu_custom_call.1} parent=39 // pred_region
          %244 = dma.done [#allocation4], 2560
        $region44: #{tpu_custom_call.1} parent=39 // pred_fallthru
          _
        // Predicated region
        $region45: #{tpu_custom_call.1} parent=39 // pred_check
          %p245 = pneg %p85
        $region46: #{tpu_custom_call.1} parent=39 // pred_check_branch
          %247 = sbr.rel (%p245) target = $region48
        $region47: #{tpu_custom_call.1} parent=39 // pred_region
          %249 = dma.done [#allocation7], 32
        $region48: #{tpu_custom_call.1} parent=39 // pred_fallthru
          _
        // Predicated region
        $region49: #{tpu_custom_call.1} parent=39 // pred_check
          %p250 = pneg %p106
        $region50: #{tpu_custom_call.1} parent=39 // pred_check_branch
          %252 = sbr.rel (%p250) target = $region52
        $region51: #{tpu_custom_call.1} parent=39 // pred_region
          %254 = dma.done [#allocation7], 38400
        $region52: #{tpu_custom_call.1} parent=39 // pred_fallthru
          _
        // Predicated region
        $region53: #{tpu_custom_call.1} parent=39 // pred_check
          %p255 = pneg %p127
        $region54: #{tpu_custom_call.1} parent=39 // pred_check_branch
          %257 = sbr.rel (%p255) target = $region56
        $region55: #{tpu_custom_call.1} parent=39 // pred_region
          %259 = dma.done [#allocation10], 64
        $region56: #{tpu_custom_call.1} parent=39 // pred_fallthru
          _
        %s260 = smul.u32 16, %s22
        %p261 = scmp.lt.s32.totalorder %s260, 31
        %s262 = scalar_select %p261, %s260, 31
        %s263 = smul.addr %s262, 8
        %s264 = scalar_lea.vmem %s0, %s263
        %p265 = pneg %p43
        %p266 = pneg %p40
        %p267 = pneg %p64
        %p268 = pneg %p61
        %p269 = pneg %p85
        %p270 = pneg %p82
        %p271 = pneg %p106
        %p272 = pneg %p103
        %p273 = pneg %p127
        %p274 = pneg %p124
        %p275 = pneg %p153
        %p276 = pneg %p150
        %s277 = sand.u32 %s140, 1
        %s278 = scalar_lea.sflag [#allocation5], %s277
        %s279 = sand.u32 %s140, 1
        %s280 = smul.addr %s279, 256
        %s281 = scalar_lea.vmem [#allocation11], %s280
        %s282 = smul.u32 16, %s22
        %p283 = scmp.lt.s32.totalorder %s282, 31
        %s284 = scalar_select %p283, %s282, 31
        %s285 = smul.addr %s284, 8
        %s286 = scalar_lea.vmem %s0, %s285
        %s287 = smul.u32 16, %s22
        %s288 = smul.u32 8, %s22
        %v290 = vld [vmem:[%s286] sm:$0xff]
        %v291 = vld [vmem:[%s286 + $0x8] sm:$0xff]
        %v292 = vld [vmem:[%s286 + $0x10] sm:$0xff]
        %v293 = vld [vmem:[%s286 + $0x18] sm:$0xff]
        %v294 = vld [vmem:[%s286 + $0x20] sm:$0xff]
        %v295 = vld [vmem:[%s286 + $0x28] sm:$0xff]
        %v296 = vld [vmem:[%s286 + $0x30] sm:$0xff]
        %v297 = vld [vmem:[%s286 + $0x38] sm:$0xff]
        %v298 = vld [vmem:[%s286 + $0x40] sm:$0xff]
        %v299 = vld [vmem:[%s286 + $0x48] sm:$0xff]
        %v300 = vld [vmem:[%s286 + $0x50] sm:$0xff]
        %v301 = vld [vmem:[%s286 + $0x58] sm:$0xff]
        %v302 = vld [vmem:[%s286 + $0x60] sm:$0xff]
        %v303 = vld [vmem:[%s286 + $0x68] sm:$0xff]
        %v304 = vld [vmem:[%s286 + $0x70] sm:$0xff]
        %v305 = vld [vmem:[%s286 + $0x78] sm:$0xff]
        %v306 = vld [vmem:[#allocation3] sm:$0xff]
        %v307 = vld [vmem:[#allocation3 + $0x8] sm:$0xff]
        %v308 = vld [vmem:[#allocation3 + $0x10] sm:$0xff]
        %v309 = vld [vmem:[#allocation3 + $0x18] sm:$0xff]
        %vm310 = vcmask 130048
        %v312 = vsel %vm310, %v290, 0
        %v315 = vsel %vm310, %v291, 0
        %v318 = vsel %vm310, %v292, 0
        %v321 = vsel %vm310, %v293, 0
        %v324 = vsel %vm310, %v294, 0
        %v327 = vsel %vm310, %v295, 0
        %v330 = vsel %vm310, %v296, 0
        %v333 = vsel %vm310, %v297, 0
        %v336 = vsel %vm310, %v298, 0
        %v339 = vsel %vm310, %v299, 0
        %v342 = vsel %vm310, %v300, 0
        %v345 = vsel %vm310, %v301, 0
        %v348 = vsel %vm310, %v302, 0
        %v351 = vsel %vm310, %v303, 0
        %v354 = vsel %vm310, %v304, 0
        %v357 = vsel %vm310, %v305, 0
        %359 = vmatpush.msra.mxu0 0.0
        %360 = vmatpush.msra.mxu0 0.0
        %361 = vmatpush.msra.mxu0 0.0
        %362 = vmatpush.msra.mxu0 0.0
        %363 = vmatpush.msra.mxu0 0.0
        %364 = vmatpush.msra.mxu0 0.0
        %365 = vmatpush.msra.mxu0 0.0
        %366 = vmatpush.msra.mxu0 0.0
        %367 = vmatpush.msra.mxu0 0.0
        %368 = vmatpush.msra.mxu0 0.0
        %369 = vmatpush.msra.mxu0 0.0
        %370 = vmatpush.msra.mxu0 0.0
        %371 = vmatpush.msra.mxu0 0.0
        %372 = vmatpush.msra.mxu0 0.0
        %373 = vmatpush.msra.mxu0 %v308
        %374 = vmatpush.msra.mxu0 %v306
        %375 = vmatmul.f32.gmra.mxu0 %v312
        %v376 = vpop.f32.mrf.mxu0
        %v377 = vadd.f32 0.0, %v376
        %378 = vmatmul.f32.gmra.mxu0 %v315
        %v379 = vpop.f32.mrf.mxu0
        %v380 = vadd.f32 0.0, %v379
        %381 = vmatmul.f32.gmra.mxu0 %v318
        %v382 = vpop.f32.mrf.mxu0
        %v383 = vadd.f32 0.0, %v382
        %384 = vmatmul.f32.gmra.mxu0 %v321
        %v385 = vpop.f32.mrf.mxu0
        %v386 = vadd.f32 0.0, %v385
        %387 = vmatmul.f32.gmra.mxu0 %v324
        %v388 = vpop.f32.mrf.mxu0
        %v389 = vadd.f32 0.0, %v388
        %390 = vmatmul.f32.gmra.mxu0 %v327
        %v391 = vpop.f32.mrf.mxu0
        %v392 = vadd.f32 0.0, %v391
        %393 = vmatmul.f32.gmra.mxu0 %v330
        %v394 = vpop.f32.mrf.mxu0
        %v395 = vadd.f32 0.0, %v394
        %396 = vmatmul.f32.gmra.mxu0 %v333
        %v397 = vpop.f32.mrf.mxu0
        %v398 = vadd.f32 0.0, %v397
        %399 = vmatmul.f32.gmra.mxu0 %v336
        %v400 = vpop.f32.mrf.mxu0
        %v401 = vadd.f32 0.0, %v400
        %402 = vmatmul.f32.gmra.mxu0 %v339
        %v403 = vpop.f32.mrf.mxu0
        %v404 = vadd.f32 0.0, %v403
        %405 = vmatmul.f32.gmra.mxu0 %v342
        %v406 = vpop.f32.mrf.mxu0
        %v407 = vadd.f32 0.0, %v406
        %408 = vmatmul.f32.gmra.mxu0 %v345
        %v409 = vpop.f32.mrf.mxu0
        %v410 = vadd.f32 0.0, %v409
        %411 = vmatmul.f32.gmra.mxu0 %v348
        %v412 = vpop.f32.mrf.mxu0
        %v413 = vadd.f32 0.0, %v412
        %414 = vmatmul.f32.gmra.mxu0 %v351
        %v415 = vpop.f32.mrf.mxu0
        %v416 = vadd.f32 0.0, %v415
        %417 = vmatmul.f32.gmra.mxu0 %v354
        %v418 = vpop.f32.mrf.mxu0
        %v419 = vadd.f32 0.0, %v418
        %420 = vmatmul.f32.gmra.mxu0 %v357
        %v421 = vpop.f32.mrf.mxu0
        %v422 = vadd.f32 0.0, %v421
        %423 = vdwg.mxu0
        %424 = vmatpush.msra.mxu0 0.0
        %425 = vmatpush.msra.mxu0 0.0
        %426 = vmatpush.msra.mxu0 0.0
        %427 = vmatpush.msra.mxu0 0.0
        %428 = vmatpush.msra.mxu0 0.0
        %429 = vmatpush.msra.mxu0 0.0
        %430 = vmatpush.msra.mxu0 0.0
        %431 = vmatpush.msra.mxu0 0.0
        %432 = vmatpush.msra.mxu0 0.0
        %433 = vmatpush.msra.mxu0 0.0
        %434 = vmatpush.msra.mxu0 0.0
        %435 = vmatpush.msra.mxu0 0.0
        %436 = vmatpush.msra.mxu0 0.0
        %437 = vmatpush.msra.mxu0 0.0
        %438 = vmatpush.msra.mxu0 %v309
        %439 = vmatpush.msra.mxu0 %v307
        %440 = vmatmul.f32.gmra.mxu0 %v312
        %v441 = vpop.f32.mrf.mxu0
        %v442 = vadd.f32 0.0, %v441
        %443 = vmatmul.f32.gmra.mxu0 %v315
        %v444 = vpop.f32.mrf.mxu0
        %v445 = vadd.f32 0.0, %v444
        %446 = vmatmul.f32.gmra.mxu0 %v318
        %v447 = vpop.f32.mrf.mxu0
        %v448 = vadd.f32 0.0, %v447
        %449 = vmatmul.f32.gmra.mxu0 %v321
        %v450 = vpop.f32.mrf.mxu0
        %v451 = vadd.f32 0.0, %v450
        %452 = vmatmul.f32.gmra.mxu0 %v324
        %v453 = vpop.f32.mrf.mxu0
        %v454 = vadd.f32 0.0, %v453
        %455 = vmatmul.f32.gmra.mxu0 %v327
        %v456 = vpop.f32.mrf.mxu0
        %v457 = vadd.f32 0.0, %v456
        %458 = vmatmul.f32.gmra.mxu0 %v330
        %v459 = vpop.f32.mrf.mxu0
        %v460 = vadd.f32 0.0, %v459
        %461 = vmatmul.f32.gmra.mxu0 %v333
        %v462 = vpop.f32.mrf.mxu0
        %v463 = vadd.f32 0.0, %v462
        %464 = vmatmul.f32.gmra.mxu0 %v336
        %v465 = vpop.f32.mrf.mxu0
        %v466 = vadd.f32 0.0, %v465
        %467 = vmatmul.f32.gmra.mxu0 %v339
        %v468 = vpop.f32.mrf.mxu0
        %v469 = vadd.f32 0.0, %v468
        %470 = vmatmul.f32.gmra.mxu0 %v342
        %v471 = vpop.f32.mrf.mxu0
        %v472 = vadd.f32 0.0, %v471
        %473 = vmatmul.f32.gmra.mxu0 %v345
        %v474 = vpop.f32.mrf.mxu0
        %v475 = vadd.f32 0.0, %v474
        %476 = vmatmul.f32.gmra.mxu0 %v348
        %v477 = vpop.f32.mrf.mxu0
        %v478 = vadd.f32 0.0, %v477
        %479 = vmatmul.f32.gmra.mxu0 %v351
        %v480 = vpop.f32.mrf.mxu0
        %v481 = vadd.f32 0.0, %v480
        %482 = vmatmul.f32.gmra.mxu0 %v354
        %v483 = vpop.f32.mrf.mxu0
        %v484 = vadd.f32 0.0, %v483
        %485 = vmatmul.f32.gmra.mxu0 %v357
        %v486 = vpop.f32.mrf.mxu0
        %v487 = vadd.f32 0.0, %v486
        %488 = vdwg.mxu0
        %s489 = scalar_lea.vmem [#allocation3], 32
        %v490 = vld [vmem:[%s489] sm:$0xff]
        %v491 = vld [vmem:[%s489 + $0x8] sm:$0xff]
        %v492 = vld [vmem:[%s489 + $0x10] sm:$0xff]
        %v493 = vld [vmem:[%s489 + $0x18] sm:$0xff]
        %494 = vmatpush.msra.mxu0 0.0
        %495 = vmatpush.msra.mxu0 0.0
        %496 = vmatpush.msra.mxu0 0.0
        %497 = vmatpush.msra.mxu0 0.0
        %498 = vmatpush.msra.mxu0 0.0
        %499 = vmatpush.msra.mxu0 0.0
        %500 = vmatpush.msra.mxu0 0.0
        %501 = vmatpush.msra.mxu0 0.0
        %502 = vmatpush.msra.mxu0 0.0
        %503 = vmatpush.msra.mxu0 0.0
        %504 = vmatpush.msra.mxu0 0.0
        %505 = vmatpush.msra.mxu0 0.0
        %506 = vmatpush.msra.mxu0 0.0
        %507 = vmatpush.msra.mxu0 0.0
        %508 = vmatpush.msra.mxu0 %v492
        %509 = vmatpush.msra.mxu0 %v490
        %510 = vmatmul.f32.gmra.mxu0 %v312
        %v511 = vpop.f32.mrf.mxu0
        %v512 = vadd.f32 0.0, %v511
        %513 = vmatmul.f32.gmra.mxu0 %v315
        %v514 = vpop.f32.mrf.mxu0
        %v515 = vadd.f32 0.0, %v514
        %516 = vmatmul.f32.gmra.mxu0 %v318
        %v517 = vpop.f32.mrf.mxu0
        %v518 = vadd.f32 0.0, %v517
        %519 = vmatmul.f32.gmra.mxu0 %v321
        %v520 = vpop.f32.mrf.mxu0
        %v521 = vadd.f32 0.0, %v520
        %522 = vmatmul.f32.gmra.mxu0 %v324
        %v523 = vpop.f32.mrf.mxu0
        %v524 = vadd.f32 0.0, %v523
        %525 = vmatmul.f32.gmra.mxu0 %v327
        %v526 = vpop.f32.mrf.mxu0
        %v527 = vadd.f32 0.0, %v526
        %528 = vmatmul.f32.gmra.mxu0 %v330
        %v529 = vpop.f32.mrf.mxu0
        %v530 = vadd.f32 0.0, %v529
        %531 = vmatmul.f32.gmra.mxu0 %v333
        %v532 = vpop.f32.mrf.mxu0
        %v533 = vadd.f32 0.0, %v532
        %534 = vmatmul.f32.gmra.mxu0 %v336
        %v535 = vpop.f32.mrf.mxu0
        %v536 = vadd.f32 0.0, %v535
        %537 = vmatmul.f32.gmra.mxu0 %v339
        %v538 = vpop.f32.mrf.mxu0
        %v539 = vadd.f32 0.0, %v538
        %540 = vmatmul.f32.gmra.mxu0 %v342
        %v541 = vpop.f32.mrf.mxu0
        %v542 = vadd.f32 0.0, %v541
        %543 = vmatmul.f32.gmra.mxu0 %v345
        %v544 = vpop.f32.mrf.mxu0
        %v545 = vadd.f32 0.0, %v544
        %546 = vmatmul.f32.gmra.mxu0 %v348
        %v547 = vpop.f32.mrf.mxu0
        %v548 = vadd.f32 0.0, %v547
        %549 = vmatmul.f32.gmra.mxu0 %v351
        %v550 = vpop.f32.mrf.mxu0
        %v551 = vadd.f32 0.0, %v550
        %552 = vmatmul.f32.gmra.mxu0 %v354
        %v553 = vpop.f32.mrf.mxu0
        %v554 = vadd.f32 0.0, %v553
        %555 = vmatmul.f32.gmra.mxu0 %v357
        %v556 = vpop.f32.mrf.mxu0
        %v557 = vadd.f32 0.0, %v556
        %558 = vdwg.mxu0
        %559 = vmatpush.msra.mxu0 0.0
        %560 = vmatpush.msra.mxu0 0.0
        %561 = vmatpush.msra.mxu0 0.0
        %562 = vmatpush.msra.mxu0 0.0
        %563 = vmatpush.msra.mxu0 0.0
        %564 = vmatpush.msra.mxu0 0.0
        %565 = vmatpush.msra.mxu0 0.0
        %566 = vmatpush.msra.mxu0 0.0
        %567 = vmatpush.msra.mxu0 0.0
        %568 = vmatpush.msra.mxu0 0.0
        %569 = vmatpush.msra.mxu0 0.0
        %570 = vmatpush.msra.mxu0 0.0
        %571 = vmatpush.msra.mxu0 0.0
        %572 = vmatpush.msra.mxu0 0.0
        %573 = vmatpush.msra.mxu0 %v493
        %574 = vmatpush.msra.mxu0 %v491
        %575 = vmatmul.f32.gmra.mxu0 %v312
        %v576 = vpop.f32.mrf.mxu0
        %v577 = vadd.f32 0.0, %v576
        %578 = vmatmul.f32.gmra.mxu0 %v315
        %v579 = vpop.f32.mrf.mxu0
        %v580 = vadd.f32 0.0, %v579
        %581 = vmatmul.f32.gmra.mxu0 %v318
        %v582 = vpop.f32.mrf.mxu0
        %v583 = vadd.f32 0.0, %v582
        %584 = vmatmul.f32.gmra.mxu0 %v321
        %v585 = vpop.f32.mrf.mxu0
        %v586 = vadd.f32 0.0, %v585
        %587 = vmatmul.f32.gmra.mxu0 %v324
        %v588 = vpop.f32.mrf.mxu0
        %v589 = vadd.f32 0.0, %v588
        %590 = vmatmul.f32.gmra.mxu0 %v327
        %v591 = vpop.f32.mrf.mxu0
        %v592 = vadd.f32 0.0, %v591
        %593 = vmatmul.f32.gmra.mxu0 %v330
        %v594 = vpop.f32.mrf.mxu0
        %v595 = vadd.f32 0.0, %v594
        %596 = vmatmul.f32.gmra.mxu0 %v333
        %v597 = vpop.f32.mrf.mxu0
        %v598 = vadd.f32 0.0, %v597
        %599 = vmatmul.f32.gmra.mxu0 %v336
        %v600 = vpop.f32.mrf.mxu0
        %v601 = vadd.f32 0.0, %v600
        %602 = vmatmul.f32.gmra.mxu0 %v339
        %v603 = vpop.f32.mrf.mxu0
        %v604 = vadd.f32 0.0, %v603
        %605 = vmatmul.f32.gmra.mxu0 %v342
        %v606 = vpop.f32.mrf.mxu0
        %v607 = vadd.f32 0.0, %v606
        %608 = vmatmul.f32.gmra.mxu0 %v345
        %v609 = vpop.f32.mrf.mxu0
        %v610 = vadd.f32 0.0, %v609
        %611 = vmatmul.f32.gmra.mxu0 %v348
        %v612 = vpop.f32.mrf.mxu0
        %v613 = vadd.f32 0.0, %v612
        %614 = vmatmul.f32.gmra.mxu0 %v351
        %v615 = vpop.f32.mrf.mxu0
        %v616 = vadd.f32 0.0, %v615
        %617 = vmatmul.f32.gmra.mxu0 %v354
        %v618 = vpop.f32.mrf.mxu0
        %v619 = vadd.f32 0.0, %v618
        %620 = vmatmul.f32.gmra.mxu0 %v357
        %v621 = vpop.f32.mrf.mxu0
        %v622 = vadd.f32 0.0, %v621
        %623 = vdwg.mxu0
        %vm656 = vcmask 1046528
        %v657 = vrot.slane %v512, 1
        %v658 = vrot.slane %v515, 1
        %v659 = vsel %vm656, %v657, %v658
        %v660 = vrot.slane %v577, 1
        %v661 = vrot.slane %v580, 1
        %v662 = vsel %vm656, %v660, %v661
        %v663 = vrot.slane %v518, 1
        %v664 = vrot.slane %v521, 1
        %v665 = vsel %vm656, %v663, %v664
        %v666 = vrot.slane %v583, 1
        %v667 = vrot.slane %v586, 1
        %v668 = vsel %vm656, %v666, %v667
        %v669 = vrot.slane %v524, 1
        %v670 = vrot.slane %v527, 1
        %v671 = vsel %vm656, %v669, %v670
        %v672 = vrot.slane %v589, 1
        %v673 = vrot.slane %v592, 1
        %v674 = vsel %vm656, %v672, %v673
        %v675 = vrot.slane %v530, 1
        %v676 = vrot.slane %v533, 1
        %v677 = vsel %vm656, %v675, %v676
        %v678 = vrot.slane %v595, 1
        %v679 = vrot.slane %v598, 1
        %v680 = vsel %vm656, %v678, %v679
        %v681 = vrot.slane %v536, 1
        %v682 = vrot.slane %v539, 1
        %v683 = vsel %vm656, %v681, %v682
        %v684 = vrot.slane %v601, 1
        %v685 = vrot.slane %v604, 1
        %v686 = vsel %vm656, %v684, %v685
        %v687 = vrot.slane %v542, 1
        %v688 = vrot.slane %v545, 1
        %v689 = vsel %vm656, %v687, %v688
        %v690 = vrot.slane %v607, 1
        %v691 = vrot.slane %v610, 1
        %v692 = vsel %vm656, %v690, %v691
        %v693 = vrot.slane %v548, 1
        %v694 = vrot.slane %v551, 1
        %v695 = vsel %vm656, %v693, %v694
        %v696 = vrot.slane %v613, 1
        %v697 = vrot.slane %v616, 1
        %v698 = vsel %vm656, %v696, %v697
        %v699 = vrot.slane %v554, 1
        %v700 = vrot.slane %v557, 1
        %v701 = vsel %vm656, %v699, %v700
        %v702 = vrot.slane %v619, 1
        %v703 = vrot.slane %v622, 1
        %v704 = vsel %vm656, %v702, %v703
        %v737 = vadd.f32 %v377, %v659
        %v738 = vadd.f32 %v442, %v662
        %v739 = vadd.f32 %v380, %v658
        %v740 = vadd.f32 %v445, %v661
        %v741 = vadd.f32 %v383, %v665
        %v742 = vadd.f32 %v448, %v668
        %v743 = vadd.f32 %v386, %v664
        %v744 = vadd.f32 %v451, %v667
        %v745 = vadd.f32 %v389, %v671
        %v746 = vadd.f32 %v454, %v674
        %v747 = vadd.f32 %v392, %v670
        %v748 = vadd.f32 %v457, %v673
        %v749 = vadd.f32 %v395, %v677
        %v750 = vadd.f32 %v460, %v680
        %v751 = vadd.f32 %v398, %v676
        %v752 = vadd.f32 %v463, %v679
        %v753 = vadd.f32 %v401, %v683
        %v754 = vadd.f32 %v466, %v686
        %v755 = vadd.f32 %v404, %v682
        %v756 = vadd.f32 %v469, %v685
        %v757 = vadd.f32 %v407, %v689
        %v758 = vadd.f32 %v472, %v692
        %v759 = vadd.f32 %v410, %v688
        %v760 = vadd.f32 %v475, %v691
        %v761 = vadd.f32 %v413, %v695
        %v762 = vadd.f32 %v478, %v698
        %v763 = vadd.f32 %v416, %v694
        %v764 = vadd.f32 %v481, %v697
        %v765 = vadd.f32 %v419, %v701
        %v766 = vadd.f32 %v484, %v704
        %v767 = vadd.f32 %v422, %v700
        %v768 = vadd.f32 %v487, %v703
        %s769 = scalar_lea.vmem [#allocation3], 64
        %v770 = vld [vmem:[%s769] sm:$0xff]
        %v771 = vld [vmem:[%s769 + $0x8] sm:$0xff]
        %v772 = vld [vmem:[%s769 + $0x10] sm:$0xff]
        %v773 = vld [vmem:[%s769 + $0x18] sm:$0xff]
        %774 = vmatpush.msra.mxu0 0.0
        %775 = vmatpush.msra.mxu0 0.0
        %776 = vmatpush.msra.mxu0 0.0
        %777 = vmatpush.msra.mxu0 0.0
        %778 = vmatpush.msra.mxu0 0.0
        %779 = vmatpush.msra.mxu0 0.0
        %780 = vmatpush.msra.mxu0 0.0
        %781 = vmatpush.msra.mxu0 0.0
        %782 = vmatpush.msra.mxu0 0.0
        %783 = vmatpush.msra.mxu0 0.0
        %784 = vmatpush.msra.mxu0 0.0
        %785 = vmatpush.msra.mxu0 0.0
        %786 = vmatpush.msra.mxu0 0.0
        %787 = vmatpush.msra.mxu0 0.0
        %788 = vmatpush.msra.mxu0 %v772
        %789 = vmatpush.msra.mxu0 %v770
        %790 = vmatmul.f32.gmra.mxu0 %v312
        %v791 = vpop.f32.mrf.mxu0
        %v792 = vadd.f32 0.0, %v791
        %793 = vmatmul.f32.gmra.mxu0 %v315
        %v794 = vpop.f32.mrf.mxu0
        %v795 = vadd.f32 0.0, %v794
        %796 = vmatmul.f32.gmra.mxu0 %v318
        %v797 = vpop.f32.mrf.mxu0
        %v798 = vadd.f32 0.0, %v797
        %799 = vmatmul.f32.gmra.mxu0 %v321
        %v800 = vpop.f32.mrf.mxu0
        %v801 = vadd.f32 0.0, %v800
        %802 = vmatmul.f32.gmra.mxu0 %v324
        %v803 = vpop.f32.mrf.mxu0
        %v804 = vadd.f32 0.0, %v803
        %805 = vmatmul.f32.gmra.mxu0 %v327
        %v806 = vpop.f32.mrf.mxu0
        %v807 = vadd.f32 0.0, %v806
        %808 = vmatmul.f32.gmra.mxu0 %v330
        %v809 = vpop.f32.mrf.mxu0
        %v810 = vadd.f32 0.0, %v809
        %811 = vmatmul.f32.gmra.mxu0 %v333
        %v812 = vpop.f32.mrf.mxu0
        %v813 = vadd.f32 0.0, %v812
        %814 = vmatmul.f32.gmra.mxu0 %v336
        %v815 = vpop.f32.mrf.mxu0
        %v816 = vadd.f32 0.0, %v815
        %817 = vmatmul.f32.gmra.mxu0 %v339
        %v818 = vpop.f32.mrf.mxu0
        %v819 = vadd.f32 0.0, %v818
        %820 = vmatmul.f32.gmra.mxu0 %v342
        %v821 = vpop.f32.mrf.mxu0
        %v822 = vadd.f32 0.0, %v821
        %823 = vmatmul.f32.gmra.mxu0 %v345
        %v824 = vpop.f32.mrf.mxu0
        %v825 = vadd.f32 0.0, %v824
        %826 = vmatmul.f32.gmra.mxu0 %v348
        %v827 = vpop.f32.mrf.mxu0
        %v828 = vadd.f32 0.0, %v827
        %829 = vmatmul.f32.gmra.mxu0 %v351
        %v830 = vpop.f32.mrf.mxu0
        %v831 = vadd.f32 0.0, %v830
        %832 = vmatmul.f32.gmra.mxu0 %v354
        %v833 = vpop.f32.mrf.mxu0
        %v834 = vadd.f32 0.0, %v833
        %835 = vmatmul.f32.gmra.mxu0 %v357
        %v836 = vpop.f32.mrf.mxu0
        %v837 = vadd.f32 0.0, %v836
        %838 = vdwg.mxu0
        %839 = vmatpush.msra.mxu0 0.0
        %840 = vmatpush.msra.mxu0 0.0
        %841 = vmatpush.msra.mxu0 0.0
        %842 = vmatpush.msra.mxu0 0.0
        %843 = vmatpush.msra.mxu0 0.0
        %844 = vmatpush.msra.mxu0 0.0
        %845 = vmatpush.msra.mxu0 0.0
        %846 = vmatpush.msra.mxu0 0.0
        %847 = vmatpush.msra.mxu0 0.0
        %848 = vmatpush.msra.mxu0 0.0
        %849 = vmatpush.msra.mxu0 0.0
        %850 = vmatpush.msra.mxu0 0.0
        %851 = vmatpush.msra.mxu0 0.0
        %852 = vmatpush.msra.mxu0 0.0
        %853 = vmatpush.msra.mxu0 %v773
        %854 = vmatpush.msra.mxu0 %v771
        %855 = vmatmul.f32.gmra.mxu0 %v312
        %v856 = vpop.f32.mrf.mxu0
        %v857 = vadd.f32 0.0, %v856
        %858 = vmatmul.f32.gmra.mxu0 %v315
        %v859 = vpop.f32.mrf.mxu0
        %v860 = vadd.f32 0.0, %v859
        %861 = vmatmul.f32.gmra.mxu0 %v318
        %v862 = vpop.f32.mrf.mxu0
        %v863 = vadd.f32 0.0, %v862
        %864 = vmatmul.f32.gmra.mxu0 %v321
        %v865 = vpop.f32.mrf.mxu0
        %v866 = vadd.f32 0.0, %v865
        %867 = vmatmul.f32.gmra.mxu0 %v324
        %v868 = vpop.f32.mrf.mxu0
        %v869 = vadd.f32 0.0, %v868
        %870 = vmatmul.f32.gmra.mxu0 %v327
        %v871 = vpop.f32.mrf.mxu0
        %v872 = vadd.f32 0.0, %v871
        %873 = vmatmul.f32.gmra.mxu0 %v330
        %v874 = vpop.f32.mrf.mxu0
        %v875 = vadd.f32 0.0, %v874
        %876 = vmatmul.f32.gmra.mxu0 %v333
        %v877 = vpop.f32.mrf.mxu0
        %v878 = vadd.f32 0.0, %v877
        %879 = vmatmul.f32.gmra.mxu0 %v336
        %v880 = vpop.f32.mrf.mxu0
        %v881 = vadd.f32 0.0, %v880
        %882 = vmatmul.f32.gmra.mxu0 %v339
        %v883 = vpop.f32.mrf.mxu0
        %v884 = vadd.f32 0.0, %v883
        %885 = vmatmul.f32.gmra.mxu0 %v342
        %v886 = vpop.f32.mrf.mxu0
        %v887 = vadd.f32 0.0, %v886
        %888 = vmatmul.f32.gmra.mxu0 %v345
        %v889 = vpop.f32.mrf.mxu0
        %v890 = vadd.f32 0.0, %v889
        %891 = vmatmul.f32.gmra.mxu0 %v348
        %v892 = vpop.f32.mrf.mxu0
        %v893 = vadd.f32 0.0, %v892
        %894 = vmatmul.f32.gmra.mxu0 %v351
        %v895 = vpop.f32.mrf.mxu0
        %v896 = vadd.f32 0.0, %v895
        %897 = vmatmul.f32.gmra.mxu0 %v354
        %v898 = vpop.f32.mrf.mxu0
        %v899 = vadd.f32 0.0, %v898
        %900 = vmatmul.f32.gmra.mxu0 %v357
        %v901 = vpop.f32.mrf.mxu0
        %v902 = vadd.f32 0.0, %v901
        %903 = vdwg.mxu0
        %vm936 = vcmask 1045504
        %v937 = vrot.slane %v792, 2
        %v938 = vrot.slane %v795, 2
        %v939 = vsel %vm936, %v937, %v938
        %v940 = vrot.slane %v857, 2
        %v941 = vrot.slane %v860, 2
        %v942 = vsel %vm936, %v940, %v941
        %v943 = vrot.slane %v798, 2
        %v944 = vrot.slane %v801, 2
        %v945 = vsel %vm936, %v943, %v944
        %v946 = vrot.slane %v863, 2
        %v947 = vrot.slane %v866, 2
        %v948 = vsel %vm936, %v946, %v947
        %v949 = vrot.slane %v804, 2
        %v950 = vrot.slane %v807, 2
        %v951 = vsel %vm936, %v949, %v950
        %v952 = vrot.slane %v869, 2
        %v953 = vrot.slane %v872, 2
        %v954 = vsel %vm936, %v952, %v953
        %v955 = vrot.slane %v810, 2
        %v956 = vrot.slane %v813, 2
        %v957 = vsel %vm936, %v955, %v956
        %v958 = vrot.slane %v875, 2
        %v959 = vrot.slane %v878, 2
        %v960 = vsel %vm936, %v958, %v959
        %v961 = vrot.slane %v816, 2
        %v962 = vrot.slane %v819, 2
        %v963 = vsel %vm936, %v961, %v962
        %v964 = vrot.slane %v881, 2
        %v965 = vrot.slane %v884, 2
        %v966 = vsel %vm936, %v964, %v965
        %v967 = vrot.slane %v822, 2
        %v968 = vrot.slane %v825, 2
        %v969 = vsel %vm936, %v967, %v968
        %v970 = vrot.slane %v887, 2
        %v971 = vrot.slane %v890, 2
        %v972 = vsel %vm936, %v970, %v971
        %v973 = vrot.slane %v828, 2
        %v974 = vrot.slane %v831, 2
        %v975 = vsel %vm936, %v973, %v974
        %v976 = vrot.slane %v893, 2
        %v977 = vrot.slane %v896, 2
        %v978 = vsel %vm936, %v976, %v977
        %v979 = vrot.slane %v834, 2
        %v980 = vrot.slane %v837, 2
        %v981 = vsel %vm936, %v979, %v980
        %v982 = vrot.slane %v899, 2
        %v983 = vrot.slane %v902, 2
        %v984 = vsel %vm936, %v982, %v983
        %v1017 = vadd.f32 %v737, %v939
        %v1018 = vadd.f32 %v738, %v942
        %v1019 = vadd.f32 %v739, %v938
        %v1020 = vadd.f32 %v740, %v941
        %v1021 = vadd.f32 %v741, %v945
        %v1022 = vadd.f32 %v742, %v948
        %v1023 = vadd.f32 %v743, %v944
        %v1024 = vadd.f32 %v744, %v947
        %v1025 = vadd.f32 %v745, %v951
        %v1026 = vadd.f32 %v746, %v954
        %v1027 = vadd.f32 %v747, %v950
        %v1028 = vadd.f32 %v748, %v953
        %v1029 = vadd.f32 %v749, %v957
        %v1030 = vadd.f32 %v750, %v960
        %v1031 = vadd.f32 %v751, %v956
        %v1032 = vadd.f32 %v752, %v959
        %v1033 = vadd.f32 %v753, %v963
        %v1034 = vadd.f32 %v754, %v966
        %v1035 = vadd.f32 %v755, %v962
        %v1036 = vadd.f32 %v756, %v965
        %v1037 = vadd.f32 %v757, %v969
        %v1038 = vadd.f32 %v758, %v972
        %v1039 = vadd.f32 %v759, %v968
        %v1040 = vadd.f32 %v760, %v971
        %v1041 = vadd.f32 %v761, %v975
        %v1042 = vadd.f32 %v762, %v978
        %v1043 = vadd.f32 %v763, %v974
        %v1044 = vadd.f32 %v764, %v977
        %v1045 = vadd.f32 %v765, %v981
        %v1046 = vadd.f32 %v766, %v984
        %v1047 = vadd.f32 %v767, %v980
        %v1048 = vadd.f32 %v768, %v983
        %s1049 = scalar_lea.vmem [#allocation3], 96
        %v1050 = vld [vmem:[%s1049] sm:$0xff]
        %v1051 = vld [vmem:[%s1049 + $0x8] sm:$0xff]
        %v1052 = vld [vmem:[%s1049 + $0x10] sm:$0xff]
        %v1053 = vld [vmem:[%s1049 + $0x18] sm:$0xff]
        %1054 = vmatpush.msra.mxu0 0.0
        %1055 = vmatpush.msra.mxu0 0.0
        %1056 = vmatpush.msra.mxu0 0.0
        %1057 = vmatpush.msra.mxu0 0.0
        %1058 = vmatpush.msra.mxu0 0.0
        %1059 = vmatpush.msra.mxu0 0.0
        %1060 = vmatpush.msra.mxu0 0.0
        %1061 = vmatpush.msra.mxu0 0.0
        %1062 = vmatpush.msra.mxu0 0.0
        %1063 = vmatpush.msra.mxu0 0.0
        %1064 = vmatpush.msra.mxu0 0.0
        %1065 = vmatpush.msra.mxu0 0.0
        %1066 = vmatpush.msra.mxu0 0.0
        %1067 = vmatpush.msra.mxu0 0.0
        %1068 = vmatpush.msra.mxu0 %v1052
        %1069 = vmatpush.msra.mxu0 %v1050
        %1070 = vmatmul.f32.gmra.mxu0 %v312
        %v1071 = vpop.f32.mrf.mxu0
        %v1072 = vadd.f32 0.0, %v1071
        %1073 = vmatmul.f32.gmra.mxu0 %v315
        %v1074 = vpop.f32.mrf.mxu0
        %v1075 = vadd.f32 0.0, %v1074
        %1076 = vmatmul.f32.gmra.mxu0 %v318
        %v1077 = vpop.f32.mrf.mxu0
        %v1078 = vadd.f32 0.0, %v1077
        %1079 = vmatmul.f32.gmra.mxu0 %v321
        %v1080 = vpop.f32.mrf.mxu0
        %v1081 = vadd.f32 0.0, %v1080
        %1082 = vmatmul.f32.gmra.mxu0 %v324
        %v1083 = vpop.f32.mrf.mxu0
        %v1084 = vadd.f32 0.0, %v1083
        %1085 = vmatmul.f32.gmra.mxu0 %v327
        %v1086 = vpop.f32.mrf.mxu0
        %v1087 = vadd.f32 0.0, %v1086
        %1088 = vmatmul.f32.gmra.mxu0 %v330
        %v1089 = vpop.f32.mrf.mxu0
        %v1090 = vadd.f32 0.0, %v1089
        %1091 = vmatmul.f32.gmra.mxu0 %v333
        %v1092 = vpop.f32.mrf.mxu0
        %v1093 = vadd.f32 0.0, %v1092
        %1094 = vmatmul.f32.gmra.mxu0 %v336
        %v1095 = vpop.f32.mrf.mxu0
        %v1096 = vadd.f32 0.0, %v1095
        %1097 = vmatmul.f32.gmra.mxu0 %v339
        %v1098 = vpop.f32.mrf.mxu0
        %v1099 = vadd.f32 0.0, %v1098
        %1100 = vmatmul.f32.gmra.mxu0 %v342
        %v1101 = vpop.f32.mrf.mxu0
        %v1102 = vadd.f32 0.0, %v1101
        %1103 = vmatmul.f32.gmra.mxu0 %v345
        %v1104 = vpop.f32.mrf.mxu0
        %v1105 = vadd.f32 0.0, %v1104
        %1106 = vmatmul.f32.gmra.mxu0 %v348
        %v1107 = vpop.f32.mrf.mxu0
        %v1108 = vadd.f32 0.0, %v1107
        %1109 = vmatmul.f32.gmra.mxu0 %v351
        %v1110 = vpop.f32.mrf.mxu0
        %v1111 = vadd.f32 0.0, %v1110
        %1112 = vmatmul.f32.gmra.mxu0 %v354
        %v1113 = vpop.f32.mrf.mxu0
        %v1114 = vadd.f32 0.0, %v1113
        %1115 = vmatmul.f32.gmra.mxu0 %v357
        %v1116 = vpop.f32.mrf.mxu0
        %v1117 = vadd.f32 0.0, %v1116
        %1118 = vdwg.mxu0
        %1119 = vmatpush.msra.mxu0 0.0
        %1120 = vmatpush.msra.mxu0 0.0
        %1121 = vmatpush.msra.mxu0 0.0
        %1122 = vmatpush.msra.mxu0 0.0
        %1123 = vmatpush.msra.mxu0 0.0
        %1124 = vmatpush.msra.mxu0 0.0
        %1125 = vmatpush.msra.mxu0 0.0
        %1126 = vmatpush.msra.mxu0 0.0
        %1127 = vmatpush.msra.mxu0 0.0
        %1128 = vmatpush.msra.mxu0 0.0
        %1129 = vmatpush.msra.mxu0 0.0
        %1130 = vmatpush.msra.mxu0 0.0
        %1131 = vmatpush.msra.mxu0 0.0
        %1132 = vmatpush.msra.mxu0 0.0
        %1133 = vmatpush.msra.mxu0 %v1053
        %1134 = vmatpush.msra.mxu0 %v1051
        %1135 = vmatmul.f32.gmra.mxu0 %v312
        %v1136 = vpop.f32.mrf.mxu0
        %v1137 = vadd.f32 0.0, %v1136
        %1138 = vmatmul.f32.gmra.mxu0 %v315
        %v1139 = vpop.f32.mrf.mxu0
        %v1140 = vadd.f32 0.0, %v1139
        %1141 = vmatmul.f32.gmra.mxu0 %v318
        %v1142 = vpop.f32.mrf.mxu0
        %v1143 = vadd.f32 0.0, %v1142
        %1144 = vmatmul.f32.gmra.mxu0 %v321
        %v1145 = vpop.f32.mrf.mxu0
        %v1146 = vadd.f32 0.0, %v1145
        %1147 = vmatmul.f32.gmra.mxu0 %v324
        %v1148 = vpop.f32.mrf.mxu0
        %v1149 = vadd.f32 0.0, %v1148
        %1150 = vmatmul.f32.gmra.mxu0 %v327
        %v1151 = vpop.f32.mrf.mxu0
        %v1152 = vadd.f32 0.0, %v1151
        %1153 = vmatmul.f32.gmra.mxu0 %v330
        %v1154 = vpop.f32.mrf.mxu0
        %v1155 = vadd.f32 0.0, %v1154
        %1156 = vmatmul.f32.gmra.mxu0 %v333
        %v1157 = vpop.f32.mrf.mxu0
        %v1158 = vadd.f32 0.0, %v1157
        %1159 = vmatmul.f32.gmra.mxu0 %v336
        %v1160 = vpop.f32.mrf.mxu0
        %v1161 = vadd.f32 0.0, %v1160
        %1162 = vmatmul.f32.gmra.mxu0 %v339
        %v1163 = vpop.f32.mrf.mxu0
        %v1164 = vadd.f32 0.0, %v1163
        %1165 = vmatmul.f32.gmra.mxu0 %v342
        %v1166 = vpop.f32.mrf.mxu0
        %v1167 = vadd.f32 0.0, %v1166
        %1168 = vmatmul.f32.gmra.mxu0 %v345
        %v1169 = vpop.f32.mrf.mxu0
        %v1170 = vadd.f32 0.0, %v1169
        %1171 = vmatmul.f32.gmra.mxu0 %v348
        %v1172 = vpop.f32.mrf.mxu0
        %v1173 = vadd.f32 0.0, %v1172
        %1174 = vmatmul.f32.gmra.mxu0 %v351
        %v1175 = vpop.f32.mrf.mxu0
        %v1176 = vadd.f32 0.0, %v1175
        %1177 = vmatmul.f32.gmra.mxu0 %v354
        %v1178 = vpop.f32.mrf.mxu0
        %v1179 = vadd.f32 0.0, %v1178
        %1180 = vmatmul.f32.gmra.mxu0 %v357
        %v1181 = vpop.f32.mrf.mxu0
        %v1182 = vadd.f32 0.0, %v1181
        %1183 = vdwg.mxu0
        %vm1216 = vcmask 1044480
        %v1217 = vrot.slane %v1072, 3
        %v1218 = vrot.slane %v1075, 3
        %v1219 = vsel %vm1216, %v1217, %v1218
        %v1220 = vrot.slane %v1137, 3
        %v1221 = vrot.slane %v1140, 3
        %v1222 = vsel %vm1216, %v1220, %v1221
        %v1223 = vrot.slane %v1078, 3
        %v1224 = vrot.slane %v1081, 3
        %v1225 = vsel %vm1216, %v1223, %v1224
        %v1226 = vrot.slane %v1143, 3
        %v1227 = vrot.slane %v1146, 3
        %v1228 = vsel %vm1216, %v1226, %v1227
        %v1229 = vrot.slane %v1084, 3
        %v1230 = vrot.slane %v1087, 3
        %v1231 = vsel %vm1216, %v1229, %v1230
        %v1232 = vrot.slane %v1149, 3
        %v1233 = vrot.slane %v1152, 3
        %v1234 = vsel %vm1216, %v1232, %v1233
        %v1235 = vrot.slane %v1090, 3
        %v1236 = vrot.slane %v1093, 3
        %v1237 = vsel %vm1216, %v1235, %v1236
        %v1238 = vrot.slane %v1155, 3
        %v1239 = vrot.slane %v1158, 3
        %v1240 = vsel %vm1216, %v1238, %v1239
        %v1241 = vrot.slane %v1096, 3
        %v1242 = vrot.slane %v1099, 3
        %v1243 = vsel %vm1216, %v1241, %v1242
        %v1244 = vrot.slane %v1161, 3
        %v1245 = vrot.slane %v1164, 3
        %v1246 = vsel %vm1216, %v1244, %v1245
        %v1247 = vrot.slane %v1102, 3
        %v1248 = vrot.slane %v1105, 3
        %v1249 = vsel %vm1216, %v1247, %v1248
        %v1250 = vrot.slane %v1167, 3
        %v1251 = vrot.slane %v1170, 3
        %v1252 = vsel %vm1216, %v1250, %v1251
        %v1253 = vrot.slane %v1108, 3
        %v1254 = vrot.slane %v1111, 3
        %v1255 = vsel %vm1216, %v1253, %v1254
        %v1256 = vrot.slane %v1173, 3
        %v1257 = vrot.slane %v1176, 3
        %v1258 = vsel %vm1216, %v1256, %v1257
        %v1259 = vrot.slane %v1114, 3
        %v1260 = vrot.slane %v1117, 3
        %v1261 = vsel %vm1216, %v1259, %v1260
        %v1262 = vrot.slane %v1179, 3
        %v1263 = vrot.slane %v1182, 3
        %v1264 = vsel %vm1216, %v1262, %v1263
        %v1297 = vadd.f32 %v1017, %v1219
        %v1298 = vadd.f32 %v1018, %v1222
        %v1299 = vadd.f32 %v1019, %v1218
        %v1300 = vadd.f32 %v1020, %v1221
        %v1301 = vadd.f32 %v1021, %v1225
        %v1302 = vadd.f32 %v1022, %v1228
        %v1303 = vadd.f32 %v1023, %v1224
        %v1304 = vadd.f32 %v1024, %v1227
        %v1305 = vadd.f32 %v1025, %v1231
        %v1306 = vadd.f32 %v1026, %v1234
        %v1307 = vadd.f32 %v1027, %v1230
        %v1308 = vadd.f32 %v1028, %v1233
        %v1309 = vadd.f32 %v1029, %v1237
        %v1310 = vadd.f32 %v1030, %v1240
        %v1311 = vadd.f32 %v1031, %v1236
        %v1312 = vadd.f32 %v1032, %v1239
        %v1313 = vadd.f32 %v1033, %v1243
        %v1314 = vadd.f32 %v1034, %v1246
        %v1315 = vadd.f32 %v1035, %v1242
        %v1316 = vadd.f32 %v1036, %v1245
        %v1317 = vadd.f32 %v1037, %v1249
        %v1318 = vadd.f32 %v1038, %v1252
        %v1319 = vadd.f32 %v1039, %v1248
        %v1320 = vadd.f32 %v1040, %v1251
        %v1321 = vadd.f32 %v1041, %v1255
        %v1322 = vadd.f32 %v1042, %v1258
        %v1323 = vadd.f32 %v1043, %v1254
        %v1324 = vadd.f32 %v1044, %v1257
        %v1325 = vadd.f32 %v1045, %v1261
        %v1326 = vadd.f32 %v1046, %v1264
        %v1327 = vadd.f32 %v1047, %v1260
        %v1328 = vadd.f32 %v1048, %v1263
        %s1329 = scalar_lea.vmem [#allocation3], 128
        %v1330 = vld [vmem:[%s1329] sm:$0xff]
        %v1331 = vld [vmem:[%s1329 + $0x8] sm:$0xff]
        %v1332 = vld [vmem:[%s1329 + $0x10] sm:$0xff]
        %v1333 = vld [vmem:[%s1329 + $0x18] sm:$0xff]
        %1334 = vmatpush.msra.mxu0 0.0
        %1335 = vmatpush.msra.mxu0 0.0
        %1336 = vmatpush.msra.mxu0 0.0
        %1337 = vmatpush.msra.mxu0 0.0
        %1338 = vmatpush.msra.mxu0 0.0
        %1339 = vmatpush.msra.mxu0 0.0
        %1340 = vmatpush.msra.mxu0 0.0
        %1341 = vmatpush.msra.mxu0 0.0
        %1342 = vmatpush.msra.mxu0 0.0
        %1343 = vmatpush.msra.mxu0 0.0
        %1344 = vmatpush.msra.mxu0 0.0
        %1345 = vmatpush.msra.mxu0 0.0
        %1346 = vmatpush.msra.mxu0 0.0
        %1347 = vmatpush.msra.mxu0 0.0
        %1348 = vmatpush.msra.mxu0 %v1332
        %1349 = vmatpush.msra.mxu0 %v1330
        %1350 = vmatmul.f32.gmra.mxu0 %v312
        %v1351 = vpop.f32.mrf.mxu0
        %v1352 = vadd.f32 0.0, %v1351
        %1353 = vmatmul.f32.gmra.mxu0 %v315
        %v1354 = vpop.f32.mrf.mxu0
        %v1355 = vadd.f32 0.0, %v1354
        %1356 = vmatmul.f32.gmra.mxu0 %v318
        %v1357 = vpop.f32.mrf.mxu0
        %v1358 = vadd.f32 0.0, %v1357
        %1359 = vmatmul.f32.gmra.mxu0 %v321
        %v1360 = vpop.f32.mrf.mxu0
        %v1361 = vadd.f32 0.0, %v1360
        %1362 = vmatmul.f32.gmra.mxu0 %v324
        %v1363 = vpop.f32.mrf.mxu0
        %v1364 = vadd.f32 0.0, %v1363
        %1365 = vmatmul.f32.gmra.mxu0 %v327
        %v1366 = vpop.f32.mrf.mxu0
        %v1367 = vadd.f32 0.0, %v1366
        %1368 = vmatmul.f32.gmra.mxu0 %v330
        %v1369 = vpop.f32.mrf.mxu0
        %v1370 = vadd.f32 0.0, %v1369
        %1371 = vmatmul.f32.gmra.mxu0 %v333
        %v1372 = vpop.f32.mrf.mxu0
        %v1373 = vadd.f32 0.0, %v1372
        %1374 = vmatmul.f32.gmra.mxu0 %v336
        %v1375 = vpop.f32.mrf.mxu0
        %v1376 = vadd.f32 0.0, %v1375
        %1377 = vmatmul.f32.gmra.mxu0 %v339
        %v1378 = vpop.f32.mrf.mxu0
        %v1379 = vadd.f32 0.0, %v1378
        %1380 = vmatmul.f32.gmra.mxu0 %v342
        %v1381 = vpop.f32.mrf.mxu0
        %v1382 = vadd.f32 0.0, %v1381
        %1383 = vmatmul.f32.gmra.mxu0 %v345
        %v1384 = vpop.f32.mrf.mxu0
        %v1385 = vadd.f32 0.0, %v1384
        %1386 = vmatmul.f32.gmra.mxu0 %v348
        %v1387 = vpop.f32.mrf.mxu0
        %v1388 = vadd.f32 0.0, %v1387
        %1389 = vmatmul.f32.gmra.mxu0 %v351
        %v1390 = vpop.f32.mrf.mxu0
        %v1391 = vadd.f32 0.0, %v1390
        %1392 = vmatmul.f32.gmra.mxu0 %v354
        %v1393 = vpop.f32.mrf.mxu0
        %v1394 = vadd.f32 0.0, %v1393
        %1395 = vmatmul.f32.gmra.mxu0 %v357
        %v1396 = vpop.f32.mrf.mxu0
        %v1397 = vadd.f32 0.0, %v1396
        %1398 = vdwg.mxu0
        %1399 = vmatpush.msra.mxu0 0.0
        %1400 = vmatpush.msra.mxu0 0.0
        %1401 = vmatpush.msra.mxu0 0.0
        %1402 = vmatpush.msra.mxu0 0.0
        %1403 = vmatpush.msra.mxu0 0.0
        %1404 = vmatpush.msra.mxu0 0.0
        %1405 = vmatpush.msra.mxu0 0.0
        %1406 = vmatpush.msra.mxu0 0.0
        %1407 = vmatpush.msra.mxu0 0.0
        %1408 = vmatpush.msra.mxu0 0.0
        %1409 = vmatpush.msra.mxu0 0.0
        %1410 = vmatpush.msra.mxu0 0.0
        %1411 = vmatpush.msra.mxu0 0.0
        %1412 = vmatpush.msra.mxu0 0.0
        %1413 = vmatpush.msra.mxu0 %v1333
        %1414 = vmatpush.msra.mxu0 %v1331
        %1415 = vmatmul.f32.gmra.mxu0 %v312
        %v1416 = vpop.f32.mrf.mxu0
        %v1417 = vadd.f32 0.0, %v1416
        %1418 = vmatmul.f32.gmra.mxu0 %v315
        %v1419 = vpop.f32.mrf.mxu0
        %v1420 = vadd.f32 0.0, %v1419
        %1421 = vmatmul.f32.gmra.mxu0 %v318
        %v1422 = vpop.f32.mrf.mxu0
        %v1423 = vadd.f32 0.0, %v1422
        %1424 = vmatmul.f32.gmra.mxu0 %v321
        %v1425 = vpop.f32.mrf.mxu0
        %v1426 = vadd.f32 0.0, %v1425
        %1427 = vmatmul.f32.gmra.mxu0 %v324
        %v1428 = vpop.f32.mrf.mxu0
        %v1429 = vadd.f32 0.0, %v1428
        %1430 = vmatmul.f32.gmra.mxu0 %v327
        %v1431 = vpop.f32.mrf.mxu0
        %v1432 = vadd.f32 0.0, %v1431
        %1433 = vmatmul.f32.gmra.mxu0 %v330
        %v1434 = vpop.f32.mrf.mxu0
        %v1435 = vadd.f32 0.0, %v1434
        %1436 = vmatmul.f32.gmra.mxu0 %v333
        %v1437 = vpop.f32.mrf.mxu0
        %v1438 = vadd.f32 0.0, %v1437
        %1439 = vmatmul.f32.gmra.mxu0 %v336
        %v1440 = vpop.f32.mrf.mxu0
        %v1441 = vadd.f32 0.0, %v1440
        %1442 = vmatmul.f32.gmra.mxu0 %v339
        %v1443 = vpop.f32.mrf.mxu0
        %v1444 = vadd.f32 0.0, %v1443
        %1445 = vmatmul.f32.gmra.mxu0 %v342
        %v1446 = vpop.f32.mrf.mxu0
        %v1447 = vadd.f32 0.0, %v1446
        %1448 = vmatmul.f32.gmra.mxu0 %v345
        %v1449 = vpop.f32.mrf.mxu0
        %v1450 = vadd.f32 0.0, %v1449
        %1451 = vmatmul.f32.gmra.mxu0 %v348
        %v1452 = vpop.f32.mrf.mxu0
        %v1453 = vadd.f32 0.0, %v1452
        %1454 = vmatmul.f32.gmra.mxu0 %v351
        %v1455 = vpop.f32.mrf.mxu0
        %v1456 = vadd.f32 0.0, %v1455
        %1457 = vmatmul.f32.gmra.mxu0 %v354
        %v1458 = vpop.f32.mrf.mxu0
        %v1459 = vadd.f32 0.0, %v1458
        %1460 = vmatmul.f32.gmra.mxu0 %v357
        %v1461 = vpop.f32.mrf.mxu0
        %v1462 = vadd.f32 0.0, %v1461
        %1463 = vdwg.mxu0
        %vm1496 = vcmask 1043456
        %v1497 = vrot.slane %v1352, 4
        %v1498 = vrot.slane %v1355, 4
        %v1499 = vsel %vm1496, %v1497, %v1498
        %v1500 = vrot.slane %v1417, 4
        %v1501 = vrot.slane %v1420, 4
        %v1502 = vsel %vm1496, %v1500, %v1501
        %v1503 = vrot.slane %v1358, 4
        %v1504 = vrot.slane %v1361, 4
        %v1505 = vsel %vm1496, %v1503, %v1504
        %v1506 = vrot.slane %v1423, 4
        %v1507 = vrot.slane %v1426, 4
        %v1508 = vsel %vm1496, %v1506, %v1507
        %v1509 = vrot.slane %v1364, 4
        %v1510 = vrot.slane %v1367, 4
        %v1511 = vsel %vm1496, %v1509, %v1510
        %v1512 = vrot.slane %v1429, 4
        %v1513 = vrot.slane %v1432, 4
        %v1514 = vsel %vm1496, %v1512, %v1513
        %v1515 = vrot.slane %v1370, 4
        %v1516 = vrot.slane %v1373, 4
        %v1517 = vsel %vm1496, %v1515, %v1516
        %v1518 = vrot.slane %v1435, 4
        %v1519 = vrot.slane %v1438, 4
        %v1520 = vsel %vm1496, %v1518, %v1519
        %v1521 = vrot.slane %v1376, 4
        %v1522 = vrot.slane %v1379, 4
        %v1523 = vsel %vm1496, %v1521, %v1522
        %v1524 = vrot.slane %v1441, 4
        %v1525 = vrot.slane %v1444, 4
        %v1526 = vsel %vm1496, %v1524, %v1525
        %v1527 = vrot.slane %v1382, 4
        %v1528 = vrot.slane %v1385, 4
        %v1529 = vsel %vm1496, %v1527, %v1528
        %v1530 = vrot.slane %v1447, 4
        %v1531 = vrot.slane %v1450, 4
        %v1532 = vsel %vm1496, %v1530, %v1531
        %v1533 = vrot.slane %v1388, 4
        %v1534 = vrot.slane %v1391, 4
        %v1535 = vsel %vm1496, %v1533, %v1534
        %v1536 = vrot.slane %v1453, 4
        %v1537 = vrot.slane %v1456, 4
        %v1538 = vsel %vm1496, %v1536, %v1537
        %v1539 = vrot.slane %v1394, 4
        %v1540 = vrot.slane %v1397, 4
        %v1541 = vsel %vm1496, %v1539, %v1540
        %v1542 = vrot.slane %v1459, 4
        %v1543 = vrot.slane %v1462, 4
        %v1544 = vsel %vm1496, %v1542, %v1543
        %v1577 = vadd.f32 %v1297, %v1499
        %v1578 = vadd.f32 %v1298, %v1502
        %v1579 = vadd.f32 %v1299, %v1498
        %v1580 = vadd.f32 %v1300, %v1501
        %v1581 = vadd.f32 %v1301, %v1505
        %v1582 = vadd.f32 %v1302, %v1508
        %v1583 = vadd.f32 %v1303, %v1504
        %v1584 = vadd.f32 %v1304, %v1507
        %v1585 = vadd.f32 %v1305, %v1511
        %v1586 = vadd.f32 %v1306, %v1514
        %v1587 = vadd.f32 %v1307, %v1510
        %v1588 = vadd.f32 %v1308, %v1513
        %v1589 = vadd.f32 %v1309, %v1517
        %v1590 = vadd.f32 %v1310, %v1520
        %v1591 = vadd.f32 %v1311, %v1516
        %v1592 = vadd.f32 %v1312, %v1519
        %v1593 = vadd.f32 %v1313, %v1523
        %v1594 = vadd.f32 %v1314, %v1526
        %v1595 = vadd.f32 %v1315, %v1522
        %v1596 = vadd.f32 %v1316, %v1525
        %v1597 = vadd.f32 %v1317, %v1529
        %v1598 = vadd.f32 %v1318, %v1532
        %v1599 = vadd.f32 %v1319, %v1528
        %v1600 = vadd.f32 %v1320, %v1531
        %v1601 = vadd.f32 %v1321, %v1535
        %v1602 = vadd.f32 %v1322, %v1538
        %v1603 = vadd.f32 %v1323, %v1534
        %v1604 = vadd.f32 %v1324, %v1537
        %v1605 = vadd.f32 %v1325, %v1541
        %v1606 = vadd.f32 %v1326, %v1544
        %v1607 = vadd.f32 %v1327, %v1540
        %v1608 = vadd.f32 %v1328, %v1543
        %v1609 = vld [vmem:[#allocation6] sm:$0x3]
        %v1611 = vperm.slane %v1609, 0
        %v1612 = vperm.slane %v1609, 1
        %v1615 = vadd.f32 %v1577, %v1611
        %v1616 = vadd.f32 %v1578, %v1612
        %v1617 = vadd.f32 %v1579, %v1611
        %v1618 = vadd.f32 %v1580, %v1612
        %v1619 = vadd.f32 %v1581, %v1611
        %v1620 = vadd.f32 %v1582, %v1612
        %v1621 = vadd.f32 %v1583, %v1611
        %v1622 = vadd.f32 %v1584, %v1612
        %v1623 = vadd.f32 %v1585, %v1611
        %v1624 = vadd.f32 %v1586, %v1612
        %v1625 = vadd.f32 %v1587, %v1611
        %v1626 = vadd.f32 %v1588, %v1612
        %v1627 = vadd.f32 %v1589, %v1611
        %v1628 = vadd.f32 %v1590, %v1612
        %v1629 = vadd.f32 %v1591, %v1611
        %v1630 = vadd.f32 %v1592, %v1612
        %v1631 = vadd.f32 %v1593, %v1611
        %v1632 = vadd.f32 %v1594, %v1612
        %v1633 = vadd.f32 %v1595, %v1611
        %v1634 = vadd.f32 %v1596, %v1612
        %v1635 = vadd.f32 %v1597, %v1611
        %v1636 = vadd.f32 %v1598, %v1612
        %v1637 = vadd.f32 %v1599, %v1611
        %v1638 = vadd.f32 %v1600, %v1612
        %v1639 = vadd.f32 %v1601, %v1611
        %v1640 = vadd.f32 %v1602, %v1612
        %v1641 = vadd.f32 %v1603, %v1611
        %v1642 = vadd.f32 %v1604, %v1612
        %v1643 = vadd.f32 %v1605, %v1611
        %v1644 = vadd.f32 %v1606, %v1612
        %v1645 = vadd.f32 %v1607, %v1611
        %v1646 = vadd.f32 %v1608, %v1612
        %v1647 = vmax.f32 %v1615, 0.0
        %v1648 = vmax.f32 %v1616, 0.0
        %v1649 = vmax.f32 %v1617, 0.0
        %v1650 = vmax.f32 %v1618, 0.0
        %v1651 = vmax.f32 %v1619, 0.0
        %v1652 = vmax.f32 %v1620, 0.0
        %v1653 = vmax.f32 %v1621, 0.0
        %v1654 = vmax.f32 %v1622, 0.0
        %v1655 = vmax.f32 %v1623, 0.0
        %v1656 = vmax.f32 %v1624, 0.0
        %v1657 = vmax.f32 %v1625, 0.0
        %v1658 = vmax.f32 %v1626, 0.0
        %v1659 = vmax.f32 %v1627, 0.0
        %v1660 = vmax.f32 %v1628, 0.0
        %v1661 = vmax.f32 %v1629, 0.0
        %v1662 = vmax.f32 %v1630, 0.0
        %v1663 = vmax.f32 %v1631, 0.0
        %v1664 = vmax.f32 %v1632, 0.0
        %v1665 = vmax.f32 %v1633, 0.0
        %v1666 = vmax.f32 %v1634, 0.0
        %v1667 = vmax.f32 %v1635, 0.0
        %v1668 = vmax.f32 %v1636, 0.0
        %v1669 = vmax.f32 %v1637, 0.0
        %v1670 = vmax.f32 %v1638, 0.0
        %v1671 = vmax.f32 %v1639, 0.0
        %v1672 = vmax.f32 %v1640, 0.0
        %v1673 = vmax.f32 %v1641, 0.0
        %v1674 = vmax.f32 %v1642, 0.0
        %v1675 = vmax.f32 %v1643, 0.0
        %v1676 = vmax.f32 %v1644, 0.0
        %v1677 = vmax.f32 %v1645, 0.0
        %v1678 = vmax.f32 %v1646, 0.0
        %v1679 = vpack.c.bf16 %v1648, %v1647
        %v1680 = vpack.c.bf16 %v1650, %v1649
        %v1681 = vpack.c.bf16 %v1652, %v1651
        %v1682 = vpack.c.bf16 %v1654, %v1653
        %v1683 = vpack.c.bf16 %v1656, %v1655
        %v1684 = vpack.c.bf16 %v1658, %v1657
        %v1685 = vpack.c.bf16 %v1660, %v1659
        %v1686 = vpack.c.bf16 %v1662, %v1661
        %v1687 = vpack.c.bf16 %v1664, %v1663
        %v1688 = vpack.c.bf16 %v1666, %v1665
        %v1689 = vpack.c.bf16 %v1668, %v1667
        %v1690 = vpack.c.bf16 %v1670, %v1669
        %v1691 = vpack.c.bf16 %v1672, %v1671
        %v1692 = vpack.c.bf16 %v1674, %v1673
        %v1693 = vpack.c.bf16 %v1676, %v1675
        %v1694 = vpack.c.bf16 %v1678, %v1677
        %vm1695 = vcmask 916484
        %vm1696 = vmor %vm1695, %vm1496
        %1697 = vst.msk [vmem:[#allocation2] sm:$0xff] %vm1696, %v1679
        %vm1698 = vcmask 1041408
        %vm1699 = vcmask 914436
        %vm1700 = vmor %vm1699, %vm1698
        %1701 = vst.msk [vmem:[#allocation2 + $0x8] sm:$0x33] %vm1700, %v1680
        %1702 = vst.msk [vmem:[#allocation2 + $0x10] sm:$0xff] %vm1696, %v1681
        %1703 = vst.msk [vmem:[#allocation2 + $0x18] sm:$0x33] %vm1700, %v1682
        %1704 = vst.msk [vmem:[#allocation2 + $0x20] sm:$0xff] %vm1696, %v1683
        %1705 = vst.msk [vmem:[#allocation2 + $0x28] sm:$0x33] %vm1700, %v1684
        %1706 = vst.msk [vmem:[#allocation2 + $0x30] sm:$0xff] %vm1696, %v1685
        %1707 = vst.msk [vmem:[#allocation2 + $0x38] sm:$0x33] %vm1700, %v1686
        %1708 = vst.msk [vmem:[#allocation2 + $0x40] sm:$0xff] %vm1696, %v1687
        %1709 = vst.msk [vmem:[#allocation2 + $0x48] sm:$0x33] %vm1700, %v1688
        %1710 = vst.msk [vmem:[#allocation2 + $0x50] sm:$0xff] %vm1696, %v1689
        %1711 = vst.msk [vmem:[#allocation2 + $0x58] sm:$0x33] %vm1700, %v1690
        %1712 = vst.msk [vmem:[#allocation2 + $0x60] sm:$0xff] %vm1696, %v1691
        %1713 = vst.msk [vmem:[#allocation2 + $0x68] sm:$0x33] %vm1700, %v1692
        %1714 = vst.msk [vmem:[#allocation2 + $0x70] sm:$0xff] %vm1696, %v1693
        %1715 = vst.msk [vmem:[#allocation2 + $0x78] sm:$0x33] %vm1700, %v1694
        %vm1716 = vcmask 1043458
        %vm1717 = vcmask 916486
        %vm1718 = vmor %vm1717, %vm1716
        %1719 = vst.msk [vmem:[#allocation2 + $0x8] sm:$0xcc] %vm1718, 0
        %1720 = vst.msk [vmem:[#allocation2 + $0x18] sm:$0xcc] %vm1718, 0
        %1721 = vst.msk [vmem:[#allocation2 + $0x28] sm:$0xcc] %vm1718, 0
        %1722 = vst.msk [vmem:[#allocation2 + $0x38] sm:$0xcc] %vm1718, 0
        %1723 = vst.msk [vmem:[#allocation2 + $0x48] sm:$0xcc] %vm1718, 0
        %1724 = vst.msk [vmem:[#allocation2 + $0x58] sm:$0xcc] %vm1718, 0
        %1725 = vst.msk [vmem:[#allocation2 + $0x68] sm:$0xcc] %vm1718, 0
        %1726 = vst.msk [vmem:[#allocation2 + $0x78] sm:$0xcc] %vm1718, 0
        %v1727 = vld [vmem:[#allocation2] sm:$0xff]
        %v1728 = vld [vmem:[#allocation2 + $0x8] sm:$0xff]
        %v1729 = vld [vmem:[#allocation2 + $0x10] sm:$0xff]
        %v1730 = vld [vmem:[#allocation2 + $0x18] sm:$0xff]
        %v1731 = vld [vmem:[#allocation2 + $0x20] sm:$0xff]
        %v1732 = vld [vmem:[#allocation2 + $0x28] sm:$0xff]
        %v1733 = vld [vmem:[#allocation2 + $0x30] sm:$0xff]
        %v1734 = vld [vmem:[#allocation2 + $0x38] sm:$0xff]
        %v1735 = vld [vmem:[#allocation2 + $0x40] sm:$0xff]
        %v1736 = vld [vmem:[#allocation2 + $0x48] sm:$0xff]
        %v1737 = vld [vmem:[#allocation2 + $0x50] sm:$0xff]
        %v1738 = vld [vmem:[#allocation2 + $0x58] sm:$0xff]
        %v1739 = vld [vmem:[#allocation2 + $0x60] sm:$0xff]
        %v1740 = vld [vmem:[#allocation2 + $0x68] sm:$0xff]
        %v1741 = vld [vmem:[#allocation2 + $0x70] sm:$0xff]
        %v1742 = vld [vmem:[#allocation2 + $0x78] sm:$0xff]
        %v1743 = vld [vmem:[#allocation8] sm:$0xff]
        %v1744 = vld [vmem:[#allocation8 + $0x8] sm:$0xff]
        %v1745 = vld [vmem:[#allocation8 + $0x10] sm:$0xff]
        %v1746 = vld [vmem:[#allocation8 + $0x18] sm:$0xff]
        %v1747 = vld [vmem:[#allocation8 + $0x20] sm:$0xff]
        %v1748 = vld [vmem:[#allocation8 + $0x28] sm:$0xff]
        %v1749 = vld [vmem:[#allocation8 + $0x30] sm:$0xff]
        %v1750 = vld [vmem:[#allocation8 + $0x38] sm:$0xff]
        %v1751 = vld [vmem:[#allocation8 + $0x40] sm:$0xff]
        %v1752 = vld [vmem:[#allocation8 + $0x48] sm:$0xff]
        %v1753 = vld [vmem:[#allocation8 + $0x50] sm:$0xff]
        %v1754 = vld [vmem:[#allocation8 + $0x58] sm:$0xff]
        %v1755 = vld [vmem:[#allocation8 + $0x60] sm:$0xff]
        %v1756 = vld [vmem:[#allocation8 + $0x68] sm:$0xff]
        %v1757 = vld [vmem:[#allocation8 + $0x70] sm:$0xff]
        %v1758 = vld [vmem:[#allocation8 + $0x78] sm:$0xff]
        %v1759 = vld [vmem:[#allocation8 + $0x80] sm:$0xff]
        %v1760 = vld [vmem:[#allocation8 + $0x88] sm:$0xff]
        %v1761 = vld [vmem:[#allocation8 + $0x90] sm:$0xff]
        %v1762 = vld [vmem:[#allocation8 + $0x98] sm:$0xff]
        %v1763 = vld [vmem:[#allocation8 + $0xa0] sm:$0xff]
        %v1764 = vld [vmem:[#allocation8 + $0xa8] sm:$0xff]
        %v1765 = vld [vmem:[#allocation8 + $0xb0] sm:$0xff]
        %v1766 = vld [vmem:[#allocation8 + $0xb8] sm:$0xff]
        %v1767 = vld [vmem:[#allocation8 + $0xc0] sm:$0xff]
        %v1768 = vld [vmem:[#allocation8 + $0xc8] sm:$0xff]
        %v1769 = vld [vmem:[#allocation8 + $0xd0] sm:$0xff]
        %v1770 = vld [vmem:[#allocation8 + $0xd8] sm:$0xff]
        %v1771 = vld [vmem:[#allocation8 + $0xe0] sm:$0xff]
        %v1772 = vld [vmem:[#allocation8 + $0xe8] sm:$0xff]
        %v1773 = vld [vmem:[#allocation8 + $0xf0] sm:$0xff]
        %v1774 = vld [vmem:[#allocation8 + $0xf8] sm:$0xff]
        %v1775 = vld [vmem:[#allocation8 + $0x100] sm:$0xff]
        %v1776 = vld [vmem:[#allocation8 + $0x108] sm:$0xff]
        %v1777 = vld [vmem:[#allocation8 + $0x110] sm:$0xff]
        %v1778 = vld [vmem:[#allocation8 + $0x118] sm:$0xff]
        %v1779 = vld [vmem:[#allocation8 + $0x120] sm:$0xff]
        %v1780 = vld [vmem:[#allocation8 + $0x128] sm:$0xff]
        %v1781 = vld [vmem:[#allocation8 + $0x130] sm:$0xff]
        %v1782 = vld [vmem:[#allocation8 + $0x138] sm:$0xff]
        %v1783 = vld [vmem:[#allocation8 + $0x140] sm:$0xff]
        %v1784 = vld [vmem:[#allocation8 + $0x148] sm:$0xff]
        %v1785 = vld [vmem:[#allocation8 + $0x150] sm:$0xff]
        %v1786 = vld [vmem:[#allocation8 + $0x158] sm:$0xff]
        %v1787 = vld [vmem:[#allocation8 + $0x160] sm:$0xff]
        %v1788 = vld [vmem:[#allocation8 + $0x168] sm:$0xff]
        %v1789 = vld [vmem:[#allocation8 + $0x170] sm:$0xff]
        %v1790 = vld [vmem:[#allocation8 + $0x178] sm:$0xff]
        %v1791 = vld [vmem:[#allocation8 + $0x180] sm:$0xff]
        %v1792 = vld [vmem:[#allocation8 + $0x188] sm:$0xff]
        %v1793 = vld [vmem:[#allocation8 + $0x190] sm:$0xff]
        %v1794 = vld [vmem:[#allocation8 + $0x198] sm:$0xff]
        %v1795 = vld [vmem:[#allocation8 + $0x1a0] sm:$0xff]
        %v1796 = vld [vmem:[#allocation8 + $0x1a8] sm:$0xff]
        %v1797 = vld [vmem:[#allocation8 + $0x1b0] sm:$0xff]
        %v1798 = vld [vmem:[#allocation8 + $0x1b8] sm:$0xff]
        %v1799 = vld [vmem:[#allocation8 + $0x1c0] sm:$0xff]
        %v1800 = vld [vmem:[#allocation8 + $0x1c8] sm:$0xff]
        %v1801 = vld [vmem:[#allocation8 + $0x1d0] sm:$0xff]
        %v1802 = vld [vmem:[#allocation8 + $0x1d8] sm:$0xff]
        %v1819 = vunpack.c.l.b16 %v1727
        %v1820 = vunpack.c.h.b16 %v1727
        %v1821 = vunpack.c.l.b16 %v1728
        %v1822 = vunpack.c.h.b16 %v1728
        %v1823 = vunpack.c.l.b16 %v1729
        %v1824 = vunpack.c.h.b16 %v1729
        %v1825 = vunpack.c.l.b16 %v1730
        %v1826 = vunpack.c.h.b16 %v1730
        %v1827 = vunpack.c.l.b16 %v1731
        %v1828 = vunpack.c.h.b16 %v1731
        %v1829 = vunpack.c.l.b16 %v1732
        %v1830 = vunpack.c.h.b16 %v1732
        %v1831 = vunpack.c.l.b16 %v1733
        %v1832 = vunpack.c.h.b16 %v1733
        %v1833 = vunpack.c.l.b16 %v1734
        %v1834 = vunpack.c.h.b16 %v1734
        %v1835 = vunpack.c.l.b16 %v1735
        %v1836 = vunpack.c.h.b16 %v1735
        %v1837 = vunpack.c.l.b16 %v1736
        %v1838 = vunpack.c.h.b16 %v1736
        %v1839 = vunpack.c.l.b16 %v1737
        %v1840 = vunpack.c.h.b16 %v1737
        %v1841 = vunpack.c.l.b16 %v1738
        %v1842 = vunpack.c.h.b16 %v1738
        %v1843 = vunpack.c.l.b16 %v1739
        %v1844 = vunpack.c.h.b16 %v1739
        %v1845 = vunpack.c.l.b16 %v1740
        %v1846 = vunpack.c.h.b16 %v1740
        %v1847 = vunpack.c.l.b16 %v1741
        %v1848 = vunpack.c.h.b16 %v1741
        %v1849 = vunpack.c.l.b16 %v1742
        %v1850 = vunpack.c.h.b16 %v1742
        %v1851 = vpack.c.b16 %v1821, %v1819
        %v1852 = vpack.c.b16 %v1822, %v1820
        %v1853 = vpack.c.b16 %v1825, %v1823
        %v1854 = vpack.c.b16 %v1826, %v1824
        %v1855 = vpack.c.b16 %v1829, %v1827
        %v1856 = vpack.c.b16 %v1830, %v1828
        %v1857 = vpack.c.b16 %v1833, %v1831
        %v1858 = vpack.c.b16 %v1834, %v1832
        %v1859 = vpack.c.b16 %v1837, %v1835
        %v1860 = vpack.c.b16 %v1838, %v1836
        %v1861 = vpack.c.b16 %v1841, %v1839
        %v1862 = vpack.c.b16 %v1842, %v1840
        %v1863 = vpack.c.b16 %v1845, %v1843
        %v1864 = vpack.c.b16 %v1846, %v1844
        %v1865 = vpack.c.b16 %v1849, %v1847
        %v1866 = vpack.c.b16 %v1850, %v1848
        %v1935 = vunpack.c.l.b16 %v1743
        %v1936 = vunpack.c.h.b16 %v1743
        %v1937 = vunpack.c.l.b16 %v1744
        %v1938 = vunpack.c.h.b16 %v1744
        %v1939 = vunpack.c.l.b16 %v1745
        %v1940 = vunpack.c.h.b16 %v1745
        %v1941 = vunpack.c.l.b16 %v1746
        %v1942 = vunpack.c.h.b16 %v1746
        %v1943 = vunpack.c.l.b16 %v1747
        %v1944 = vunpack.c.h.b16 %v1747
        %v1945 = vunpack.c.l.b16 %v1748
        %v1946 = vunpack.c.h.b16 %v1748
        %v1947 = vunpack.c.l.b16 %v1749
        %v1948 = vunpack.c.h.b16 %v1749
        %v1949 = vunpack.c.l.b16 %v1750
        %v1950 = vunpack.c.h.b16 %v1750
        %v1951 = vunpack.c.l.b16 %v1751
        %v1952 = vunpack.c.h.b16 %v1751
        %v1953 = vunpack.c.l.b16 %v1752
        %v1954 = vunpack.c.h.b16 %v1752
        %v1955 = vunpack.c.l.b16 %v1753
        %v1956 = vunpack.c.h.b16 %v1753
        %v1957 = vunpack.c.l.b16 %v1754
        %v1958 = vunpack.c.h.b16 %v1754
        %v1959 = vunpack.c.l.b16 %v1755
        %v1960 = vunpack.c.h.b16 %v1755
        %v1961 = vunpack.c.l.b16 %v1756
        %v1962 = vunpack.c.h.b16 %v1756
        %v1963 = vunpack.c.l.b16 %v1757
        %v1964 = vunpack.c.h.b16 %v1757
        %v1965 = vunpack.c.l.b16 %v1758
        %v1966 = vunpack.c.h.b16 %v1758
        %v1967 = vunpack.c.l.b16 %v1759
        %v1968 = vunpack.c.h.b16 %v1759
        %v1969 = vunpack.c.l.b16 %v1760
        %v1970 = vunpack.c.h.b16 %v1760
        %v1971 = vunpack.c.l.b16 %v1761
        %v1972 = vunpack.c.h.b16 %v1761
        %v1973 = vunpack.c.l.b16 %v1762
        %v1974 = vunpack.c.h.b16 %v1762
        %v1975 = vunpack.c.l.b16 %v1763
        %v1976 = vunpack.c.h.b16 %v1763
        %v1977 = vunpack.c.l.b16 %v1764
        %v1978 = vunpack.c.h.b16 %v1764
        %v1979 = vunpack.c.l.b16 %v1765
        %v1980 = vunpack.c.h.b16 %v1765
        %v1981 = vunpack.c.l.b16 %v1766
        %v1982 = vunpack.c.h.b16 %v1766
        %v1983 = vunpack.c.l.b16 %v1767
        %v1984 = vunpack.c.h.b16 %v1767
        %v1985 = vunpack.c.l.b16 %v1768
        %v1986 = vunpack.c.h.b16 %v1768
        %v1987 = vunpack.c.l.b16 %v1769
        %v1988 = vunpack.c.h.b16 %v1769
        %v1989 = vunpack.c.l.b16 %v1770
        %v1990 = vunpack.c.h.b16 %v1770
        %v1991 = vunpack.c.l.b16 %v1771
        %v1992 = vunpack.c.h.b16 %v1771
        %v1993 = vunpack.c.l.b16 %v1772
        %v1994 = vunpack.c.h.b16 %v1772
        %v1995 = vunpack.c.l.b16 %v1773
        %v1996 = vunpack.c.h.b16 %v1773
        %v1997 = vunpack.c.l.b16 %v1774
        %v1998 = vunpack.c.h.b16 %v1774
        %v1999 = vunpack.c.l.b16 %v1775
        %v2000 = vunpack.c.h.b16 %v1775
        %v2001 = vunpack.c.l.b16 %v1776
        %v2002 = vunpack.c.h.b16 %v1776
        %v2003 = vunpack.c.l.b16 %v1777
        %v2004 = vunpack.c.h.b16 %v1777
        %v2005 = vunpack.c.l.b16 %v1778
        %v2006 = vunpack.c.h.b16 %v1778
        %v2007 = vunpack.c.l.b16 %v1779
        %v2008 = vunpack.c.h.b16 %v1779
        %v2009 = vunpack.c.l.b16 %v1780
        %v2010 = vunpack.c.h.b16 %v1780
        %v2011 = vunpack.c.l.b16 %v1781
        %v2012 = vunpack.c.h.b16 %v1781
        %v2013 = vunpack.c.l.b16 %v1782
        %v2014 = vunpack.c.h.b16 %v1782
        %v2015 = vunpack.c.l.b16 %v1783
        %v2016 = vunpack.c.h.b16 %v1783
        %v2017 = vunpack.c.l.b16 %v1784
        %v2018 = vunpack.c.h.b16 %v1784
        %v2019 = vunpack.c.l.b16 %v1785
        %v2020 = vunpack.c.h.b16 %v1785
        %v2021 = vunpack.c.l.b16 %v1786
        %v2022 = vunpack.c.h.b16 %v1786
        %v2023 = vunpack.c.l.b16 %v1787
        %v2024 = vunpack.c.h.b16 %v1787
        %v2025 = vunpack.c.l.b16 %v1788
        %v2026 = vunpack.c.h.b16 %v1788
        %v2027 = vunpack.c.l.b16 %v1789
        %v2028 = vunpack.c.h.b16 %v1789
        %v2029 = vunpack.c.l.b16 %v1790
        %v2030 = vunpack.c.h.b16 %v1790
        %v2031 = vunpack.c.l.b16 %v1791
        %v2032 = vunpack.c.h.b16 %v1791
        %v2033 = vunpack.c.l.b16 %v1792
        %v2034 = vunpack.c.h.b16 %v1792
        %v2035 = vunpack.c.l.b16 %v1793
        %v2036 = vunpack.c.h.b16 %v1793
        %v2037 = vunpack.c.l.b16 %v1794
        %v2038 = vunpack.c.h.b16 %v1794
        %v2039 = vunpack.c.l.b16 %v1795
        %v2040 = vunpack.c.h.b16 %v1795
        %v2041 = vunpack.c.l.b16 %v1796
        %v2042 = vunpack.c.h.b16 %v1796
        %v2043 = vunpack.c.l.b16 %v1797
        %v2044 = vunpack.c.h.b16 %v1797
        %v2045 = vunpack.c.l.b16 %v1798
        %v2046 = vunpack.c.h.b16 %v1798
        %v2047 = vunpack.c.l.b16 %v1799
        %v2048 = vunpack.c.h.b16 %v1799
        %v2049 = vunpack.c.l.b16 %v1800
        %v2050 = vunpack.c.h.b16 %v1800
        %v2051 = vunpack.c.l.b16 %v1801
        %v2052 = vunpack.c.h.b16 %v1801
        %v2053 = vunpack.c.l.b16 %v1802
        %v2054 = vunpack.c.h.b16 %v1802
        %v2055 = vpack.c.b16 %v1939, %v1935
        %v2056 = vpack.c.b16 %v1940, %v1936
        %v2057 = vpack.c.b16 %v1941, %v1937
        %v2058 = vpack.c.b16 %v1942, %v1938
        %v2059 = vpack.c.b16 %v1947, %v1943
        %v2060 = vpack.c.b16 %v1948, %v1944
        %v2061 = vpack.c.b16 %v1949, %v1945
        %v2062 = vpack.c.b16 %v1950, %v1946
        %v2063 = vpack.c.b16 %v1955, %v1951
        %v2064 = vpack.c.b16 %v1956, %v1952
        %v2065 = vpack.c.b16 %v1957, %v1953
        %v2066 = vpack.c.b16 %v1958, %v1954
        %v2067 = vpack.c.b16 %v1963, %v1959
        %v2068 = vpack.c.b16 %v1964, %v1960
        %v2069 = vpack.c.b16 %v1965, %v1961
        %v2070 = vpack.c.b16 %v1966, %v1962
        %v2071 = vpack.c.b16 %v1971, %v1967
        %v2072 = vpack.c.b16 %v1972, %v1968
        %v2073 = vpack.c.b16 %v1973, %v1969
        %v2074 = vpack.c.b16 %v1974, %v1970
        %v2075 = vpack.c.b16 %v1979, %v1975
        %v2076 = vpack.c.b16 %v1980, %v1976
        %v2077 = vpack.c.b16 %v1981, %v1977
        %v2078 = vpack.c.b16 %v1982, %v1978
        %v2079 = vpack.c.b16 %v1987, %v1983
        %v2080 = vpack.c.b16 %v1988, %v1984
        %v2081 = vpack.c.b16 %v1989, %v1985
        %v2082 = vpack.c.b16 %v1990, %v1986
        %v2083 = vpack.c.b16 %v1995, %v1991
        %v2084 = vpack.c.b16 %v1996, %v1992
        %v2085 = vpack.c.b16 %v1997, %v1993
        %v2086 = vpack.c.b16 %v1998, %v1994
        %v2087 = vpack.c.b16 %v2003, %v1999
        %v2088 = vpack.c.b16 %v2004, %v2000
        %v2089 = vpack.c.b16 %v2005, %v2001
        %v2090 = vpack.c.b16 %v2006, %v2002
        %v2091 = vpack.c.b16 %v2011, %v2007
        %v2092 = vpack.c.b16 %v2012, %v2008
        %v2093 = vpack.c.b16 %v2013, %v2009
        %v2094 = vpack.c.b16 %v2014, %v2010
        %v2095 = vpack.c.b16 %v2019, %v2015
        %v2096 = vpack.c.b16 %v2020, %v2016
        %v2097 = vpack.c.b16 %v2021, %v2017
        %v2098 = vpack.c.b16 %v2022, %v2018
        %v2099 = vpack.c.b16 %v2027, %v2023
        %v2100 = vpack.c.b16 %v2028, %v2024
        %v2101 = vpack.c.b16 %v2029, %v2025
        %v2102 = vpack.c.b16 %v2030, %v2026
        %v2103 = vpack.c.b16 %v2035, %v2031
        %v2104 = vpack.c.b16 %v2036, %v2032
        %v2105 = vpack.c.b16 %v2037, %v2033
        %v2106 = vpack.c.b16 %v2038, %v2034
        %v2107 = vpack.c.b16 %v2043, %v2039
        %v2108 = vpack.c.b16 %v2044, %v2040
        %v2109 = vpack.c.b16 %v2045, %v2041
        %v2110 = vpack.c.b16 %v2046, %v2042
        %v2111 = vpack.c.b16 %v2051, %v2047
        %v2112 = vpack.c.b16 %v2052, %v2048
        %v2113 = vpack.c.b16 %v2053, %v2049
        %v2114 = vpack.c.b16 %v2054, %v2050
        %vm2175 = vcmask 916480
        %v2177 = vsel %vm2175, %v1852, 0
        %v2180 = vsel %vm2175, %v1854, 0
        %v2183 = vsel %vm2175, %v1856, 0
        %v2186 = vsel %vm2175, %v1858, 0
        %v2189 = vsel %vm2175, %v1860, 0
        %v2192 = vsel %vm2175, %v1862, 0
        %v2195 = vsel %vm2175, %v1864, 0
        %v2198 = vsel %vm2175, %v1866, 0
        %2200 = vmatpush.bf16.msra.mxu0 %v2083
        %2201 = vmatpush.bf16.msra.mxu0 %v2079
        %2202 = vmatpush.bf16.msra.mxu0 %v2075
        %2203 = vmatpush.bf16.msra.mxu0 %v2071
        %2204 = vmatpush.bf16.msra.mxu0 %v2067
        %2205 = vmatpush.bf16.msra.mxu0 %v2063
        %2206 = vmatpush.bf16.msra.mxu0 %v2059
        %2207 = vmatpush.bf16.msra.mxu0 %v2055
        %2208 = vmatmul.bf16.gmra.mxu0 %v1851
        %v2209 = vpop.f32.mrf.mxu0
        %v2210 = vadd.f32 0.0, %v2209
        %v2211 = vpop.f32.mrf.mxu0
        %2212 = vmatmul.bf16.gmra.mxu0 %v1853
        %v2213 = vpop.f32.mrf.mxu0
        %v2214 = vadd.f32 0.0, %v2213
        %v2215 = vpop.f32.mrf.mxu0
        %2216 = vmatmul.bf16.gmra.mxu0 %v1855
        %v2217 = vpop.f32.mrf.mxu0
        %v2218 = vadd.f32 0.0, %v2217
        %v2219 = vpop.f32.mrf.mxu0
        %2220 = vmatmul.bf16.gmra.mxu0 %v1857
        %v2221 = vpop.f32.mrf.mxu0
        %v2222 = vadd.f32 0.0, %v2221
        %v2223 = vpop.f32.mrf.mxu0
        %2224 = vmatmul.bf16.gmra.mxu0 %v1859
        %v2225 = vpop.f32.mrf.mxu0
        %v2226 = vadd.f32 0.0, %v2225
        %v2227 = vpop.f32.mrf.mxu0
        %2228 = vmatmul.bf16.gmra.mxu0 %v1861
        %v2229 = vpop.f32.mrf.mxu0
        %v2230 = vadd.f32 0.0, %v2229
        %v2231 = vpop.f32.mrf.mxu0
        %2232 = vmatmul.bf16.gmra.mxu0 %v1863
        %v2233 = vpop.f32.mrf.mxu0
        %v2234 = vadd.f32 0.0, %v2233
        %v2235 = vpop.f32.mrf.mxu0
        %2236 = vmatmul.bf16.gmra.mxu0 %v1865
        %v2237 = vpop.f32.mrf.mxu0
        %v2238 = vadd.f32 0.0, %v2237
        %v2239 = vpop.f32.mrf.mxu0
        %2240 = vdwg.mxu0
        %2241 = vmatpush.bf16.msra.mxu0 0
        %2242 = vmatpush.bf16.msra.mxu0 %v2111
        %2243 = vmatpush.bf16.msra.mxu0 %v2107
        %2244 = vmatpush.bf16.msra.mxu0 %v2103
        %2245 = vmatpush.bf16.msra.mxu0 %v2099
        %2246 = vmatpush.bf16.msra.mxu0 %v2095
        %2247 = vmatpush.bf16.msra.mxu0 %v2091
        %2248 = vmatpush.bf16.msra.mxu0 %v2087
        %2249 = vmatmul.bf16.gmra.mxu0 %v2177
        %v2250 = vpop.f32.mrf.mxu0
        %v2251 = vadd.f32 %v2210, %v2250
        %v2252 = vpop.f32.mrf.mxu0
        %2253 = vmatmul.bf16.gmra.mxu0 %v2180
        %v2254 = vpop.f32.mrf.mxu0
        %v2255 = vadd.f32 %v2214, %v2254
        %v2256 = vpop.f32.mrf.mxu0
        %2257 = vmatmul.bf16.gmra.mxu0 %v2183
        %v2258 = vpop.f32.mrf.mxu0
        %v2259 = vadd.f32 %v2218, %v2258
        %v2260 = vpop.f32.mrf.mxu0
        %2261 = vmatmul.bf16.gmra.mxu0 %v2186
        %v2262 = vpop.f32.mrf.mxu0
        %v2263 = vadd.f32 %v2222, %v2262
        %v2264 = vpop.f32.mrf.mxu0
        %2265 = vmatmul.bf16.gmra.mxu0 %v2189
        %v2266 = vpop.f32.mrf.mxu0
        %v2267 = vadd.f32 %v2226, %v2266
        %v2268 = vpop.f32.mrf.mxu0
        %2269 = vmatmul.bf16.gmra.mxu0 %v2192
        %v2270 = vpop.f32.mrf.mxu0
        %v2271 = vadd.f32 %v2230, %v2270
        %v2272 = vpop.f32.mrf.mxu0
        %2273 = vmatmul.bf16.gmra.mxu0 %v2195
        %v2274 = vpop.f32.mrf.mxu0
        %v2275 = vadd.f32 %v2234, %v2274
        %v2276 = vpop.f32.mrf.mxu0
        %2277 = vmatmul.bf16.gmra.mxu0 %v2198
        %v2278 = vpop.f32.mrf.mxu0
        %v2279 = vadd.f32 %v2238, %v2278
        %v2280 = vpop.f32.mrf.mxu0
        %2281 = vdwg.mxu0
        %2282 = vmatpush.bf16.msra.mxu0 %v2084
        %2283 = vmatpush.bf16.msra.mxu0 %v2080
        %2284 = vmatpush.bf16.msra.mxu0 %v2076
        %2285 = vmatpush.bf16.msra.mxu0 %v2072
        %2286 = vmatpush.bf16.msra.mxu0 %v2068
        %2287 = vmatpush.bf16.msra.mxu0 %v2064
        %2288 = vmatpush.bf16.msra.mxu0 %v2060
        %2289 = vmatpush.bf16.msra.mxu0 %v2056
        %2290 = vmatmul.bf16.gmra.mxu0 %v1851
        %v2291 = vpop.f32.mrf.mxu0
        %v2292 = vadd.f32 0.0, %v2291
        %v2293 = vpop.f32.mrf.mxu0
        %2294 = vmatmul.bf16.gmra.mxu0 %v1853
        %v2295 = vpop.f32.mrf.mxu0
        %v2296 = vadd.f32 0.0, %v2295
        %v2297 = vpop.f32.mrf.mxu0
        %2298 = vmatmul.bf16.gmra.mxu0 %v1855
        %v2299 = vpop.f32.mrf.mxu0
        %v2300 = vadd.f32 0.0, %v2299
        %v2301 = vpop.f32.mrf.mxu0
        %2302 = vmatmul.bf16.gmra.mxu0 %v1857
        %v2303 = vpop.f32.mrf.mxu0
        %v2304 = vadd.f32 0.0, %v2303
        %v2305 = vpop.f32.mrf.mxu0
        %2306 = vmatmul.bf16.gmra.mxu0 %v1859
        %v2307 = vpop.f32.mrf.mxu0
        %v2308 = vadd.f32 0.0, %v2307
        %v2309 = vpop.f32.mrf.mxu0
        %2310 = vmatmul.bf16.gmra.mxu0 %v1861
        %v2311 = vpop.f32.mrf.mxu0
        %v2312 = vadd.f32 0.0, %v2311
        %v2313 = vpop.f32.mrf.mxu0
        %2314 = vmatmul.bf16.gmra.mxu0 %v1863
        %v2315 = vpop.f32.mrf.mxu0
        %v2316 = vadd.f32 0.0, %v2315
        %v2317 = vpop.f32.mrf.mxu0
        %2318 = vmatmul.bf16.gmra.mxu0 %v1865
        %v2319 = vpop.f32.mrf.mxu0
        %v2320 = vadd.f32 0.0, %v2319
        %v2321 = vpop.f32.mrf.mxu0
        %2322 = vdwg.mxu0
        %2323 = vmatpush.bf16.msra.mxu0 0
        %2324 = vmatpush.bf16.msra.mxu0 %v2112
        %2325 = vmatpush.bf16.msra.mxu0 %v2108
        %2326 = vmatpush.bf16.msra.mxu0 %v2104
        %2327 = vmatpush.bf16.msra.mxu0 %v2100
        %2328 = vmatpush.bf16.msra.mxu0 %v2096
        %2329 = vmatpush.bf16.msra.mxu0 %v2092
        %2330 = vmatpush.bf16.msra.mxu0 %v2088
        %2331 = vmatmul.bf16.gmra.mxu0 %v2177
        %v2332 = vpop.f32.mrf.mxu0
        %v2333 = vadd.f32 %v2292, %v2332
        %v2334 = vpop.f32.mrf.mxu0
        %2335 = vmatmul.bf16.gmra.mxu0 %v2180
        %v2336 = vpop.f32.mrf.mxu0
        %v2337 = vadd.f32 %v2296, %v2336
        %v2338 = vpop.f32.mrf.mxu0
        %2339 = vmatmul.bf16.gmra.mxu0 %v2183
        %v2340 = vpop.f32.mrf.mxu0
        %v2341 = vadd.f32 %v2300, %v2340
        %v2342 = vpop.f32.mrf.mxu0
        %2343 = vmatmul.bf16.gmra.mxu0 %v2186
        %v2344 = vpop.f32.mrf.mxu0
        %v2345 = vadd.f32 %v2304, %v2344
        %v2346 = vpop.f32.mrf.mxu0
        %2347 = vmatmul.bf16.gmra.mxu0 %v2189
        %v2348 = vpop.f32.mrf.mxu0
        %v2349 = vadd.f32 %v2308, %v2348
        %v2350 = vpop.f32.mrf.mxu0
        %2351 = vmatmul.bf16.gmra.mxu0 %v2192
        %v2352 = vpop.f32.mrf.mxu0
        %v2353 = vadd.f32 %v2312, %v2352
        %v2354 = vpop.f32.mrf.mxu0
        %2355 = vmatmul.bf16.gmra.mxu0 %v2195
        %v2356 = vpop.f32.mrf.mxu0
        %v2357 = vadd.f32 %v2316, %v2356
        %v2358 = vpop.f32.mrf.mxu0
        %2359 = vmatmul.bf16.gmra.mxu0 %v2198
        %v2360 = vpop.f32.mrf.mxu0
        %v2361 = vadd.f32 %v2320, %v2360
        %v2362 = vpop.f32.mrf.mxu0
        %2363 = vdwg.mxu0
        %2364 = vmatpush.bf16.msra.mxu0 %v2085
        %2365 = vmatpush.bf16.msra.mxu0 %v2081
        %2366 = vmatpush.bf16.msra.mxu0 %v2077
        %2367 = vmatpush.bf16.msra.mxu0 %v2073
        %2368 = vmatpush.bf16.msra.mxu0 %v2069
        %2369 = vmatpush.bf16.msra.mxu0 %v2065
        %2370 = vmatpush.bf16.msra.mxu0 %v2061
        %2371 = vmatpush.bf16.msra.mxu0 %v2057
        %2372 = vmatmul.bf16.gmra.mxu0 %v1851
        %v2373 = vpop.f32.mrf.mxu0
        %v2374 = vadd.f32 0.0, %v2373
        %v2375 = vpop.f32.mrf.mxu0
        %2376 = vmatmul.bf16.gmra.mxu0 %v1853
        %v2377 = vpop.f32.mrf.mxu0
        %v2378 = vadd.f32 0.0, %v2377
        %v2379 = vpop.f32.mrf.mxu0
        %2380 = vmatmul.bf16.gmra.mxu0 %v1855
        %v2381 = vpop.f32.mrf.mxu0
        %v2382 = vadd.f32 0.0, %v2381
        %v2383 = vpop.f32.mrf.mxu0
        %2384 = vmatmul.bf16.gmra.mxu0 %v1857
        %v2385 = vpop.f32.mrf.mxu0
        %v2386 = vadd.f32 0.0, %v2385
        %v2387 = vpop.f32.mrf.mxu0
        %2388 = vmatmul.bf16.gmra.mxu0 %v1859
        %v2389 = vpop.f32.mrf.mxu0
        %v2390 = vadd.f32 0.0, %v2389
        %v2391 = vpop.f32.mrf.mxu0
        %2392 = vmatmul.bf16.gmra.mxu0 %v1861
        %v2393 = vpop.f32.mrf.mxu0
        %v2394 = vadd.f32 0.0, %v2393
        %v2395 = vpop.f32.mrf.mxu0
        %2396 = vmatmul.bf16.gmra.mxu0 %v1863
        %v2397 = vpop.f32.mrf.mxu0
        %v2398 = vadd.f32 0.0, %v2397
        %v2399 = vpop.f32.mrf.mxu0
        %2400 = vmatmul.bf16.gmra.mxu0 %v1865
        %v2401 = vpop.f32.mrf.mxu0
        %v2402 = vadd.f32 0.0, %v2401
        %v2403 = vpop.f32.mrf.mxu0
        %2404 = vdwg.mxu0
        %2405 = vmatpush.bf16.msra.mxu0 0
        %2406 = vmatpush.bf16.msra.mxu0 %v2113
        %2407 = vmatpush.bf16.msra.mxu0 %v2109
        %2408 = vmatpush.bf16.msra.mxu0 %v2105
        %2409 = vmatpush.bf16.msra.mxu0 %v2101
        %2410 = vmatpush.bf16.msra.mxu0 %v2097
        %2411 = vmatpush.bf16.msra.mxu0 %v2093
        %2412 = vmatpush.bf16.msra.mxu0 %v2089
        %2413 = vmatmul.bf16.gmra.mxu0 %v2177
        %v2414 = vpop.f32.mrf.mxu0
        %v2415 = vadd.f32 %v2374, %v2414
        %v2416 = vpop.f32.mrf.mxu0
        %2417 = vmatmul.bf16.gmra.mxu0 %v2180
        %v2418 = vpop.f32.mrf.mxu0
        %v2419 = vadd.f32 %v2378, %v2418
        %v2420 = vpop.f32.mrf.mxu0
        %2421 = vmatmul.bf16.gmra.mxu0 %v2183
        %v2422 = vpop.f32.mrf.mxu0
        %v2423 = vadd.f32 %v2382, %v2422
        %v2424 = vpop.f32.mrf.mxu0
        %2425 = vmatmul.bf16.gmra.mxu0 %v2186
        %v2426 = vpop.f32.mrf.mxu0
        %v2427 = vadd.f32 %v2386, %v2426
        %v2428 = vpop.f32.mrf.mxu0
        %2429 = vmatmul.bf16.gmra.mxu0 %v2189
        %v2430 = vpop.f32.mrf.mxu0
        %v2431 = vadd.f32 %v2390, %v2430
        %v2432 = vpop.f32.mrf.mxu0
        %2433 = vmatmul.bf16.gmra.mxu0 %v2192
        %v2434 = vpop.f32.mrf.mxu0
        %v2435 = vadd.f32 %v2394, %v2434
        %v2436 = vpop.f32.mrf.mxu0
        %2437 = vmatmul.bf16.gmra.mxu0 %v2195
        %v2438 = vpop.f32.mrf.mxu0
        %v2439 = vadd.f32 %v2398, %v2438
        %v2440 = vpop.f32.mrf.mxu0
        %2441 = vmatmul.bf16.gmra.mxu0 %v2198
        %v2442 = vpop.f32.mrf.mxu0
        %v2443 = vadd.f32 %v2402, %v2442
        %v2444 = vpop.f32.mrf.mxu0
        %2445 = vdwg.mxu0
        %2446 = vmatpush.bf16.msra.mxu0 %v2086
        %2447 = vmatpush.bf16.msra.mxu0 %v2082
        %2448 = vmatpush.bf16.msra.mxu0 %v2078
        %2449 = vmatpush.bf16.msra.mxu0 %v2074
        %2450 = vmatpush.bf16.msra.mxu0 %v2070
        %2451 = vmatpush.bf16.msra.mxu0 %v2066
        %2452 = vmatpush.bf16.msra.mxu0 %v2062
        %2453 = vmatpush.bf16.msra.mxu0 %v2058
        %2454 = vmatmul.bf16.gmra.mxu0 %v1851
        %v2455 = vpop.f32.mrf.mxu0
        %v2456 = vadd.f32 0.0, %v2455
        %v2457 = vpop.f32.mrf.mxu0
        %2458 = vmatmul.bf16.gmra.mxu0 %v1853
        %v2459 = vpop.f32.mrf.mxu0
        %v2460 = vadd.f32 0.0, %v2459
        %v2461 = vpop.f32.mrf.mxu0
        %2462 = vmatmul.bf16.gmra.mxu0 %v1855
        %v2463 = vpop.f32.mrf.mxu0
        %v2464 = vadd.f32 0.0, %v2463
        %v2465 = vpop.f32.mrf.mxu0
        %2466 = vmatmul.bf16.gmra.mxu0 %v1857
        %v2467 = vpop.f32.mrf.mxu0
        %v2468 = vadd.f32 0.0, %v2467
        %v2469 = vpop.f32.mrf.mxu0
        %2470 = vmatmul.bf16.gmra.mxu0 %v1859
        %v2471 = vpop.f32.mrf.mxu0
        %v2472 = vadd.f32 0.0, %v2471
        %v2473 = vpop.f32.mrf.mxu0
        %2474 = vmatmul.bf16.gmra.mxu0 %v1861
        %v2475 = vpop.f32.mrf.mxu0
        %v2476 = vadd.f32 0.0, %v2475
        %v2477 = vpop.f32.mrf.mxu0
        %2478 = vmatmul.bf16.gmra.mxu0 %v1863
        %v2479 = vpop.f32.mrf.mxu0
        %v2480 = vadd.f32 0.0, %v2479
        %v2481 = vpop.f32.mrf.mxu0
        %2482 = vmatmul.bf16.gmra.mxu0 %v1865
        %v2483 = vpop.f32.mrf.mxu0
        %v2484 = vadd.f32 0.0, %v2483
        %v2485 = vpop.f32.mrf.mxu0
        %2486 = vdwg.mxu0
        %2487 = vmatpush.bf16.msra.mxu0 0
        %2488 = vmatpush.bf16.msra.mxu0 %v2114
        %2489 = vmatpush.bf16.msra.mxu0 %v2110
        %2490 = vmatpush.bf16.msra.mxu0 %v2106
        %2491 = vmatpush.bf16.msra.mxu0 %v2102
        %2492 = vmatpush.bf16.msra.mxu0 %v2098
        %2493 = vmatpush.bf16.msra.mxu0 %v2094
        %2494 = vmatpush.bf16.msra.mxu0 %v2090
        %2495 = vmatmul.bf16.gmra.mxu0 %v2177
        %v2496 = vpop.f32.mrf.mxu0
        %v2497 = vadd.f32 %v2456, %v2496
        %v2498 = vpop.f32.mrf.mxu0
        %2499 = vmatmul.bf16.gmra.mxu0 %v2180
        %v2500 = vpop.f32.mrf.mxu0
        %v2501 = vadd.f32 %v2460, %v2500
        %v2502 = vpop.f32.mrf.mxu0
        %2503 = vmatmul.bf16.gmra.mxu0 %v2183
        %v2504 = vpop.f32.mrf.mxu0
        %v2505 = vadd.f32 %v2464, %v2504
        %v2506 = vpop.f32.mrf.mxu0
        %2507 = vmatmul.bf16.gmra.mxu0 %v2186
        %v2508 = vpop.f32.mrf.mxu0
        %v2509 = vadd.f32 %v2468, %v2508
        %v2510 = vpop.f32.mrf.mxu0
        %2511 = vmatmul.bf16.gmra.mxu0 %v2189
        %v2512 = vpop.f32.mrf.mxu0
        %v2513 = vadd.f32 %v2472, %v2512
        %v2514 = vpop.f32.mrf.mxu0
        %2515 = vmatmul.bf16.gmra.mxu0 %v2192
        %v2516 = vpop.f32.mrf.mxu0
        %v2517 = vadd.f32 %v2476, %v2516
        %v2518 = vpop.f32.mrf.mxu0
        %2519 = vmatmul.bf16.gmra.mxu0 %v2195
        %v2520 = vpop.f32.mrf.mxu0
        %v2521 = vadd.f32 %v2480, %v2520
        %v2522 = vpop.f32.mrf.mxu0
        %2523 = vmatmul.bf16.gmra.mxu0 %v2198
        %v2524 = vpop.f32.mrf.mxu0
        %v2525 = vadd.f32 %v2484, %v2524
        %v2526 = vpop.f32.mrf.mxu0
        %2527 = vdwg.mxu0
        %s2528 = scalar_lea.vmem [#allocation8], 480
        %v2529 = vld [vmem:[%s2528] sm:$0xff]
        %v2530 = vld [vmem:[%s2528 + $0x8] sm:$0xff]
        %v2531 = vld [vmem:[%s2528 + $0x10] sm:$0xff]
        %v2532 = vld [vmem:[%s2528 + $0x18] sm:$0xff]
        %v2533 = vld [vmem:[%s2528 + $0x20] sm:$0xff]
        %v2534 = vld [vmem:[%s2528 + $0x28] sm:$0xff]
        %v2535 = vld [vmem:[%s2528 + $0x30] sm:$0xff]
        %v2536 = vld [vmem:[%s2528 + $0x38] sm:$0xff]
        %v2537 = vld [vmem:[%s2528 + $0x40] sm:$0xff]
        %v2538 = vld [vmem:[%s2528 + $0x48] sm:$0xff]
        %v2539 = vld [vmem:[%s2528 + $0x50] sm:$0xff]
        %v2540 = vld [vmem:[%s2528 + $0x58] sm:$0xff]
        %v2541 = vld [vmem:[%s2528 + $0x60] sm:$0xff]
        %v2542 = vld [vmem:[%s2528 + $0x68] sm:$0xff]
        %v2543 = vld [vmem:[%s2528 + $0x70] sm:$0xff]
        %v2544 = vld [vmem:[%s2528 + $0x78] sm:$0xff]
        %v2545 = vld [vmem:[%s2528 + $0x80] sm:$0xff]
        %v2546 = vld [vmem:[%s2528 + $0x88] sm:$0xff]
        %v2547 = vld [vmem:[%s2528 + $0x90] sm:$0xff]
        %v2548 = vld [vmem:[%s2528 + $0x98] sm:$0xff]
        %v2549 = vld [vmem:[%s2528 + $0xa0] sm:$0xff]
        %v2550 = vld [vmem:[%s2528 + $0xa8] sm:$0xff]
        %v2551 = vld [vmem:[%s2528 + $0xb0] sm:$0xff]
        %v2552 = vld [vmem:[%s2528 + $0xb8] sm:$0xff]
        %v2553 = vld [vmem:[%s2528 + $0xc0] sm:$0xff]
        %v2554 = vld [vmem:[%s2528 + $0xc8] sm:$0xff]
        %v2555 = vld [vmem:[%s2528 + $0xd0] sm:$0xff]
        %v2556 = vld [vmem:[%s2528 + $0xd8] sm:$0xff]
        %v2557 = vld [vmem:[%s2528 + $0xe0] sm:$0xff]
        %v2558 = vld [vmem:[%s2528 + $0xe8] sm:$0xff]
        %v2559 = vld [vmem:[%s2528 + $0xf0] sm:$0xff]
        %v2560 = vld [vmem:[%s2528 + $0xf8] sm:$0xff]
        %v2561 = vld [vmem:[%s2528 + $0x100] sm:$0xff]
        %v2562 = vld [vmem:[%s2528 + $0x108] sm:$0xff]
        %v2563 = vld [vmem:[%s2528 + $0x110] sm:$0xff]
        %v2564 = vld [vmem:[%s2528 + $0x118] sm:$0xff]
        %v2565 = vld [vmem:[%s2528 + $0x120] sm:$0xff]
        %v2566 = vld [vmem:[%s2528 + $0x128] sm:$0xff]
        %v2567 = vld [vmem:[%s2528 + $0x130] sm:$0xff]
        %v2568 = vld [vmem:[%s2528 + $0x138] sm:$0xff]
        %v2569 = vld [vmem:[%s2528 + $0x140] sm:$0xff]
        %v2570 = vld [vmem:[%s2528 + $0x148] sm:$0xff]
        %v2571 = vld [vmem:[%s2528 + $0x150] sm:$0xff]
        %v2572 = vld [vmem:[%s2528 + $0x158] sm:$0xff]
        %v2573 = vld [vmem:[%s2528 + $0x160] sm:$0xff]
        %v2574 = vld [vmem:[%s2528 + $0x168] sm:$0xff]
        %v2575 = vld [vmem:[%s2528 + $0x170] sm:$0xff]
        %v2576 = vld [vmem:[%s2528 + $0x178] sm:$0xff]
        %v2577 = vld [vmem:[%s2528 + $0x180] sm:$0xff]
        %v2578 = vld [vmem:[%s2528 + $0x188] sm:$0xff]
        %v2579 = vld [vmem:[%s2528 + $0x190] sm:$0xff]
        %v2580 = vld [vmem:[%s2528 + $0x198] sm:$0xff]
        %v2581 = vld [vmem:[%s2528 + $0x1a0] sm:$0xff]
        %v2582 = vld [vmem:[%s2528 + $0x1a8] sm:$0xff]
        %v2583 = vld [vmem:[%s2528 + $0x1b0] sm:$0xff]
        %v2584 = vld [vmem:[%s2528 + $0x1b8] sm:$0xff]
        %v2585 = vld [vmem:[%s2528 + $0x1c0] sm:$0xff]
        %v2586 = vld [vmem:[%s2528 + $0x1c8] sm:$0xff]
        %v2587 = vld [vmem:[%s2528 + $0x1d0] sm:$0xff]
        %v2588 = vld [vmem:[%s2528 + $0x1d8] sm:$0xff]
        %v2649 = vunpack.c.l.b16 %v2529
        %v2650 = vunpack.c.h.b16 %v2529
        %v2651 = vunpack.c.l.b16 %v2530
        %v2652 = vunpack.c.h.b16 %v2530
        %v2653 = vunpack.c.l.b16 %v2531
        %v2654 = vunpack.c.h.b16 %v2531
        %v2655 = vunpack.c.l.b16 %v2532
        %v2656 = vunpack.c.h.b16 %v2532
        %v2657 = vunpack.c.l.b16 %v2533
        %v2658 = vunpack.c.h.b16 %v2533
        %v2659 = vunpack.c.l.b16 %v2534
        %v2660 = vunpack.c.h.b16 %v2534
        %v2661 = vunpack.c.l.b16 %v2535
        %v2662 = vunpack.c.h.b16 %v2535
        %v2663 = vunpack.c.l.b16 %v2536
        %v2664 = vunpack.c.h.b16 %v2536
        %v2665 = vunpack.c.l.b16 %v2537
        %v2666 = vunpack.c.h.b16 %v2537
        %v2667 = vunpack.c.l.b16 %v2538
        %v2668 = vunpack.c.h.b16 %v2538
        %v2669 = vunpack.c.l.b16 %v2539
        %v2670 = vunpack.c.h.b16 %v2539
        %v2671 = vunpack.c.l.b16 %v2540
        %v2672 = vunpack.c.h.b16 %v2540
        %v2673 = vunpack.c.l.b16 %v2541
        %v2674 = vunpack.c.h.b16 %v2541
        %v2675 = vunpack.c.l.b16 %v2542
        %v2676 = vunpack.c.h.b16 %v2542
        %v2677 = vunpack.c.l.b16 %v2543
        %v2678 = vunpack.c.h.b16 %v2543
        %v2679 = vunpack.c.l.b16 %v2544
        %v2680 = vunpack.c.h.b16 %v2544
        %v2681 = vunpack.c.l.b16 %v2545
        %v2682 = vunpack.c.h.b16 %v2545
        %v2683 = vunpack.c.l.b16 %v2546
        %v2684 = vunpack.c.h.b16 %v2546
        %v2685 = vunpack.c.l.b16 %v2547
        %v2686 = vunpack.c.h.b16 %v2547
        %v2687 = vunpack.c.l.b16 %v2548
        %v2688 = vunpack.c.h.b16 %v2548
        %v2689 = vunpack.c.l.b16 %v2549
        %v2690 = vunpack.c.h.b16 %v2549
        %v2691 = vunpack.c.l.b16 %v2550
        %v2692 = vunpack.c.h.b16 %v2550
        %v2693 = vunpack.c.l.b16 %v2551
        %v2694 = vunpack.c.h.b16 %v2551
        %v2695 = vunpack.c.l.b16 %v2552
        %v2696 = vunpack.c.h.b16 %v2552
        %v2697 = vunpack.c.l.b16 %v2553
        %v2698 = vunpack.c.h.b16 %v2553
        %v2699 = vunpack.c.l.b16 %v2554
        %v2700 = vunpack.c.h.b16 %v2554
        %v2701 = vunpack.c.l.b16 %v2555
        %v2702 = vunpack.c.h.b16 %v2555
        %v2703 = vunpack.c.l.b16 %v2556
        %v2704 = vunpack.c.h.b16 %v2556
        %v2705 = vunpack.c.l.b16 %v2557
        %v2706 = vunpack.c.h.b16 %v2557
        %v2707 = vunpack.c.l.b16 %v2558
        %v2708 = vunpack.c.h.b16 %v2558
        %v2709 = vunpack.c.l.b16 %v2559
        %v2710 = vunpack.c.h.b16 %v2559
        %v2711 = vunpack.c.l.b16 %v2560
        %v2712 = vunpack.c.h.b16 %v2560
        %v2713 = vunpack.c.l.b16 %v2561
        %v2714 = vunpack.c.h.b16 %v2561
        %v2715 = vunpack.c.l.b16 %v2562
        %v2716 = vunpack.c.h.b16 %v2562
        %v2717 = vunpack.c.l.b16 %v2563
        %v2718 = vunpack.c.h.b16 %v2563
        %v2719 = vunpack.c.l.b16 %v2564
        %v2720 = vunpack.c.h.b16 %v2564
        %v2721 = vunpack.c.l.b16 %v2565
        %v2722 = vunpack.c.h.b16 %v2565
        %v2723 = vunpack.c.l.b16 %v2566
        %v2724 = vunpack.c.h.b16 %v2566
        %v2725 = vunpack.c.l.b16 %v2567
        %v2726 = vunpack.c.h.b16 %v2567
        %v2727 = vunpack.c.l.b16 %v2568
        %v2728 = vunpack.c.h.b16 %v2568
        %v2729 = vunpack.c.l.b16 %v2569
        %v2730 = vunpack.c.h.b16 %v2569
        %v2731 = vunpack.c.l.b16 %v2570
        %v2732 = vunpack.c.h.b16 %v2570
        %v2733 = vunpack.c.l.b16 %v2571
        %v2734 = vunpack.c.h.b16 %v2571
        %v2735 = vunpack.c.l.b16 %v2572
        %v2736 = vunpack.c.h.b16 %v2572
        %v2737 = vunpack.c.l.b16 %v2573
        %v2738 = vunpack.c.h.b16 %v2573
        %v2739 = vunpack.c.l.b16 %v2574
        %v2740 = vunpack.c.h.b16 %v2574
        %v2741 = vunpack.c.l.b16 %v2575
        %v2742 = vunpack.c.h.b16 %v2575
        %v2743 = vunpack.c.l.b16 %v2576
        %v2744 = vunpack.c.h.b16 %v2576
        %v2745 = vunpack.c.l.b16 %v2577
        %v2746 = vunpack.c.h.b16 %v2577
        %v2747 = vunpack.c.l.b16 %v2578
        %v2748 = vunpack.c.h.b16 %v2578
        %v2749 = vunpack.c.l.b16 %v2579
        %v2750 = vunpack.c.h.b16 %v2579
        %v2751 = vunpack.c.l.b16 %v2580
        %v2752 = vunpack.c.h.b16 %v2580
        %v2753 = vunpack.c.l.b16 %v2581
        %v2754 = vunpack.c.h.b16 %v2581
        %v2755 = vunpack.c.l.b16 %v2582
        %v2756 = vunpack.c.h.b16 %v2582
        %v2757 = vunpack.c.l.b16 %v2583
        %v2758 = vunpack.c.h.b16 %v2583
        %v2759 = vunpack.c.l.b16 %v2584
        %v2760 = vunpack.c.h.b16 %v2584
        %v2761 = vunpack.c.l.b16 %v2585
        %v2762 = vunpack.c.h.b16 %v2585
        %v2763 = vunpack.c.l.b16 %v2586
        %v2764 = vunpack.c.h.b16 %v2586
        %v2765 = vunpack.c.l.b16 %v2587
        %v2766 = vunpack.c.h.b16 %v2587
        %v2767 = vunpack.c.l.b16 %v2588
        %v2768 = vunpack.c.h.b16 %v2588
        %v2769 = vpack.c.b16 %v2653, %v2649
        %v2770 = vpack.c.b16 %v2654, %v2650
        %v2771 = vpack.c.b16 %v2655, %v2651
        %v2772 = vpack.c.b16 %v2656, %v2652
        %v2773 = vpack.c.b16 %v2661, %v2657
        %v2774 = vpack.c.b16 %v2662, %v2658
        %v2775 = vpack.c.b16 %v2663, %v2659
        %v2776 = vpack.c.b16 %v2664, %v2660
        %v2777 = vpack.c.b16 %v2669, %v2665
        %v2778 = vpack.c.b16 %v2670, %v2666
        %v2779 = vpack.c.b16 %v2671, %v2667
        %v2780 = vpack.c.b16 %v2672, %v2668
        %v2781 = vpack.c.b16 %v2677, %v2673
        %v2782 = vpack.c.b16 %v2678, %v2674
        %v2783 = vpack.c.b16 %v2679, %v2675
        %v2784 = vpack.c.b16 %v2680, %v2676
        %v2785 = vpack.c.b16 %v2685, %v2681
        %v2786 = vpack.c.b16 %v2686, %v2682
        %v2787 = vpack.c.b16 %v2687, %v2683
        %v2788 = vpack.c.b16 %v2688, %v2684
        %v2789 = vpack.c.b16 %v2693, %v2689
        %v2790 = vpack.c.b16 %v2694, %v2690
        %v2791 = vpack.c.b16 %v2695, %v2691
        %v2792 = vpack.c.b16 %v2696, %v2692
        %v2793 = vpack.c.b16 %v2701, %v2697
        %v2794 = vpack.c.b16 %v2702, %v2698
        %v2795 = vpack.c.b16 %v2703, %v2699
        %v2796 = vpack.c.b16 %v2704, %v2700
        %v2797 = vpack.c.b16 %v2709, %v2705
        %v2798 = vpack.c.b16 %v2710, %v2706
        %v2799 = vpack.c.b16 %v2711, %v2707
        %v2800 = vpack.c.b16 %v2712, %v2708
        %v2801 = vpack.c.b16 %v2717, %v2713
        %v2802 = vpack.c.b16 %v2718, %v2714
        %v2803 = vpack.c.b16 %v2719, %v2715
        %v2804 = vpack.c.b16 %v2720, %v2716
        %v2805 = vpack.c.b16 %v2725, %v2721
        %v2806 = vpack.c.b16 %v2726, %v2722
        %v2807 = vpack.c.b16 %v2727, %v2723
        %v2808 = vpack.c.b16 %v2728, %v2724
        %v2809 = vpack.c.b16 %v2733, %v2729
        %v2810 = vpack.c.b16 %v2734, %v2730
        %v2811 = vpack.c.b16 %v2735, %v2731
        %v2812 = vpack.c.b16 %v2736, %v2732
        %v2813 = vpack.c.b16 %v2741, %v2737
        %v2814 = vpack.c.b16 %v2742, %v2738
        %v2815 = vpack.c.b16 %v2743, %v2739
        %v2816 = vpack.c.b16 %v2744, %v2740
        %v2817 = vpack.c.b16 %v2749, %v2745
        %v2818 = vpack.c.b16 %v2750, %v2746
        %v2819 = vpack.c.b16 %v2751, %v2747
        %v2820 = vpack.c.b16 %v2752, %v2748
        %v2821 = vpack.c.b16 %v2757, %v2753
        %v2822 = vpack.c.b16 %v2758, %v2754
        %v2823 = vpack.c.b16 %v2759, %v2755
        %v2824 = vpack.c.b16 %v2760, %v2756
        %v2825 = vpack.c.b16 %v2765, %v2761
        %v2826 = vpack.c.b16 %v2766, %v2762
        %v2827 = vpack.c.b16 %v2767, %v2763
        %v2828 = vpack.c.b16 %v2768, %v2764
        %2889 = vmatpush.bf16.msra.mxu0 %v2797
        %2890 = vmatpush.bf16.msra.mxu0 %v2793
        %2891 = vmatpush.bf16.msra.mxu0 %v2789
        %2892 = vmatpush.bf16.msra.mxu0 %v2785
        %2893 = vmatpush.bf16.msra.mxu0 %v2781
        %2894 = vmatpush.bf16.msra.mxu0 %v2777
        %2895 = vmatpush.bf16.msra.mxu0 %v2773
        %2896 = vmatpush.bf16.msra.mxu0 %v2769
        %2897 = vmatmul.bf16.gmra.mxu0 %v1851
        %v2898 = vpop.f32.mrf.mxu0
        %v2899 = vadd.f32 0.0, %v2898
        %v2900 = vpop.f32.mrf.mxu0
        %v2901 = vadd.f32 0.0, %v2900
        %2902 = vmatmul.bf16.gmra.mxu0 %v1853
        %v2903 = vpop.f32.mrf.mxu0
        %v2904 = vadd.f32 0.0, %v2903
        %v2905 = vpop.f32.mrf.mxu0
        %v2906 = vadd.f32 0.0, %v2905
        %2907 = vmatmul.bf16.gmra.mxu0 %v1855
        %v2908 = vpop.f32.mrf.mxu0
        %v2909 = vadd.f32 0.0, %v2908
        %v2910 = vpop.f32.mrf.mxu0
        %v2911 = vadd.f32 0.0, %v2910
        %2912 = vmatmul.bf16.gmra.mxu0 %v1857
        %v2913 = vpop.f32.mrf.mxu0
        %v2914 = vadd.f32 0.0, %v2913
        %v2915 = vpop.f32.mrf.mxu0
        %v2916 = vadd.f32 0.0, %v2915
        %2917 = vmatmul.bf16.gmra.mxu0 %v1859
        %v2918 = vpop.f32.mrf.mxu0
        %v2919 = vadd.f32 0.0, %v2918
        %v2920 = vpop.f32.mrf.mxu0
        %v2921 = vadd.f32 0.0, %v2920
        %2922 = vmatmul.bf16.gmra.mxu0 %v1861
        %v2923 = vpop.f32.mrf.mxu0
        %v2924 = vadd.f32 0.0, %v2923
        %v2925 = vpop.f32.mrf.mxu0
        %v2926 = vadd.f32 0.0, %v2925
        %2927 = vmatmul.bf16.gmra.mxu0 %v1863
        %v2928 = vpop.f32.mrf.mxu0
        %v2929 = vadd.f32 0.0, %v2928
        %v2930 = vpop.f32.mrf.mxu0
        %v2931 = vadd.f32 0.0, %v2930
        %2932 = vmatmul.bf16.gmra.mxu0 %v1865
        %v2933 = vpop.f32.mrf.mxu0
        %v2934 = vadd.f32 0.0, %v2933
        %v2935 = vpop.f32.mrf.mxu0
        %v2936 = vadd.f32 0.0, %v2935
        %2937 = vdwg.mxu0
        %2938 = vmatpush.bf16.msra.mxu0 0
        %2939 = vmatpush.bf16.msra.mxu0 %v2825
        %2940 = vmatpush.bf16.msra.mxu0 %v2821
        %2941 = vmatpush.bf16.msra.mxu0 %v2817
        %2942 = vmatpush.bf16.msra.mxu0 %v2813
        %2943 = vmatpush.bf16.msra.mxu0 %v2809
        %2944 = vmatpush.bf16.msra.mxu0 %v2805
        %2945 = vmatpush.bf16.msra.mxu0 %v2801
        %2946 = vmatmul.bf16.gmra.mxu0 %v2177
        %v2947 = vpop.f32.mrf.mxu0
        %v2948 = vadd.f32 %v2899, %v2947
        %v2949 = vpop.f32.mrf.mxu0
        %v2950 = vadd.f32 %v2901, %v2949
        %2951 = vmatmul.bf16.gmra.mxu0 %v2180
        %v2952 = vpop.f32.mrf.mxu0
        %v2953 = vadd.f32 %v2904, %v2952
        %v2954 = vpop.f32.mrf.mxu0
        %v2955 = vadd.f32 %v2906, %v2954
        %2956 = vmatmul.bf16.gmra.mxu0 %v2183
        %v2957 = vpop.f32.mrf.mxu0
        %v2958 = vadd.f32 %v2909, %v2957
        %v2959 = vpop.f32.mrf.mxu0
        %v2960 = vadd.f32 %v2911, %v2959
        %2961 = vmatmul.bf16.gmra.mxu0 %v2186
        %v2962 = vpop.f32.mrf.mxu0
        %v2963 = vadd.f32 %v2914, %v2962
        %v2964 = vpop.f32.mrf.mxu0
        %v2965 = vadd.f32 %v2916, %v2964
        %2966 = vmatmul.bf16.gmra.mxu0 %v2189
        %v2967 = vpop.f32.mrf.mxu0
        %v2968 = vadd.f32 %v2919, %v2967
        %v2969 = vpop.f32.mrf.mxu0
        %v2970 = vadd.f32 %v2921, %v2969
        %2971 = vmatmul.bf16.gmra.mxu0 %v2192
        %v2972 = vpop.f32.mrf.mxu0
        %v2973 = vadd.f32 %v2924, %v2972
        %v2974 = vpop.f32.mrf.mxu0
        %v2975 = vadd.f32 %v2926, %v2974
        %2976 = vmatmul.bf16.gmra.mxu0 %v2195
        %v2977 = vpop.f32.mrf.mxu0
        %v2978 = vadd.f32 %v2929, %v2977
        %v2979 = vpop.f32.mrf.mxu0
        %v2980 = vadd.f32 %v2931, %v2979
        %2981 = vmatmul.bf16.gmra.mxu0 %v2198
        %v2982 = vpop.f32.mrf.mxu0
        %v2983 = vadd.f32 %v2934, %v2982
        %v2984 = vpop.f32.mrf.mxu0
        %v2985 = vadd.f32 %v2936, %v2984
        %2986 = vdwg.mxu0
        %2987 = vmatpush.bf16.msra.mxu0 %v2798
        %2988 = vmatpush.bf16.msra.mxu0 %v2794
        %2989 = vmatpush.bf16.msra.mxu0 %v2790
        %2990 = vmatpush.bf16.msra.mxu0 %v2786
        %2991 = vmatpush.bf16.msra.mxu0 %v2782
        %2992 = vmatpush.bf16.msra.mxu0 %v2778
        %2993 = vmatpush.bf16.msra.mxu0 %v2774
        %2994 = vmatpush.bf16.msra.mxu0 %v2770
        %2995 = vmatmul.bf16.gmra.mxu0 %v1851
        %v2996 = vpop.f32.mrf.mxu0
        %v2997 = vadd.f32 0.0, %v2996
        %v2998 = vpop.f32.mrf.mxu0
        %v2999 = vadd.f32 0.0, %v2998
        %3000 = vmatmul.bf16.gmra.mxu0 %v1853
        %v3001 = vpop.f32.mrf.mxu0
        %v3002 = vadd.f32 0.0, %v3001
        %v3003 = vpop.f32.mrf.mxu0
        %v3004 = vadd.f32 0.0, %v3003
        %3005 = vmatmul.bf16.gmra.mxu0 %v1855
        %v3006 = vpop.f32.mrf.mxu0
        %v3007 = vadd.f32 0.0, %v3006
        %v3008 = vpop.f32.mrf.mxu0
        %v3009 = vadd.f32 0.0, %v3008
        %3010 = vmatmul.bf16.gmra.mxu0 %v1857
        %v3011 = vpop.f32.mrf.mxu0
        %v3012 = vadd.f32 0.0, %v3011
        %v3013 = vpop.f32.mrf.mxu0
        %v3014 = vadd.f32 0.0, %v3013
        %3015 = vmatmul.bf16.gmra.mxu0 %v1859
        %v3016 = vpop.f32.mrf.mxu0
        %v3017 = vadd.f32 0.0, %v3016
        %v3018 = vpop.f32.mrf.mxu0
        %v3019 = vadd.f32 0.0, %v3018
        %3020 = vmatmul.bf16.gmra.mxu0 %v1861
        %v3021 = vpop.f32.mrf.mxu0
        %v3022 = vadd.f32 0.0, %v3021
        %v3023 = vpop.f32.mrf.mxu0
        %v3024 = vadd.f32 0.0, %v3023
        %3025 = vmatmul.bf16.gmra.mxu0 %v1863
        %v3026 = vpop.f32.mrf.mxu0
        %v3027 = vadd.f32 0.0, %v3026
        %v3028 = vpop.f32.mrf.mxu0
        %v3029 = vadd.f32 0.0, %v3028
        %3030 = vmatmul.bf16.gmra.mxu0 %v1865
        %v3031 = vpop.f32.mrf.mxu0
        %v3032 = vadd.f32 0.0, %v3031
        %v3033 = vpop.f32.mrf.mxu0
        %v3034 = vadd.f32 0.0, %v3033
        %3035 = vdwg.mxu0
        %3036 = vmatpush.bf16.msra.mxu0 0
        %3037 = vmatpush.bf16.msra.mxu0 %v2826
        %3038 = vmatpush.bf16.msra.mxu0 %v2822
        %3039 = vmatpush.bf16.msra.mxu0 %v2818
        %3040 = vmatpush.bf16.msra.mxu0 %v2814
        %3041 = vmatpush.bf16.msra.mxu0 %v2810
        %3042 = vmatpush.bf16.msra.mxu0 %v2806
        %3043 = vmatpush.bf16.msra.mxu0 %v2802
        %3044 = vmatmul.bf16.gmra.mxu0 %v2177
        %v3045 = vpop.f32.mrf.mxu0
        %v3046 = vadd.f32 %v2997, %v3045
        %v3047 = vpop.f32.mrf.mxu0
        %v3048 = vadd.f32 %v2999, %v3047
        %3049 = vmatmul.bf16.gmra.mxu0 %v2180
        %v3050 = vpop.f32.mrf.mxu0
        %v3051 = vadd.f32 %v3002, %v3050
        %v3052 = vpop.f32.mrf.mxu0
        %v3053 = vadd.f32 %v3004, %v3052
        %3054 = vmatmul.bf16.gmra.mxu0 %v2183
        %v3055 = vpop.f32.mrf.mxu0
        %v3056 = vadd.f32 %v3007, %v3055
        %v3057 = vpop.f32.mrf.mxu0
        %v3058 = vadd.f32 %v3009, %v3057
        %3059 = vmatmul.bf16.gmra.mxu0 %v2186
        %v3060 = vpop.f32.mrf.mxu0
        %v3061 = vadd.f32 %v3012, %v3060
        %v3062 = vpop.f32.mrf.mxu0
        %v3063 = vadd.f32 %v3014, %v3062
        %3064 = vmatmul.bf16.gmra.mxu0 %v2189
        %v3065 = vpop.f32.mrf.mxu0
        %v3066 = vadd.f32 %v3017, %v3065
        %v3067 = vpop.f32.mrf.mxu0
        %v3068 = vadd.f32 %v3019, %v3067
        %3069 = vmatmul.bf16.gmra.mxu0 %v2192
        %v3070 = vpop.f32.mrf.mxu0
        %v3071 = vadd.f32 %v3022, %v3070
        %v3072 = vpop.f32.mrf.mxu0
        %v3073 = vadd.f32 %v3024, %v3072
        %3074 = vmatmul.bf16.gmra.mxu0 %v2195
        %v3075 = vpop.f32.mrf.mxu0
        %v3076 = vadd.f32 %v3027, %v3075
        %v3077 = vpop.f32.mrf.mxu0
        %v3078 = vadd.f32 %v3029, %v3077
        %3079 = vmatmul.bf16.gmra.mxu0 %v2198
        %v3080 = vpop.f32.mrf.mxu0
        %v3081 = vadd.f32 %v3032, %v3080
        %v3082 = vpop.f32.mrf.mxu0
        %v3083 = vadd.f32 %v3034, %v3082
        %3084 = vdwg.mxu0
        %3085 = vmatpush.bf16.msra.mxu0 %v2799
        %3086 = vmatpush.bf16.msra.mxu0 %v2795
        %3087 = vmatpush.bf16.msra.mxu0 %v2791
        %3088 = vmatpush.bf16.msra.mxu0 %v2787
        %3089 = vmatpush.bf16.msra.mxu0 %v2783
        %3090 = vmatpush.bf16.msra.mxu0 %v2779
        %3091 = vmatpush.bf16.msra.mxu0 %v2775
        %3092 = vmatpush.bf16.msra.mxu0 %v2771
        %3093 = vmatmul.bf16.gmra.mxu0 %v1851
        %v3094 = vpop.f32.mrf.mxu0
        %v3095 = vadd.f32 0.0, %v3094
        %v3096 = vpop.f32.mrf.mxu0
        %v3097 = vadd.f32 0.0, %v3096
        %3098 = vmatmul.bf16.gmra.mxu0 %v1853
        %v3099 = vpop.f32.mrf.mxu0
        %v3100 = vadd.f32 0.0, %v3099
        %v3101 = vpop.f32.mrf.mxu0
        %v3102 = vadd.f32 0.0, %v3101
        %3103 = vmatmul.bf16.gmra.mxu0 %v1855
        %v3104 = vpop.f32.mrf.mxu0
        %v3105 = vadd.f32 0.0, %v3104
        %v3106 = vpop.f32.mrf.mxu0
        %v3107 = vadd.f32 0.0, %v3106
        %3108 = vmatmul.bf16.gmra.mxu0 %v1857
        %v3109 = vpop.f32.mrf.mxu0
        %v3110 = vadd.f32 0.0, %v3109
        %v3111 = vpop.f32.mrf.mxu0
        %v3112 = vadd.f32 0.0, %v3111
        %3113 = vmatmul.bf16.gmra.mxu0 %v1859
        %v3114 = vpop.f32.mrf.mxu0
        %v3115 = vadd.f32 0.0, %v3114
        %v3116 = vpop.f32.mrf.mxu0
        %v3117 = vadd.f32 0.0, %v3116
        %3118 = vmatmul.bf16.gmra.mxu0 %v1861
        %v3119 = vpop.f32.mrf.mxu0
        %v3120 = vadd.f32 0.0, %v3119
        %v3121 = vpop.f32.mrf.mxu0
        %v3122 = vadd.f32 0.0, %v3121
        %3123 = vmatmul.bf16.gmra.mxu0 %v1863
        %v3124 = vpop.f32.mrf.mxu0
        %v3125 = vadd.f32 0.0, %v3124
        %v3126 = vpop.f32.mrf.mxu0
        %v3127 = vadd.f32 0.0, %v3126
        %3128 = vmatmul.bf16.gmra.mxu0 %v1865
        %v3129 = vpop.f32.mrf.mxu0
        %v3130 = vadd.f32 0.0, %v3129
        %v3131 = vpop.f32.mrf.mxu0
        %v3132 = vadd.f32 0.0, %v3131
        %3133 = vdwg.mxu0
        %3134 = vmatpush.bf16.msra.mxu0 0
        %3135 = vmatpush.bf16.msra.mxu0 %v2827
        %3136 = vmatpush.bf16.msra.mxu0 %v2823
        %3137 = vmatpush.bf16.msra.mxu0 %v2819
        %3138 = vmatpush.bf16.msra.mxu0 %v2815
        %3139 = vmatpush.bf16.msra.mxu0 %v2811
        %3140 = vmatpush.bf16.msra.mxu0 %v2807
        %3141 = vmatpush.bf16.msra.mxu0 %v2803
        %3142 = vmatmul.bf16.gmra.mxu0 %v2177
        %v3143 = vpop.f32.mrf.mxu0
        %v3144 = vadd.f32 %v3095, %v3143
        %v3145 = vpop.f32.mrf.mxu0
        %v3146 = vadd.f32 %v3097, %v3145
        %3147 = vmatmul.bf16.gmra.mxu0 %v2180
        %v3148 = vpop.f32.mrf.mxu0
        %v3149 = vadd.f32 %v3100, %v3148
        %v3150 = vpop.f32.mrf.mxu0
        %v3151 = vadd.f32 %v3102, %v3150
        %3152 = vmatmul.bf16.gmra.mxu0 %v2183
        %v3153 = vpop.f32.mrf.mxu0
        %v3154 = vadd.f32 %v3105, %v3153
        %v3155 = vpop.f32.mrf.mxu0
        %v3156 = vadd.f32 %v3107, %v3155
        %3157 = vmatmul.bf16.gmra.mxu0 %v2186
        %v3158 = vpop.f32.mrf.mxu0
        %v3159 = vadd.f32 %v3110, %v3158
        %v3160 = vpop.f32.mrf.mxu0
        %v3161 = vadd.f32 %v3112, %v3160
        %3162 = vmatmul.bf16.gmra.mxu0 %v2189
        %v3163 = vpop.f32.mrf.mxu0
        %v3164 = vadd.f32 %v3115, %v3163
        %v3165 = vpop.f32.mrf.mxu0
        %v3166 = vadd.f32 %v3117, %v3165
        %3167 = vmatmul.bf16.gmra.mxu0 %v2192
        %v3168 = vpop.f32.mrf.mxu0
        %v3169 = vadd.f32 %v3120, %v3168
        %v3170 = vpop.f32.mrf.mxu0
        %v3171 = vadd.f32 %v3122, %v3170
        %3172 = vmatmul.bf16.gmra.mxu0 %v2195
        %v3173 = vpop.f32.mrf.mxu0
        %v3174 = vadd.f32 %v3125, %v3173
        %v3175 = vpop.f32.mrf.mxu0
        %v3176 = vadd.f32 %v3127, %v3175
        %3177 = vmatmul.bf16.gmra.mxu0 %v2198
        %v3178 = vpop.f32.mrf.mxu0
        %v3179 = vadd.f32 %v3130, %v3178
        %v3180 = vpop.f32.mrf.mxu0
        %v3181 = vadd.f32 %v3132, %v3180
        %3182 = vdwg.mxu0
        %3183 = vmatpush.bf16.msra.mxu0 %v2800
        %3184 = vmatpush.bf16.msra.mxu0 %v2796
        %3185 = vmatpush.bf16.msra.mxu0 %v2792
        %3186 = vmatpush.bf16.msra.mxu0 %v2788
        %3187 = vmatpush.bf16.msra.mxu0 %v2784
        %3188 = vmatpush.bf16.msra.mxu0 %v2780
        %3189 = vmatpush.bf16.msra.mxu0 %v2776
        %3190 = vmatpush.bf16.msra.mxu0 %v2772
        %3191 = vmatmul.bf16.gmra.mxu0 %v1851
        %v3192 = vpop.f32.mrf.mxu0
        %v3193 = vadd.f32 0.0, %v3192
        %v3194 = vpop.f32.mrf.mxu0
        %v3195 = vadd.f32 0.0, %v3194
        %3196 = vmatmul.bf16.gmra.mxu0 %v1853
        %v3197 = vpop.f32.mrf.mxu0
        %v3198 = vadd.f32 0.0, %v3197
        %v3199 = vpop.f32.mrf.mxu0
        %v3200 = vadd.f32 0.0, %v3199
        %3201 = vmatmul.bf16.gmra.mxu0 %v1855
        %v3202 = vpop.f32.mrf.mxu0
        %v3203 = vadd.f32 0.0, %v3202
        %v3204 = vpop.f32.mrf.mxu0
        %v3205 = vadd.f32 0.0, %v3204
        %3206 = vmatmul.bf16.gmra.mxu0 %v1857
        %v3207 = vpop.f32.mrf.mxu0
        %v3208 = vadd.f32 0.0, %v3207
        %v3209 = vpop.f32.mrf.mxu0
        %v3210 = vadd.f32 0.0, %v3209
        %3211 = vmatmul.bf16.gmra.mxu0 %v1859
        %v3212 = vpop.f32.mrf.mxu0
        %v3213 = vadd.f32 0.0, %v3212
        %v3214 = vpop.f32.mrf.mxu0
        %v3215 = vadd.f32 0.0, %v3214
        %3216 = vmatmul.bf16.gmra.mxu0 %v1861
        %v3217 = vpop.f32.mrf.mxu0
        %v3218 = vadd.f32 0.0, %v3217
        %v3219 = vpop.f32.mrf.mxu0
        %v3220 = vadd.f32 0.0, %v3219
        %3221 = vmatmul.bf16.gmra.mxu0 %v1863
        %v3222 = vpop.f32.mrf.mxu0
        %v3223 = vadd.f32 0.0, %v3222
        %v3224 = vpop.f32.mrf.mxu0
        %v3225 = vadd.f32 0.0, %v3224
        %3226 = vmatmul.bf16.gmra.mxu0 %v1865
        %v3227 = vpop.f32.mrf.mxu0
        %v3228 = vadd.f32 0.0, %v3227
        %v3229 = vpop.f32.mrf.mxu0
        %v3230 = vadd.f32 0.0, %v3229
        %3231 = vdwg.mxu0
        %3232 = vmatpush.bf16.msra.mxu0 0
        %3233 = vmatpush.bf16.msra.mxu0 %v2828
        %3234 = vmatpush.bf16.msra.mxu0 %v2824
        %3235 = vmatpush.bf16.msra.mxu0 %v2820
        %3236 = vmatpush.bf16.msra.mxu0 %v2816
        %3237 = vmatpush.bf16.msra.mxu0 %v2812
        %3238 = vmatpush.bf16.msra.mxu0 %v2808
        %3239 = vmatpush.bf16.msra.mxu0 %v2804
        %3240 = vmatmul.bf16.gmra.mxu0 %v2177
        %v3241 = vpop.f32.mrf.mxu0
        %v3242 = vadd.f32 %v3193, %v3241
        %v3243 = vpop.f32.mrf.mxu0
        %v3244 = vadd.f32 %v3195, %v3243
        %3245 = vmatmul.bf16.gmra.mxu0 %v2180
        %v3246 = vpop.f32.mrf.mxu0
        %v3247 = vadd.f32 %v3198, %v3246
        %v3248 = vpop.f32.mrf.mxu0
        %v3249 = vadd.f32 %v3200, %v3248
        %3250 = vmatmul.bf16.gmra.mxu0 %v2183
        %v3251 = vpop.f32.mrf.mxu0
        %v3252 = vadd.f32 %v3203, %v3251
        %v3253 = vpop.f32.mrf.mxu0
        %v3254 = vadd.f32 %v3205, %v3253
        %3255 = vmatmul.bf16.gmra.mxu0 %v2186
        %v3256 = vpop.f32.mrf.mxu0
        %v3257 = vadd.f32 %v3208, %v3256
        %v3258 = vpop.f32.mrf.mxu0
        %v3259 = vadd.f32 %v3210, %v3258
        %3260 = vmatmul.bf16.gmra.mxu0 %v2189
        %v3261 = vpop.f32.mrf.mxu0
        %v3262 = vadd.f32 %v3213, %v3261
        %v3263 = vpop.f32.mrf.mxu0
        %v3264 = vadd.f32 %v3215, %v3263
        %3265 = vmatmul.bf16.gmra.mxu0 %v2192
        %v3266 = vpop.f32.mrf.mxu0
        %v3267 = vadd.f32 %v3218, %v3266
        %v3268 = vpop.f32.mrf.mxu0
        %v3269 = vadd.f32 %v3220, %v3268
        %3270 = vmatmul.bf16.gmra.mxu0 %v2195
        %v3271 = vpop.f32.mrf.mxu0
        %v3272 = vadd.f32 %v3223, %v3271
        %v3273 = vpop.f32.mrf.mxu0
        %v3274 = vadd.f32 %v3225, %v3273
        %3275 = vmatmul.bf16.gmra.mxu0 %v2198
        %v3276 = vpop.f32.mrf.mxu0
        %v3277 = vadd.f32 %v3228, %v3276
        %v3278 = vpop.f32.mrf.mxu0
        %v3279 = vadd.f32 %v3230, %v3278
        %3280 = vdwg.mxu0
        %v3345 = vrot.slane %v2948, 1
        %v3346 = vrot.slane %v2950, 1
        %v3347 = vsel %vm656, %v3345, %v3346
        %v3348 = vrot.slane %v3046, 1
        %v3349 = vrot.slane %v3048, 1
        %v3350 = vsel %vm656, %v3348, %v3349
        %v3351 = vrot.slane %v3144, 1
        %v3352 = vrot.slane %v3146, 1
        %v3353 = vsel %vm656, %v3351, %v3352
        %v3354 = vrot.slane %v3242, 1
        %v3355 = vrot.slane %v3244, 1
        %v3356 = vsel %vm656, %v3354, %v3355
        %v3357 = vrot.slane %v2953, 1
        %v3358 = vrot.slane %v2955, 1
        %v3359 = vsel %vm656, %v3357, %v3358
        %v3360 = vrot.slane %v3051, 1
        %v3361 = vrot.slane %v3053, 1
        %v3362 = vsel %vm656, %v3360, %v3361
        %v3363 = vrot.slane %v3149, 1
        %v3364 = vrot.slane %v3151, 1
        %v3365 = vsel %vm656, %v3363, %v3364
        %v3366 = vrot.slane %v3247, 1
        %v3367 = vrot.slane %v3249, 1
        %v3368 = vsel %vm656, %v3366, %v3367
        %v3369 = vrot.slane %v2958, 1
        %v3370 = vrot.slane %v2960, 1
        %v3371 = vsel %vm656, %v3369, %v3370
        %v3372 = vrot.slane %v3056, 1
        %v3373 = vrot.slane %v3058, 1
        %v3374 = vsel %vm656, %v3372, %v3373
        %v3375 = vrot.slane %v3154, 1
        %v3376 = vrot.slane %v3156, 1
        %v3377 = vsel %vm656, %v3375, %v3376
        %v3378 = vrot.slane %v3252, 1
        %v3379 = vrot.slane %v3254, 1
        %v3380 = vsel %vm656, %v3378, %v3379
        %v3381 = vrot.slane %v2963, 1
        %v3382 = vrot.slane %v2965, 1
        %v3383 = vsel %vm656, %v3381, %v3382
        %v3384 = vrot.slane %v3061, 1
        %v3385 = vrot.slane %v3063, 1
        %v3386 = vsel %vm656, %v3384, %v3385
        %v3387 = vrot.slane %v3159, 1
        %v3388 = vrot.slane %v3161, 1
        %v3389 = vsel %vm656, %v3387, %v3388
        %v3390 = vrot.slane %v3257, 1
        %v3391 = vrot.slane %v3259, 1
        %v3392 = vsel %vm656, %v3390, %v3391
        %v3393 = vrot.slane %v2968, 1
        %v3394 = vrot.slane %v2970, 1
        %v3395 = vsel %vm656, %v3393, %v3394
        %v3396 = vrot.slane %v3066, 1
        %v3397 = vrot.slane %v3068, 1
        %v3398 = vsel %vm656, %v3396, %v3397
        %v3399 = vrot.slane %v3164, 1
        %v3400 = vrot.slane %v3166, 1
        %v3401 = vsel %vm656, %v3399, %v3400
        %v3402 = vrot.slane %v3262, 1
        %v3403 = vrot.slane %v3264, 1
        %v3404 = vsel %vm656, %v3402, %v3403
        %v3405 = vrot.slane %v2973, 1
        %v3406 = vrot.slane %v2975, 1
        %v3407 = vsel %vm656, %v3405, %v3406
        %v3408 = vrot.slane %v3071, 1
        %v3409 = vrot.slane %v3073, 1
        %v3410 = vsel %vm656, %v3408, %v3409
        %v3411 = vrot.slane %v3169, 1
        %v3412 = vrot.slane %v3171, 1
        %v3413 = vsel %vm656, %v3411, %v3412
        %v3414 = vrot.slane %v3267, 1
        %v3415 = vrot.slane %v3269, 1
        %v3416 = vsel %vm656, %v3414, %v3415
        %v3417 = vrot.slane %v2978, 1
        %v3418 = vrot.slane %v2980, 1
        %v3419 = vsel %vm656, %v3417, %v3418
        %v3420 = vrot.slane %v3076, 1
        %v3421 = vrot.slane %v3078, 1
        %v3422 = vsel %vm656, %v3420, %v3421
        %v3423 = vrot.slane %v3174, 1
        %v3424 = vrot.slane %v3176, 1
        %v3425 = vsel %vm656, %v3423, %v3424
        %v3426 = vrot.slane %v3272, 1
        %v3427 = vrot.slane %v3274, 1
        %v3428 = vsel %vm656, %v3426, %v3427
        %v3429 = vrot.slane %v2983, 1
        %v3430 = vrot.slane %v2985, 1
        %v3431 = vsel %vm656, %v3429, %v3430
        %v3432 = vrot.slane %v3081, 1
        %v3433 = vrot.slane %v3083, 1
        %v3434 = vsel %vm656, %v3432, %v3433
        %v3435 = vrot.slane %v3179, 1
        %v3436 = vrot.slane %v3181, 1
        %v3437 = vsel %vm656, %v3435, %v3436
        %v3438 = vrot.slane %v3277, 1
        %v3439 = vrot.slane %v3279, 1
        %v3440 = vsel %vm656, %v3438, %v3439
        %v3473 = vadd.f32 %v2251, %v3347
        %v3474 = vadd.f32 %v2333, %v3350
        %v3475 = vadd.f32 %v2415, %v3353
        %v3476 = vadd.f32 %v2497, %v3356
        %v3477 = vadd.f32 %v2255, %v3359
        %v3478 = vadd.f32 %v2337, %v3362
        %v3479 = vadd.f32 %v2419, %v3365
        %v3480 = vadd.f32 %v2501, %v3368
        %v3481 = vadd.f32 %v2259, %v3371
        %v3482 = vadd.f32 %v2341, %v3374
        %v3483 = vadd.f32 %v2423, %v3377
        %v3484 = vadd.f32 %v2505, %v3380
        %v3485 = vadd.f32 %v2263, %v3383
        %v3486 = vadd.f32 %v2345, %v3386
        %v3487 = vadd.f32 %v2427, %v3389
        %v3488 = vadd.f32 %v2509, %v3392
        %v3489 = vadd.f32 %v2267, %v3395
        %v3490 = vadd.f32 %v2349, %v3398
        %v3491 = vadd.f32 %v2431, %v3401
        %v3492 = vadd.f32 %v2513, %v3404
        %v3493 = vadd.f32 %v2271, %v3407
        %v3494 = vadd.f32 %v2353, %v3410
        %v3495 = vadd.f32 %v2435, %v3413
        %v3496 = vadd.f32 %v2517, %v3416
        %v3497 = vadd.f32 %v2275, %v3419
        %v3498 = vadd.f32 %v2357, %v3422
        %v3499 = vadd.f32 %v2439, %v3425
        %v3500 = vadd.f32 %v2521, %v3428
        %v3501 = vadd.f32 %v2279, %v3431
        %v3502 = vadd.f32 %v2361, %v3434
        %v3503 = vadd.f32 %v2443, %v3437
        %v3504 = vadd.f32 %v2525, %v3440
        %s3505 = scalar_lea.vmem [#allocation8], 960
        %v3506 = vld [vmem:[%s3505] sm:$0xff]
        %v3507 = vld [vmem:[%s3505 + $0x8] sm:$0xff]
        %v3508 = vld [vmem:[%s3505 + $0x10] sm:$0xff]
        %v3509 = vld [vmem:[%s3505 + $0x18] sm:$0xff]
        %v3510 = vld [vmem:[%s3505 + $0x20] sm:$0xff]
        %v3511 = vld [vmem:[%s3505 + $0x28] sm:$0xff]
        %v3512 = vld [vmem:[%s3505 + $0x30] sm:$0xff]
        %v3513 = vld [vmem:[%s3505 + $0x38] sm:$0xff]
        %v3514 = vld [vmem:[%s3505 + $0x40] sm:$0xff]
        %v3515 = vld [vmem:[%s3505 + $0x48] sm:$0xff]
        %v3516 = vld [vmem:[%s3505 + $0x50] sm:$0xff]
        %v3517 = vld [vmem:[%s3505 + $0x58] sm:$0xff]
        %v3518 = vld [vmem:[%s3505 + $0x60] sm:$0xff]
        %v3519 = vld [vmem:[%s3505 + $0x68] sm:$0xff]
        %v3520 = vld [vmem:[%s3505 + $0x70] sm:$0xff]
        %v3521 = vld [vmem:[%s3505 + $0x78] sm:$0xff]
        %v3522 = vld [vmem:[%s3505 + $0x80] sm:$0xff]
        %v3523 = vld [vmem:[%s3505 + $0x88] sm:$0xff]
        %v3524 = vld [vmem:[%s3505 + $0x90] sm:$0xff]
        %v3525 = vld [vmem:[%s3505 + $0x98] sm:$0xff]
        %v3526 = vld [vmem:[%s3505 + $0xa0] sm:$0xff]
        %v3527 = vld [vmem:[%s3505 + $0xa8] sm:$0xff]
        %v3528 = vld [vmem:[%s3505 + $0xb0] sm:$0xff]
        %v3529 = vld [vmem:[%s3505 + $0xb8] sm:$0xff]
        %v3530 = vld [vmem:[%s3505 + $0xc0] sm:$0xff]
        %v3531 = vld [vmem:[%s3505 + $0xc8] sm:$0xff]
        %v3532 = vld [vmem:[%s3505 + $0xd0] sm:$0xff]
        %v3533 = vld [vmem:[%s3505 + $0xd8] sm:$0xff]
        %v3534 = vld [vmem:[%s3505 + $0xe0] sm:$0xff]
        %v3535 = vld [vmem:[%s3505 + $0xe8] sm:$0xff]
        %v3536 = vld [vmem:[%s3505 + $0xf0] sm:$0xff]
        %v3537 = vld [vmem:[%s3505 + $0xf8] sm:$0xff]
        %v3538 = vld [vmem:[%s3505 + $0x100] sm:$0xff]
        %v3539 = vld [vmem:[%s3505 + $0x108] sm:$0xff]
        %v3540 = vld [vmem:[%s3505 + $0x110] sm:$0xff]
        %v3541 = vld [vmem:[%s3505 + $0x118] sm:$0xff]
        %v3542 = vld [vmem:[%s3505 + $0x120] sm:$0xff]
        %v3543 = vld [vmem:[%s3505 + $0x128] sm:$0xff]
        %v3544 = vld [vmem:[%s3505 + $0x130] sm:$0xff]
        %v3545 = vld [vmem:[%s3505 + $0x138] sm:$0xff]
        %v3546 = vld [vmem:[%s3505 + $0x140] sm:$0xff]
        %v3547 = vld [vmem:[%s3505 + $0x148] sm:$0xff]
        %v3548 = vld [vmem:[%s3505 + $0x150] sm:$0xff]
        %v3549 = vld [vmem:[%s3505 + $0x158] sm:$0xff]
        %v3550 = vld [vmem:[%s3505 + $0x160] sm:$0xff]
        %v3551 = vld [vmem:[%s3505 + $0x168] sm:$0xff]
        %v3552 = vld [vmem:[%s3505 + $0x170] sm:$0xff]
        %v3553 = vld [vmem:[%s3505 + $0x178] sm:$0xff]
        %v3554 = vld [vmem:[%s3505 + $0x180] sm:$0xff]
        %v3555 = vld [vmem:[%s3505 + $0x188] sm:$0xff]
        %v3556 = vld [vmem:[%s3505 + $0x190] sm:$0xff]
        %v3557 = vld [vmem:[%s3505 + $0x198] sm:$0xff]
        %v3558 = vld [vmem:[%s3505 + $0x1a0] sm:$0xff]
        %v3559 = vld [vmem:[%s3505 + $0x1a8] sm:$0xff]
        %v3560 = vld [vmem:[%s3505 + $0x1b0] sm:$0xff]
        %v3561 = vld [vmem:[%s3505 + $0x1b8] sm:$0xff]
        %v3562 = vld [vmem:[%s3505 + $0x1c0] sm:$0xff]
        %v3563 = vld [vmem:[%s3505 + $0x1c8] sm:$0xff]
        %v3564 = vld [vmem:[%s3505 + $0x1d0] sm:$0xff]
        %v3565 = vld [vmem:[%s3505 + $0x1d8] sm:$0xff]
        %v3626 = vunpack.c.l.b16 %v3506
        %v3627 = vunpack.c.h.b16 %v3506
        %v3628 = vunpack.c.l.b16 %v3507
        %v3629 = vunpack.c.h.b16 %v3507
        %v3630 = vunpack.c.l.b16 %v3508
        %v3631 = vunpack.c.h.b16 %v3508
        %v3632 = vunpack.c.l.b16 %v3509
        %v3633 = vunpack.c.h.b16 %v3509
        %v3634 = vunpack.c.l.b16 %v3510
        %v3635 = vunpack.c.h.b16 %v3510
        %v3636 = vunpack.c.l.b16 %v3511
        %v3637 = vunpack.c.h.b16 %v3511
        %v3638 = vunpack.c.l.b16 %v3512
        %v3639 = vunpack.c.h.b16 %v3512
        %v3640 = vunpack.c.l.b16 %v3513
        %v3641 = vunpack.c.h.b16 %v3513
        %v3642 = vunpack.c.l.b16 %v3514
        %v3643 = vunpack.c.h.b16 %v3514
        %v3644 = vunpack.c.l.b16 %v3515
        %v3645 = vunpack.c.h.b16 %v3515
        %v3646 = vunpack.c.l.b16 %v3516
        %v3647 = vunpack.c.h.b16 %v3516
        %v3648 = vunpack.c.l.b16 %v3517
        %v3649 = vunpack.c.h.b16 %v3517
        %v3650 = vunpack.c.l.b16 %v3518
        %v3651 = vunpack.c.h.b16 %v3518
        %v3652 = vunpack.c.l.b16 %v3519
        %v3653 = vunpack.c.h.b16 %v3519
        %v3654 = vunpack.c.l.b16 %v3520
        %v3655 = vunpack.c.h.b16 %v3520
        %v3656 = vunpack.c.l.b16 %v3521
        %v3657 = vunpack.c.h.b16 %v3521
        %v3658 = vunpack.c.l.b16 %v3522
        %v3659 = vunpack.c.h.b16 %v3522
        %v3660 = vunpack.c.l.b16 %v3523
        %v3661 = vunpack.c.h.b16 %v3523
        %v3662 = vunpack.c.l.b16 %v3524
        %v3663 = vunpack.c.h.b16 %v3524
        %v3664 = vunpack.c.l.b16 %v3525
        %v3665 = vunpack.c.h.b16 %v3525
        %v3666 = vunpack.c.l.b16 %v3526
        %v3667 = vunpack.c.h.b16 %v3526
        %v3668 = vunpack.c.l.b16 %v3527
        %v3669 = vunpack.c.h.b16 %v3527
        %v3670 = vunpack.c.l.b16 %v3528
        %v3671 = vunpack.c.h.b16 %v3528
        %v3672 = vunpack.c.l.b16 %v3529
        %v3673 = vunpack.c.h.b16 %v3529
        %v3674 = vunpack.c.l.b16 %v3530
        %v3675 = vunpack.c.h.b16 %v3530
        %v3676 = vunpack.c.l.b16 %v3531
        %v3677 = vunpack.c.h.b16 %v3531
        %v3678 = vunpack.c.l.b16 %v3532
        %v3679 = vunpack.c.h.b16 %v3532
        %v3680 = vunpack.c.l.b16 %v3533
        %v3681 = vunpack.c.h.b16 %v3533
        %v3682 = vunpack.c.l.b16 %v3534
        %v3683 = vunpack.c.h.b16 %v3534
        %v3684 = vunpack.c.l.b16 %v3535
        %v3685 = vunpack.c.h.b16 %v3535
        %v3686 = vunpack.c.l.b16 %v3536
        %v3687 = vunpack.c.h.b16 %v3536
        %v3688 = vunpack.c.l.b16 %v3537
        %v3689 = vunpack.c.h.b16 %v3537
        %v3690 = vunpack.c.l.b16 %v3538
        %v3691 = vunpack.c.h.b16 %v3538
        %v3692 = vunpack.c.l.b16 %v3539
        %v3693 = vunpack.c.h.b16 %v3539
        %v3694 = vunpack.c.l.b16 %v3540
        %v3695 = vunpack.c.h.b16 %v3540
        %v3696 = vunpack.c.l.b16 %v3541
        %v3697 = vunpack.c.h.b16 %v3541
        %v3698 = vunpack.c.l.b16 %v3542
        %v3699 = vunpack.c.h.b16 %v3542
        %v3700 = vunpack.c.l.b16 %v3543
        %v3701 = vunpack.c.h.b16 %v3543
        %v3702 = vunpack.c.l.b16 %v3544
        %v3703 = vunpack.c.h.b16 %v3544
        %v3704 = vunpack.c.l.b16 %v3545
        %v3705 = vunpack.c.h.b16 %v3545
        %v3706 = vunpack.c.l.b16 %v3546
        %v3707 = vunpack.c.h.b16 %v3546
        %v3708 = vunpack.c.l.b16 %v3547
        %v3709 = vunpack.c.h.b16 %v3547
        %v3710 = vunpack.c.l.b16 %v3548
        %v3711 = vunpack.c.h.b16 %v3548
        %v3712 = vunpack.c.l.b16 %v3549
        %v3713 = vunpack.c.h.b16 %v3549
        %v3714 = vunpack.c.l.b16 %v3550
        %v3715 = vunpack.c.h.b16 %v3550
        %v3716 = vunpack.c.l.b16 %v3551
        %v3717 = vunpack.c.h.b16 %v3551
        %v3718 = vunpack.c.l.b16 %v3552
        %v3719 = vunpack.c.h.b16 %v3552
        %v3720 = vunpack.c.l.b16 %v3553
        %v3721 = vunpack.c.h.b16 %v3553
        %v3722 = vunpack.c.l.b16 %v3554
        %v3723 = vunpack.c.h.b16 %v3554
        %v3724 = vunpack.c.l.b16 %v3555
        %v3725 = vunpack.c.h.b16 %v3555
        %v3726 = vunpack.c.l.b16 %v3556
        %v3727 = vunpack.c.h.b16 %v3556
        %v3728 = vunpack.c.l.b16 %v3557
        %v3729 = vunpack.c.h.b16 %v3557
        %v3730 = vunpack.c.l.b16 %v3558
        %v3731 = vunpack.c.h.b16 %v3558
        %v3732 = vunpack.c.l.b16 %v3559
        %v3733 = vunpack.c.h.b16 %v3559
        %v3734 = vunpack.c.l.b16 %v3560
        %v3735 = vunpack.c.h.b16 %v3560
        %v3736 = vunpack.c.l.b16 %v3561
        %v3737 = vunpack.c.h.b16 %v3561
        %v3738 = vunpack.c.l.b16 %v3562
        %v3739 = vunpack.c.h.b16 %v3562
        %v3740 = vunpack.c.l.b16 %v3563
        %v3741 = vunpack.c.h.b16 %v3563
        %v3742 = vunpack.c.l.b16 %v3564
        %v3743 = vunpack.c.h.b16 %v3564
        %v3744 = vunpack.c.l.b16 %v3565
        %v3745 = vunpack.c.h.b16 %v3565
        %v3746 = vpack.c.b16 %v3630, %v3626
        %v3747 = vpack.c.b16 %v3631, %v3627
        %v3748 = vpack.c.b16 %v3632, %v3628
        %v3749 = vpack.c.b16 %v3633, %v3629
        %v3750 = vpack.c.b16 %v3638, %v3634
        %v3751 = vpack.c.b16 %v3639, %v3635
        %v3752 = vpack.c.b16 %v3640, %v3636
        %v3753 = vpack.c.b16 %v3641, %v3637
        %v3754 = vpack.c.b16 %v3646, %v3642
        %v3755 = vpack.c.b16 %v3647, %v3643
        %v3756 = vpack.c.b16 %v3648, %v3644
        %v3757 = vpack.c.b16 %v3649, %v3645
        %v3758 = vpack.c.b16 %v3654, %v3650
        %v3759 = vpack.c.b16 %v3655, %v3651
        %v3760 = vpack.c.b16 %v3656, %v3652
        %v3761 = vpack.c.b16 %v3657, %v3653
        %v3762 = vpack.c.b16 %v3662, %v3658
        %v3763 = vpack.c.b16 %v3663, %v3659
        %v3764 = vpack.c.b16 %v3664, %v3660
        %v3765 = vpack.c.b16 %v3665, %v3661
        %v3766 = vpack.c.b16 %v3670, %v3666
        %v3767 = vpack.c.b16 %v3671, %v3667
        %v3768 = vpack.c.b16 %v3672, %v3668
        %v3769 = vpack.c.b16 %v3673, %v3669
        %v3770 = vpack.c.b16 %v3678, %v3674
        %v3771 = vpack.c.b16 %v3679, %v3675
        %v3772 = vpack.c.b16 %v3680, %v3676
        %v3773 = vpack.c.b16 %v3681, %v3677
        %v3774 = vpack.c.b16 %v3686, %v3682
        %v3775 = vpack.c.b16 %v3687, %v3683
        %v3776 = vpack.c.b16 %v3688, %v3684
        %v3777 = vpack.c.b16 %v3689, %v3685
        %v3778 = vpack.c.b16 %v3694, %v3690
        %v3779 = vpack.c.b16 %v3695, %v3691
        %v3780 = vpack.c.b16 %v3696, %v3692
        %v3781 = vpack.c.b16 %v3697, %v3693
        %v3782 = vpack.c.b16 %v3702, %v3698
        %v3783 = vpack.c.b16 %v3703, %v3699
        %v3784 = vpack.c.b16 %v3704, %v3700
        %v3785 = vpack.c.b16 %v3705, %v3701
        %v3786 = vpack.c.b16 %v3710, %v3706
        %v3787 = vpack.c.b16 %v3711, %v3707
        %v3788 = vpack.c.b16 %v3712, %v3708
        %v3789 = vpack.c.b16 %v3713, %v3709
        %v3790 = vpack.c.b16 %v3718, %v3714
        %v3791 = vpack.c.b16 %v3719, %v3715
        %v3792 = vpack.c.b16 %v3720, %v3716
        %v3793 = vpack.c.b16 %v3721, %v3717
        %v3794 = vpack.c.b16 %v3726, %v3722
        %v3795 = vpack.c.b16 %v3727, %v3723
        %v3796 = vpack.c.b16 %v3728, %v3724
        %v3797 = vpack.c.b16 %v3729, %v3725
        %v3798 = vpack.c.b16 %v3734, %v3730
        %v3799 = vpack.c.b16 %v3735, %v3731
        %v3800 = vpack.c.b16 %v3736, %v3732
        %v3801 = vpack.c.b16 %v3737, %v3733
        %v3802 = vpack.c.b16 %v3742, %v3738
        %v3803 = vpack.c.b16 %v3743, %v3739
        %v3804 = vpack.c.b16 %v3744, %v3740
        %v3805 = vpack.c.b16 %v3745, %v3741
        %3866 = vmatpush.bf16.msra.mxu0 %v3774
        %3867 = vmatpush.bf16.msra.mxu0 %v3770
        %3868 = vmatpush.bf16.msra.mxu0 %v3766
        %3869 = vmatpush.bf16.msra.mxu0 %v3762
        %3870 = vmatpush.bf16.msra.mxu0 %v3758
        %3871 = vmatpush.bf16.msra.mxu0 %v3754
        %3872 = vmatpush.bf16.msra.mxu0 %v3750
        %3873 = vmatpush.bf16.msra.mxu0 %v3746
        %3874 = vmatmul.bf16.gmra.mxu0 %v1851
        %v3875 = vpop.f32.mrf.mxu0
        %v3876 = vadd.f32 0.0, %v3875
        %v3877 = vpop.f32.mrf.mxu0
        %v3878 = vadd.f32 0.0, %v3877
        %3879 = vmatmul.bf16.gmra.mxu0 %v1853
        %v3880 = vpop.f32.mrf.mxu0
        %v3881 = vadd.f32 0.0, %v3880
        %v3882 = vpop.f32.mrf.mxu0
        %v3883 = vadd.f32 0.0, %v3882
        %3884 = vmatmul.bf16.gmra.mxu0 %v1855
        %v3885 = vpop.f32.mrf.mxu0
        %v3886 = vadd.f32 0.0, %v3885
        %v3887 = vpop.f32.mrf.mxu0
        %v3888 = vadd.f32 0.0, %v3887
        %3889 = vmatmul.bf16.gmra.mxu0 %v1857
        %v3890 = vpop.f32.mrf.mxu0
        %v3891 = vadd.f32 0.0, %v3890
        %v3892 = vpop.f32.mrf.mxu0
        %v3893 = vadd.f32 0.0, %v3892
        %3894 = vmatmul.bf16.gmra.mxu0 %v1859
        %v3895 = vpop.f32.mrf.mxu0
        %v3896 = vadd.f32 0.0, %v3895
        %v3897 = vpop.f32.mrf.mxu0
        %v3898 = vadd.f32 0.0, %v3897
        %3899 = vmatmul.bf16.gmra.mxu0 %v1861
        %v3900 = vpop.f32.mrf.mxu0
        %v3901 = vadd.f32 0.0, %v3900
        %v3902 = vpop.f32.mrf.mxu0
        %v3903 = vadd.f32 0.0, %v3902
        %3904 = vmatmul.bf16.gmra.mxu0 %v1863
        %v3905 = vpop.f32.mrf.mxu0
        %v3906 = vadd.f32 0.0, %v3905
        %v3907 = vpop.f32.mrf.mxu0
        %v3908 = vadd.f32 0.0, %v3907
        %3909 = vmatmul.bf16.gmra.mxu0 %v1865
        %v3910 = vpop.f32.mrf.mxu0
        %v3911 = vadd.f32 0.0, %v3910
        %v3912 = vpop.f32.mrf.mxu0
        %v3913 = vadd.f32 0.0, %v3912
        %3914 = vdwg.mxu0
        %3915 = vmatpush.bf16.msra.mxu0 0
        %3916 = vmatpush.bf16.msra.mxu0 %v3802
        %3917 = vmatpush.bf16.msra.mxu0 %v3798
        %3918 = vmatpush.bf16.msra.mxu0 %v3794
        %3919 = vmatpush.bf16.msra.mxu0 %v3790
        %3920 = vmatpush.bf16.msra.mxu0 %v3786
        %3921 = vmatpush.bf16.msra.mxu0 %v3782
        %3922 = vmatpush.bf16.msra.mxu0 %v3778
        %3923 = vmatmul.bf16.gmra.mxu0 %v2177
        %v3924 = vpop.f32.mrf.mxu0
        %v3925 = vadd.f32 %v3876, %v3924
        %v3926 = vpop.f32.mrf.mxu0
        %v3927 = vadd.f32 %v3878, %v3926
        %3928 = vmatmul.bf16.gmra.mxu0 %v2180
        %v3929 = vpop.f32.mrf.mxu0
        %v3930 = vadd.f32 %v3881, %v3929
        %v3931 = vpop.f32.mrf.mxu0
        %v3932 = vadd.f32 %v3883, %v3931
        %3933 = vmatmul.bf16.gmra.mxu0 %v2183
        %v3934 = vpop.f32.mrf.mxu0
        %v3935 = vadd.f32 %v3886, %v3934
        %v3936 = vpop.f32.mrf.mxu0
        %v3937 = vadd.f32 %v3888, %v3936
        %3938 = vmatmul.bf16.gmra.mxu0 %v2186
        %v3939 = vpop.f32.mrf.mxu0
        %v3940 = vadd.f32 %v3891, %v3939
        %v3941 = vpop.f32.mrf.mxu0
        %v3942 = vadd.f32 %v3893, %v3941
        %3943 = vmatmul.bf16.gmra.mxu0 %v2189
        %v3944 = vpop.f32.mrf.mxu0
        %v3945 = vadd.f32 %v3896, %v3944
        %v3946 = vpop.f32.mrf.mxu0
        %v3947 = vadd.f32 %v3898, %v3946
        %3948 = vmatmul.bf16.gmra.mxu0 %v2192
        %v3949 = vpop.f32.mrf.mxu0
        %v3950 = vadd.f32 %v3901, %v3949
        %v3951 = vpop.f32.mrf.mxu0
        %v3952 = vadd.f32 %v3903, %v3951
        %3953 = vmatmul.bf16.gmra.mxu0 %v2195
        %v3954 = vpop.f32.mrf.mxu0
        %v3955 = vadd.f32 %v3906, %v3954
        %v3956 = vpop.f32.mrf.mxu0
        %v3957 = vadd.f32 %v3908, %v3956
        %3958 = vmatmul.bf16.gmra.mxu0 %v2198
        %v3959 = vpop.f32.mrf.mxu0
        %v3960 = vadd.f32 %v3911, %v3959
        %v3961 = vpop.f32.mrf.mxu0
        %v3962 = vadd.f32 %v3913, %v3961
        %3963 = vdwg.mxu0
        %3964 = vmatpush.bf16.msra.mxu0 %v3775
        %3965 = vmatpush.bf16.msra.mxu0 %v3771
        %3966 = vmatpush.bf16.msra.mxu0 %v3767
        %3967 = vmatpush.bf16.msra.mxu0 %v3763
        %3968 = vmatpush.bf16.msra.mxu0 %v3759
        %3969 = vmatpush.bf16.msra.mxu0 %v3755
        %3970 = vmatpush.bf16.msra.mxu0 %v3751
        %3971 = vmatpush.bf16.msra.mxu0 %v3747
        %3972 = vmatmul.bf16.gmra.mxu0 %v1851
        %v3973 = vpop.f32.mrf.mxu0
        %v3974 = vadd.f32 0.0, %v3973
        %v3975 = vpop.f32.mrf.mxu0
        %v3976 = vadd.f32 0.0, %v3975
        %3977 = vmatmul.bf16.gmra.mxu0 %v1853
        %v3978 = vpop.f32.mrf.mxu0
        %v3979 = vadd.f32 0.0, %v3978
        %v3980 = vpop.f32.mrf.mxu0
        %v3981 = vadd.f32 0.0, %v3980
        %3982 = vmatmul.bf16.gmra.mxu0 %v1855
        %v3983 = vpop.f32.mrf.mxu0
        %v3984 = vadd.f32 0.0, %v3983
        %v3985 = vpop.f32.mrf.mxu0
        %v3986 = vadd.f32 0.0, %v3985
        %3987 = vmatmul.bf16.gmra.mxu0 %v1857
        %v3988 = vpop.f32.mrf.mxu0
        %v3989 = vadd.f32 0.0, %v3988
        %v3990 = vpop.f32.mrf.mxu0
        %v3991 = vadd.f32 0.0, %v3990
        %3992 = vmatmul.bf16.gmra.mxu0 %v1859
        %v3993 = vpop.f32.mrf.mxu0
        %v3994 = vadd.f32 0.0, %v3993
        %v3995 = vpop.f32.mrf.mxu0
        %v3996 = vadd.f32 0.0, %v3995
        %3997 = vmatmul.bf16.gmra.mxu0 %v1861
        %v3998 = vpop.f32.mrf.mxu0
        %v3999 = vadd.f32 0.0, %v3998
        %v4000 = vpop.f32.mrf.mxu0
        %v4001 = vadd.f32 0.0, %v4000
        %4002 = vmatmul.bf16.gmra.mxu0 %v1863
        %v4003 = vpop.f32.mrf.mxu0
        %v4004 = vadd.f32 0.0, %v4003
        %v4005 = vpop.f32.mrf.mxu0
        %v4006 = vadd.f32 0.0, %v4005
        %4007 = vmatmul.bf16.gmra.mxu0 %v1865
        %v4008 = vpop.f32.mrf.mxu0
        %v4009 = vadd.f32 0.0, %v4008
        %v4010 = vpop.f32.mrf.mxu0
        %v4011 = vadd.f32 0.0, %v4010
        %4012 = vdwg.mxu0
        %4013 = vmatpush.bf16.msra.mxu0 0
        %4014 = vmatpush.bf16.msra.mxu0 %v3803
        %4015 = vmatpush.bf16.msra.mxu0 %v3799
        %4016 = vmatpush.bf16.msra.mxu0 %v3795
        %4017 = vmatpush.bf16.msra.mxu0 %v3791
        %4018 = vmatpush.bf16.msra.mxu0 %v3787
        %4019 = vmatpush.bf16.msra.mxu0 %v3783
        %4020 = vmatpush.bf16.msra.mxu0 %v3779
        %4021 = vmatmul.bf16.gmra.mxu0 %v2177
        %v4022 = vpop.f32.mrf.mxu0
        %v4023 = vadd.f32 %v3974, %v4022
        %v4024 = vpop.f32.mrf.mxu0
        %v4025 = vadd.f32 %v3976, %v4024
        %4026 = vmatmul.bf16.gmra.mxu0 %v2180
        %v4027 = vpop.f32.mrf.mxu0
        %v4028 = vadd.f32 %v3979, %v4027
        %v4029 = vpop.f32.mrf.mxu0
        %v4030 = vadd.f32 %v3981, %v4029
        %4031 = vmatmul.bf16.gmra.mxu0 %v2183
        %v4032 = vpop.f32.mrf.mxu0
        %v4033 = vadd.f32 %v3984, %v4032
        %v4034 = vpop.f32.mrf.mxu0
        %v4035 = vadd.f32 %v3986, %v4034
        %4036 = vmatmul.bf16.gmra.mxu0 %v2186
        %v4037 = vpop.f32.mrf.mxu0
        %v4038 = vadd.f32 %v3989, %v4037
        %v4039 = vpop.f32.mrf.mxu0
        %v4040 = vadd.f32 %v3991, %v4039
        %4041 = vmatmul.bf16.gmra.mxu0 %v2189
        %v4042 = vpop.f32.mrf.mxu0
        %v4043 = vadd.f32 %v3994, %v4042
        %v4044 = vpop.f32.mrf.mxu0
        %v4045 = vadd.f32 %v3996, %v4044
        %4046 = vmatmul.bf16.gmra.mxu0 %v2192
        %v4047 = vpop.f32.mrf.mxu0
        %v4048 = vadd.f32 %v3999, %v4047
        %v4049 = vpop.f32.mrf.mxu0
        %v4050 = vadd.f32 %v4001, %v4049
        %4051 = vmatmul.bf16.gmra.mxu0 %v2195
        %v4052 = vpop.f32.mrf.mxu0
        %v4053 = vadd.f32 %v4004, %v4052
        %v4054 = vpop.f32.mrf.mxu0
        %v4055 = vadd.f32 %v4006, %v4054
        %4056 = vmatmul.bf16.gmra.mxu0 %v2198
        %v4057 = vpop.f32.mrf.mxu0
        %v4058 = vadd.f32 %v4009, %v4057
        %v4059 = vpop.f32.mrf.mxu0
        %v4060 = vadd.f32 %v4011, %v4059
        %4061 = vdwg.mxu0
        %4062 = vmatpush.bf16.msra.mxu0 %v3776
        %4063 = vmatpush.bf16.msra.mxu0 %v3772
        %4064 = vmatpush.bf16.msra.mxu0 %v3768
        %4065 = vmatpush.bf16.msra.mxu0 %v3764
        %4066 = vmatpush.bf16.msra.mxu0 %v3760
        %4067 = vmatpush.bf16.msra.mxu0 %v3756
        %4068 = vmatpush.bf16.msra.mxu0 %v3752
        %4069 = vmatpush.bf16.msra.mxu0 %v3748
        %4070 = vmatmul.bf16.gmra.mxu0 %v1851
        %v4071 = vpop.f32.mrf.mxu0
        %v4072 = vadd.f32 0.0, %v4071
        %v4073 = vpop.f32.mrf.mxu0
        %v4074 = vadd.f32 0.0, %v4073
        %4075 = vmatmul.bf16.gmra.mxu0 %v1853
        %v4076 = vpop.f32.mrf.mxu0
        %v4077 = vadd.f32 0.0, %v4076
        %v4078 = vpop.f32.mrf.mxu0
        %v4079 = vadd.f32 0.0, %v4078
        %4080 = vmatmul.bf16.gmra.mxu0 %v1855
        %v4081 = vpop.f32.mrf.mxu0
        %v4082 = vadd.f32 0.0, %v4081
        %v4083 = vpop.f32.mrf.mxu0
        %v4084 = vadd.f32 0.0, %v4083
        %4085 = vmatmul.bf16.gmra.mxu0 %v1857
        %v4086 = vpop.f32.mrf.mxu0
        %v4087 = vadd.f32 0.0, %v4086
        %v4088 = vpop.f32.mrf.mxu0
        %v4089 = vadd.f32 0.0, %v4088
        %4090 = vmatmul.bf16.gmra.mxu0 %v1859
        %v4091 = vpop.f32.mrf.mxu0
        %v4092 = vadd.f32 0.0, %v4091
        %v4093 = vpop.f32.mrf.mxu0
        %v4094 = vadd.f32 0.0, %v4093
        %4095 = vmatmul.bf16.gmra.mxu0 %v1861
        %v4096 = vpop.f32.mrf.mxu0
        %v4097 = vadd.f32 0.0, %v4096
        %v4098 = vpop.f32.mrf.mxu0
        %v4099 = vadd.f32 0.0, %v4098
        %4100 = vmatmul.bf16.gmra.mxu0 %v1863
        %v4101 = vpop.f32.mrf.mxu0
        %v4102 = vadd.f32 0.0, %v4101
        %v4103 = vpop.f32.mrf.mxu0
        %v4104 = vadd.f32 0.0, %v4103
        %4105 = vmatmul.bf16.gmra.mxu0 %v1865
        %v4106 = vpop.f32.mrf.mxu0
        %v4107 = vadd.f32 0.0, %v4106
        %v4108 = vpop.f32.mrf.mxu0
        %v4109 = vadd.f32 0.0, %v4108
        %4110 = vdwg.mxu0
        %4111 = vmatpush.bf16.msra.mxu0 0
        %4112 = vmatpush.bf16.msra.mxu0 %v3804
        %4113 = vmatpush.bf16.msra.mxu0 %v3800
        %4114 = vmatpush.bf16.msra.mxu0 %v3796
        %4115 = vmatpush.bf16.msra.mxu0 %v3792
        %4116 = vmatpush.bf16.msra.mxu0 %v3788
        %4117 = vmatpush.bf16.msra.mxu0 %v3784
        %4118 = vmatpush.bf16.msra.mxu0 %v3780
        %4119 = vmatmul.bf16.gmra.mxu0 %v2177
        %v4120 = vpop.f32.mrf.mxu0
        %v4121 = vadd.f32 %v4072, %v4120
        %v4122 = vpop.f32.mrf.mxu0
        %v4123 = vadd.f32 %v4074, %v4122
        %4124 = vmatmul.bf16.gmra.mxu0 %v2180
        %v4125 = vpop.f32.mrf.mxu0
        %v4126 = vadd.f32 %v4077, %v4125
        %v4127 = vpop.f32.mrf.mxu0
        %v4128 = vadd.f32 %v4079, %v4127
        %4129 = vmatmul.bf16.gmra.mxu0 %v2183
        %v4130 = vpop.f32.mrf.mxu0
        %v4131 = vadd.f32 %v4082, %v4130
        %v4132 = vpop.f32.mrf.mxu0
        %v4133 = vadd.f32 %v4084, %v4132
        %4134 = vmatmul.bf16.gmra.mxu0 %v2186
        %v4135 = vpop.f32.mrf.mxu0
        %v4136 = vadd.f32 %v4087, %v4135
        %v4137 = vpop.f32.mrf.mxu0
        %v4138 = vadd.f32 %v4089, %v4137
        %4139 = vmatmul.bf16.gmra.mxu0 %v2189
        %v4140 = vpop.f32.mrf.mxu0
        %v4141 = vadd.f32 %v4092, %v4140
        %v4142 = vpop.f32.mrf.mxu0
        %v4143 = vadd.f32 %v4094, %v4142
        %4144 = vmatmul.bf16.gmra.mxu0 %v2192
        %v4145 = vpop.f32.mrf.mxu0
        %v4146 = vadd.f32 %v4097, %v4145
        %v4147 = vpop.f32.mrf.mxu0
        %v4148 = vadd.f32 %v4099, %v4147
        %4149 = vmatmul.bf16.gmra.mxu0 %v2195
        %v4150 = vpop.f32.mrf.mxu0
        %v4151 = vadd.f32 %v4102, %v4150
        %v4152 = vpop.f32.mrf.mxu0
        %v4153 = vadd.f32 %v4104, %v4152
        %4154 = vmatmul.bf16.gmra.mxu0 %v2198
        %v4155 = vpop.f32.mrf.mxu0
        %v4156 = vadd.f32 %v4107, %v4155
        %v4157 = vpop.f32.mrf.mxu0
        %v4158 = vadd.f32 %v4109, %v4157
        %4159 = vdwg.mxu0
        %4160 = vmatpush.bf16.msra.mxu0 %v3777
        %4161 = vmatpush.bf16.msra.mxu0 %v3773
        %4162 = vmatpush.bf16.msra.mxu0 %v3769
        %4163 = vmatpush.bf16.msra.mxu0 %v3765
        %4164 = vmatpush.bf16.msra.mxu0 %v3761
        %4165 = vmatpush.bf16.msra.mxu0 %v3757
        %4166 = vmatpush.bf16.msra.mxu0 %v3753
        %4167 = vmatpush.bf16.msra.mxu0 %v3749
        %4168 = vmatmul.bf16.gmra.mxu0 %v1851
        %v4169 = vpop.f32.mrf.mxu0
        %v4170 = vadd.f32 0.0, %v4169
        %v4171 = vpop.f32.mrf.mxu0
        %v4172 = vadd.f32 0.0, %v4171
        %4173 = vmatmul.bf16.gmra.mxu0 %v1853
        %v4174 = vpop.f32.mrf.mxu0
        %v4175 = vadd.f32 0.0, %v4174
        %v4176 = vpop.f32.mrf.mxu0
        %v4177 = vadd.f32 0.0, %v4176
        %4178 = vmatmul.bf16.gmra.mxu0 %v1855
        %v4179 = vpop.f32.mrf.mxu0
        %v4180 = vadd.f32 0.0, %v4179
        %v4181 = vpop.f32.mrf.mxu0
        %v4182 = vadd.f32 0.0, %v4181
        %4183 = vmatmul.bf16.gmra.mxu0 %v1857
        %v4184 = vpop.f32.mrf.mxu0
        %v4185 = vadd.f32 0.0, %v4184
        %v4186 = vpop.f32.mrf.mxu0
        %v4187 = vadd.f32 0.0, %v4186
        %4188 = vmatmul.bf16.gmra.mxu0 %v1859
        %v4189 = vpop.f32.mrf.mxu0
        %v4190 = vadd.f32 0.0, %v4189
        %v4191 = vpop.f32.mrf.mxu0
        %v4192 = vadd.f32 0.0, %v4191
        %4193 = vmatmul.bf16.gmra.mxu0 %v1861
        %v4194 = vpop.f32.mrf.mxu0
        %v4195 = vadd.f32 0.0, %v4194
        %v4196 = vpop.f32.mrf.mxu0
        %v4197 = vadd.f32 0.0, %v4196
        %4198 = vmatmul.bf16.gmra.mxu0 %v1863
        %v4199 = vpop.f32.mrf.mxu0
        %v4200 = vadd.f32 0.0, %v4199
        %v4201 = vpop.f32.mrf.mxu0
        %v4202 = vadd.f32 0.0, %v4201
        %4203 = vmatmul.bf16.gmra.mxu0 %v1865
        %v4204 = vpop.f32.mrf.mxu0
        %v4205 = vadd.f32 0.0, %v4204
        %v4206 = vpop.f32.mrf.mxu0
        %v4207 = vadd.f32 0.0, %v4206
        %4208 = vdwg.mxu0
        %4209 = vmatpush.bf16.msra.mxu0 0
        %4210 = vmatpush.bf16.msra.mxu0 %v3805
        %4211 = vmatpush.bf16.msra.mxu0 %v3801
        %4212 = vmatpush.bf16.msra.mxu0 %v3797
        %4213 = vmatpush.bf16.msra.mxu0 %v3793
        %4214 = vmatpush.bf16.msra.mxu0 %v3789
        %4215 = vmatpush.bf16.msra.mxu0 %v3785
        %4216 = vmatpush.bf16.msra.mxu0 %v3781
        %4217 = vmatmul.bf16.gmra.mxu0 %v2177
        %v4218 = vpop.f32.mrf.mxu0
        %v4219 = vadd.f32 %v4170, %v4218
        %v4220 = vpop.f32.mrf.mxu0
        %v4221 = vadd.f32 %v4172, %v4220
        %4222 = vmatmul.bf16.gmra.mxu0 %v2180
        %v4223 = vpop.f32.mrf.mxu0
        %v4224 = vadd.f32 %v4175, %v4223
        %v4225 = vpop.f32.mrf.mxu0
        %v4226 = vadd.f32 %v4177, %v4225
        %4227 = vmatmul.bf16.gmra.mxu0 %v2183
        %v4228 = vpop.f32.mrf.mxu0
        %v4229 = vadd.f32 %v4180, %v4228
        %v4230 = vpop.f32.mrf.mxu0
        %v4231 = vadd.f32 %v4182, %v4230
        %4232 = vmatmul.bf16.gmra.mxu0 %v2186
        %v4233 = vpop.f32.mrf.mxu0
        %v4234 = vadd.f32 %v4185, %v4233
        %v4235 = vpop.f32.mrf.mxu0
        %v4236 = vadd.f32 %v4187, %v4235
        %4237 = vmatmul.bf16.gmra.mxu0 %v2189
        %v4238 = vpop.f32.mrf.mxu0
        %v4239 = vadd.f32 %v4190, %v4238
        %v4240 = vpop.f32.mrf.mxu0
        %v4241 = vadd.f32 %v4192, %v4240
        %4242 = vmatmul.bf16.gmra.mxu0 %v2192
        %v4243 = vpop.f32.mrf.mxu0
        %v4244 = vadd.f32 %v4195, %v4243
        %v4245 = vpop.f32.mrf.mxu0
        %v4246 = vadd.f32 %v4197, %v4245
        %4247 = vmatmul.bf16.gmra.mxu0 %v2195
        %v4248 = vpop.f32.mrf.mxu0
        %v4249 = vadd.f32 %v4200, %v4248
        %v4250 = vpop.f32.mrf.mxu0
        %v4251 = vadd.f32 %v4202, %v4250
        %4252 = vmatmul.bf16.gmra.mxu0 %v2198
        %v4253 = vpop.f32.mrf.mxu0
        %v4254 = vadd.f32 %v4205, %v4253
        %v4255 = vpop.f32.mrf.mxu0
        %v4256 = vadd.f32 %v4207, %v4255
        %4257 = vdwg.mxu0
        %v4322 = vrot.slane %v3925, 2
        %v4323 = vrot.slane %v3927, 2
        %v4324 = vsel %vm936, %v4322, %v4323
        %v4325 = vrot.slane %v4023, 2
        %v4326 = vrot.slane %v4025, 2
        %v4327 = vsel %vm936, %v4325, %v4326
        %v4328 = vrot.slane %v4121, 2
        %v4329 = vrot.slane %v4123, 2
        %v4330 = vsel %vm936, %v4328, %v4329
        %v4331 = vrot.slane %v4219, 2
        %v4332 = vrot.slane %v4221, 2
        %v4333 = vsel %vm936, %v4331, %v4332
        %v4334 = vrot.slane %v3930, 2
        %v4335 = vrot.slane %v3932, 2
        %v4336 = vsel %vm936, %v4334, %v4335
        %v4337 = vrot.slane %v4028, 2
        %v4338 = vrot.slane %v4030, 2
        %v4339 = vsel %vm936, %v4337, %v4338
        %v4340 = vrot.slane %v4126, 2
        %v4341 = vrot.slane %v4128, 2
        %v4342 = vsel %vm936, %v4340, %v4341
        %v4343 = vrot.slane %v4224, 2
        %v4344 = vrot.slane %v4226, 2
        %v4345 = vsel %vm936, %v4343, %v4344
        %v4346 = vrot.slane %v3935, 2
        %v4347 = vrot.slane %v3937, 2
        %v4348 = vsel %vm936, %v4346, %v4347
        %v4349 = vrot.slane %v4033, 2
        %v4350 = vrot.slane %v4035, 2
        %v4351 = vsel %vm936, %v4349, %v4350
        %v4352 = vrot.slane %v4131, 2
        %v4353 = vrot.slane %v4133, 2
        %v4354 = vsel %vm936, %v4352, %v4353
        %v4355 = vrot.slane %v4229, 2
        %v4356 = vrot.slane %v4231, 2
        %v4357 = vsel %vm936, %v4355, %v4356
        %v4358 = vrot.slane %v3940, 2
        %v4359 = vrot.slane %v3942, 2
        %v4360 = vsel %vm936, %v4358, %v4359
        %v4361 = vrot.slane %v4038, 2
        %v4362 = vrot.slane %v4040, 2
        %v4363 = vsel %vm936, %v4361, %v4362
        %v4364 = vrot.slane %v4136, 2
        %v4365 = vrot.slane %v4138, 2
        %v4366 = vsel %vm936, %v4364, %v4365
        %v4367 = vrot.slane %v4234, 2
        %v4368 = vrot.slane %v4236, 2
        %v4369 = vsel %vm936, %v4367, %v4368
        %v4370 = vrot.slane %v3945, 2
        %v4371 = vrot.slane %v3947, 2
        %v4372 = vsel %vm936, %v4370, %v4371
        %v4373 = vrot.slane %v4043, 2
        %v4374 = vrot.slane %v4045, 2
        %v4375 = vsel %vm936, %v4373, %v4374
        %v4376 = vrot.slane %v4141, 2
        %v4377 = vrot.slane %v4143, 2
        %v4378 = vsel %vm936, %v4376, %v4377
        %v4379 = vrot.slane %v4239, 2
        %v4380 = vrot.slane %v4241, 2
        %v4381 = vsel %vm936, %v4379, %v4380
        %v4382 = vrot.slane %v3950, 2
        %v4383 = vrot.slane %v3952, 2
        %v4384 = vsel %vm936, %v4382, %v4383
        %v4385 = vrot.slane %v4048, 2
        %v4386 = vrot.slane %v4050, 2
        %v4387 = vsel %vm936, %v4385, %v4386
        %v4388 = vrot.slane %v4146, 2
        %v4389 = vrot.slane %v4148, 2
        %v4390 = vsel %vm936, %v4388, %v4389
        %v4391 = vrot.slane %v4244, 2
        %v4392 = vrot.slane %v4246, 2
        %v4393 = vsel %vm936, %v4391, %v4392
        %v4394 = vrot.slane %v3955, 2
        %v4395 = vrot.slane %v3957, 2
        %v4396 = vsel %vm936, %v4394, %v4395
        %v4397 = vrot.slane %v4053, 2
        %v4398 = vrot.slane %v4055, 2
        %v4399 = vsel %vm936, %v4397, %v4398
        %v4400 = vrot.slane %v4151, 2
        %v4401 = vrot.slane %v4153, 2
        %v4402 = vsel %vm936, %v4400, %v4401
        %v4403 = vrot.slane %v4249, 2
        %v4404 = vrot.slane %v4251, 2
        %v4405 = vsel %vm936, %v4403, %v4404
        %v4406 = vrot.slane %v3960, 2
        %v4407 = vrot.slane %v3962, 2
        %v4408 = vsel %vm936, %v4406, %v4407
        %v4409 = vrot.slane %v4058, 2
        %v4410 = vrot.slane %v4060, 2
        %v4411 = vsel %vm936, %v4409, %v4410
        %v4412 = vrot.slane %v4156, 2
        %v4413 = vrot.slane %v4158, 2
        %v4414 = vsel %vm936, %v4412, %v4413
        %v4415 = vrot.slane %v4254, 2
        %v4416 = vrot.slane %v4256, 2
        %v4417 = vsel %vm936, %v4415, %v4416
        %v4450 = vadd.f32 %v3473, %v4324
        %v4451 = vadd.f32 %v3474, %v4327
        %v4452 = vadd.f32 %v3475, %v4330
        %v4453 = vadd.f32 %v3476, %v4333
        %v4454 = vadd.f32 %v3477, %v4336
        %v4455 = vadd.f32 %v3478, %v4339
        %v4456 = vadd.f32 %v3479, %v4342
        %v4457 = vadd.f32 %v3480, %v4345
        %v4458 = vadd.f32 %v3481, %v4348
        %v4459 = vadd.f32 %v3482, %v4351
        %v4460 = vadd.f32 %v3483, %v4354
        %v4461 = vadd.f32 %v3484, %v4357
        %v4462 = vadd.f32 %v3485, %v4360
        %v4463 = vadd.f32 %v3486, %v4363
        %v4464 = vadd.f32 %v3487, %v4366
        %v4465 = vadd.f32 %v3488, %v4369
        %v4466 = vadd.f32 %v3489, %v4372
        %v4467 = vadd.f32 %v3490, %v4375
        %v4468 = vadd.f32 %v3491, %v4378
        %v4469 = vadd.f32 %v3492, %v4381
        %v4470 = vadd.f32 %v3493, %v4384
        %v4471 = vadd.f32 %v3494, %v4387
        %v4472 = vadd.f32 %v3495, %v4390
        %v4473 = vadd.f32 %v3496, %v4393
        %v4474 = vadd.f32 %v3497, %v4396
        %v4475 = vadd.f32 %v3498, %v4399
        %v4476 = vadd.f32 %v3499, %v4402
        %v4477 = vadd.f32 %v3500, %v4405
        %v4478 = vadd.f32 %v3501, %v4408
        %v4479 = vadd.f32 %v3502, %v4411
        %v4480 = vadd.f32 %v3503, %v4414
        %v4481 = vadd.f32 %v3504, %v4417
        %s4482 = scalar_lea.vmem [#allocation8], 1440
        %v4483 = vld [vmem:[%s4482] sm:$0xff]
        %v4484 = vld [vmem:[%s4482 + $0x8] sm:$0xff]
        %v4485 = vld [vmem:[%s4482 + $0x10] sm:$0xff]
        %v4486 = vld [vmem:[%s4482 + $0x18] sm:$0xff]
        %v4487 = vld [vmem:[%s4482 + $0x20] sm:$0xff]
        %v4488 = vld [vmem:[%s4482 + $0x28] sm:$0xff]
        %v4489 = vld [vmem:[%s4482 + $0x30] sm:$0xff]
        %v4490 = vld [vmem:[%s4482 + $0x38] sm:$0xff]
        %v4491 = vld [vmem:[%s4482 + $0x40] sm:$0xff]
        %v4492 = vld [vmem:[%s4482 + $0x48] sm:$0xff]
        %v4493 = vld [vmem:[%s4482 + $0x50] sm:$0xff]
        %v4494 = vld [vmem:[%s4482 + $0x58] sm:$0xff]
        %v4495 = vld [vmem:[%s4482 + $0x60] sm:$0xff]
        %v4496 = vld [vmem:[%s4482 + $0x68] sm:$0xff]
        %v4497 = vld [vmem:[%s4482 + $0x70] sm:$0xff]
        %v4498 = vld [vmem:[%s4482 + $0x78] sm:$0xff]
        %v4499 = vld [vmem:[%s4482 + $0x80] sm:$0xff]
        %v4500 = vld [vmem:[%s4482 + $0x88] sm:$0xff]
        %v4501 = vld [vmem:[%s4482 + $0x90] sm:$0xff]
        %v4502 = vld [vmem:[%s4482 + $0x98] sm:$0xff]
        %v4503 = vld [vmem:[%s4482 + $0xa0] sm:$0xff]
        %v4504 = vld [vmem:[%s4482 + $0xa8] sm:$0xff]
        %v4505 = vld [vmem:[%s4482 + $0xb0] sm:$0xff]
        %v4506 = vld [vmem:[%s4482 + $0xb8] sm:$0xff]
        %v4507 = vld [vmem:[%s4482 + $0xc0] sm:$0xff]
        %v4508 = vld [vmem:[%s4482 + $0xc8] sm:$0xff]
        %v4509 = vld [vmem:[%s4482 + $0xd0] sm:$0xff]
        %v4510 = vld [vmem:[%s4482 + $0xd8] sm:$0xff]
        %v4511 = vld [vmem:[%s4482 + $0xe0] sm:$0xff]
        %v4512 = vld [vmem:[%s4482 + $0xe8] sm:$0xff]
        %v4513 = vld [vmem:[%s4482 + $0xf0] sm:$0xff]
        %v4514 = vld [vmem:[%s4482 + $0xf8] sm:$0xff]
        %v4515 = vld [vmem:[%s4482 + $0x100] sm:$0xff]
        %v4516 = vld [vmem:[%s4482 + $0x108] sm:$0xff]
        %v4517 = vld [vmem:[%s4482 + $0x110] sm:$0xff]
        %v4518 = vld [vmem:[%s4482 + $0x118] sm:$0xff]
        %v4519 = vld [vmem:[%s4482 + $0x120] sm:$0xff]
        %v4520 = vld [vmem:[%s4482 + $0x128] sm:$0xff]
        %v4521 = vld [vmem:[%s4482 + $0x130] sm:$0xff]
        %v4522 = vld [vmem:[%s4482 + $0x138] sm:$0xff]
        %v4523 = vld [vmem:[%s4482 + $0x140] sm:$0xff]
        %v4524 = vld [vmem:[%s4482 + $0x148] sm:$0xff]
        %v4525 = vld [vmem:[%s4482 + $0x150] sm:$0xff]
        %v4526 = vld [vmem:[%s4482 + $0x158] sm:$0xff]
        %v4527 = vld [vmem:[%s4482 + $0x160] sm:$0xff]
        %v4528 = vld [vmem:[%s4482 + $0x168] sm:$0xff]
        %v4529 = vld [vmem:[%s4482 + $0x170] sm:$0xff]
        %v4530 = vld [vmem:[%s4482 + $0x178] sm:$0xff]
        %v4531 = vld [vmem:[%s4482 + $0x180] sm:$0xff]
        %v4532 = vld [vmem:[%s4482 + $0x188] sm:$0xff]
        %v4533 = vld [vmem:[%s4482 + $0x190] sm:$0xff]
        %v4534 = vld [vmem:[%s4482 + $0x198] sm:$0xff]
        %v4535 = vld [vmem:[%s4482 + $0x1a0] sm:$0xff]
        %v4536 = vld [vmem:[%s4482 + $0x1a8] sm:$0xff]
        %v4537 = vld [vmem:[%s4482 + $0x1b0] sm:$0xff]
        %v4538 = vld [vmem:[%s4482 + $0x1b8] sm:$0xff]
        %v4539 = vld [vmem:[%s4482 + $0x1c0] sm:$0xff]
        %v4540 = vld [vmem:[%s4482 + $0x1c8] sm:$0xff]
        %v4541 = vld [vmem:[%s4482 + $0x1d0] sm:$0xff]
        %v4542 = vld [vmem:[%s4482 + $0x1d8] sm:$0xff]
        %v4603 = vunpack.c.l.b16 %v4483
        %v4604 = vunpack.c.h.b16 %v4483
        %v4605 = vunpack.c.l.b16 %v4484
        %v4606 = vunpack.c.h.b16 %v4484
        %v4607 = vunpack.c.l.b16 %v4485
        %v4608 = vunpack.c.h.b16 %v4485
        %v4609 = vunpack.c.l.b16 %v4486
        %v4610 = vunpack.c.h.b16 %v4486
        %v4611 = vunpack.c.l.b16 %v4487
        %v4612 = vunpack.c.h.b16 %v4487
        %v4613 = vunpack.c.l.b16 %v4488
        %v4614 = vunpack.c.h.b16 %v4488
        %v4615 = vunpack.c.l.b16 %v4489
        %v4616 = vunpack.c.h.b16 %v4489
        %v4617 = vunpack.c.l.b16 %v4490
        %v4618 = vunpack.c.h.b16 %v4490
        %v4619 = vunpack.c.l.b16 %v4491
        %v4620 = vunpack.c.h.b16 %v4491
        %v4621 = vunpack.c.l.b16 %v4492
        %v4622 = vunpack.c.h.b16 %v4492
        %v4623 = vunpack.c.l.b16 %v4493
        %v4624 = vunpack.c.h.b16 %v4493
        %v4625 = vunpack.c.l.b16 %v4494
        %v4626 = vunpack.c.h.b16 %v4494
        %v4627 = vunpack.c.l.b16 %v4495
        %v4628 = vunpack.c.h.b16 %v4495
        %v4629 = vunpack.c.l.b16 %v4496
        %v4630 = vunpack.c.h.b16 %v4496
        %v4631 = vunpack.c.l.b16 %v4497
        %v4632 = vunpack.c.h.b16 %v4497
        %v4633 = vunpack.c.l.b16 %v4498
        %v4634 = vunpack.c.h.b16 %v4498
        %v4635 = vunpack.c.l.b16 %v4499
        %v4636 = vunpack.c.h.b16 %v4499
        %v4637 = vunpack.c.l.b16 %v4500
        %v4638 = vunpack.c.h.b16 %v4500
        %v4639 = vunpack.c.l.b16 %v4501
        %v4640 = vunpack.c.h.b16 %v4501
        %v4641 = vunpack.c.l.b16 %v4502
        %v4642 = vunpack.c.h.b16 %v4502
        %v4643 = vunpack.c.l.b16 %v4503
        %v4644 = vunpack.c.h.b16 %v4503
        %v4645 = vunpack.c.l.b16 %v4504
        %v4646 = vunpack.c.h.b16 %v4504
        %v4647 = vunpack.c.l.b16 %v4505
        %v4648 = vunpack.c.h.b16 %v4505
        %v4649 = vunpack.c.l.b16 %v4506
        %v4650 = vunpack.c.h.b16 %v4506
        %v4651 = vunpack.c.l.b16 %v4507
        %v4652 = vunpack.c.h.b16 %v4507
        %v4653 = vunpack.c.l.b16 %v4508
        %v4654 = vunpack.c.h.b16 %v4508
        %v4655 = vunpack.c.l.b16 %v4509
        %v4656 = vunpack.c.h.b16 %v4509
        %v4657 = vunpack.c.l.b16 %v4510
        %v4658 = vunpack.c.h.b16 %v4510
        %v4659 = vunpack.c.l.b16 %v4511
        %v4660 = vunpack.c.h.b16 %v4511
        %v4661 = vunpack.c.l.b16 %v4512
        %v4662 = vunpack.c.h.b16 %v4512
        %v4663 = vunpack.c.l.b16 %v4513
        %v4664 = vunpack.c.h.b16 %v4513
        %v4665 = vunpack.c.l.b16 %v4514
        %v4666 = vunpack.c.h.b16 %v4514
        %v4667 = vunpack.c.l.b16 %v4515
        %v4668 = vunpack.c.h.b16 %v4515
        %v4669 = vunpack.c.l.b16 %v4516
        %v4670 = vunpack.c.h.b16 %v4516
        %v4671 = vunpack.c.l.b16 %v4517
        %v4672 = vunpack.c.h.b16 %v4517
        %v4673 = vunpack.c.l.b16 %v4518
        %v4674 = vunpack.c.h.b16 %v4518
        %v4675 = vunpack.c.l.b16 %v4519
        %v4676 = vunpack.c.h.b16 %v4519
        %v4677 = vunpack.c.l.b16 %v4520
        %v4678 = vunpack.c.h.b16 %v4520
        %v4679 = vunpack.c.l.b16 %v4521
        %v4680 = vunpack.c.h.b16 %v4521
        %v4681 = vunpack.c.l.b16 %v4522
        %v4682 = vunpack.c.h.b16 %v4522
        %v4683 = vunpack.c.l.b16 %v4523
        %v4684 = vunpack.c.h.b16 %v4523
        %v4685 = vunpack.c.l.b16 %v4524
        %v4686 = vunpack.c.h.b16 %v4524
        %v4687 = vunpack.c.l.b16 %v4525
        %v4688 = vunpack.c.h.b16 %v4525
        %v4689 = vunpack.c.l.b16 %v4526
        %v4690 = vunpack.c.h.b16 %v4526
        %v4691 = vunpack.c.l.b16 %v4527
        %v4692 = vunpack.c.h.b16 %v4527
        %v4693 = vunpack.c.l.b16 %v4528
        %v4694 = vunpack.c.h.b16 %v4528
        %v4695 = vunpack.c.l.b16 %v4529
        %v4696 = vunpack.c.h.b16 %v4529
        %v4697 = vunpack.c.l.b16 %v4530
        %v4698 = vunpack.c.h.b16 %v4530
        %v4699 = vunpack.c.l.b16 %v4531
        %v4700 = vunpack.c.h.b16 %v4531
        %v4701 = vunpack.c.l.b16 %v4532
        %v4702 = vunpack.c.h.b16 %v4532
        %v4703 = vunpack.c.l.b16 %v4533
        %v4704 = vunpack.c.h.b16 %v4533
        %v4705 = vunpack.c.l.b16 %v4534
        %v4706 = vunpack.c.h.b16 %v4534
        %v4707 = vunpack.c.l.b16 %v4535
        %v4708 = vunpack.c.h.b16 %v4535
        %v4709 = vunpack.c.l.b16 %v4536
        %v4710 = vunpack.c.h.b16 %v4536
        %v4711 = vunpack.c.l.b16 %v4537
        %v4712 = vunpack.c.h.b16 %v4537
        %v4713 = vunpack.c.l.b16 %v4538
        %v4714 = vunpack.c.h.b16 %v4538
        %v4715 = vunpack.c.l.b16 %v4539
        %v4716 = vunpack.c.h.b16 %v4539
        %v4717 = vunpack.c.l.b16 %v4540
        %v4718 = vunpack.c.h.b16 %v4540
        %v4719 = vunpack.c.l.b16 %v4541
        %v4720 = vunpack.c.h.b16 %v4541
        %v4721 = vunpack.c.l.b16 %v4542
        %v4722 = vunpack.c.h.b16 %v4542
        %v4723 = vpack.c.b16 %v4607, %v4603
        %v4724 = vpack.c.b16 %v4608, %v4604
        %v4725 = vpack.c.b16 %v4609, %v4605
        %v4726 = vpack.c.b16 %v4610, %v4606
        %v4727 = vpack.c.b16 %v4615, %v4611
        %v4728 = vpack.c.b16 %v4616, %v4612
        %v4729 = vpack.c.b16 %v4617, %v4613
        %v4730 = vpack.c.b16 %v4618, %v4614
        %v4731 = vpack.c.b16 %v4623, %v4619
        %v4732 = vpack.c.b16 %v4624, %v4620
        %v4733 = vpack.c.b16 %v4625, %v4621
        %v4734 = vpack.c.b16 %v4626, %v4622
        %v4735 = vpack.c.b16 %v4631, %v4627
        %v4736 = vpack.c.b16 %v4632, %v4628
        %v4737 = vpack.c.b16 %v4633, %v4629
        %v4738 = vpack.c.b16 %v4634, %v4630
        %v4739 = vpack.c.b16 %v4639, %v4635
        %v4740 = vpack.c.b16 %v4640, %v4636
        %v4741 = vpack.c.b16 %v4641, %v4637
        %v4742 = vpack.c.b16 %v4642, %v4638
        %v4743 = vpack.c.b16 %v4647, %v4643
        %v4744 = vpack.c.b16 %v4648, %v4644
        %v4745 = vpack.c.b16 %v4649, %v4645
        %v4746 = vpack.c.b16 %v4650, %v4646
        %v4747 = vpack.c.b16 %v4655, %v4651
        %v4748 = vpack.c.b16 %v4656, %v4652
        %v4749 = vpack.c.b16 %v4657, %v4653
        %v4750 = vpack.c.b16 %v4658, %v4654
        %v4751 = vpack.c.b16 %v4663, %v4659
        %v4752 = vpack.c.b16 %v4664, %v4660
        %v4753 = vpack.c.b16 %v4665, %v4661
        %v4754 = vpack.c.b16 %v4666, %v4662
        %v4755 = vpack.c.b16 %v4671, %v4667
        %v4756 = vpack.c.b16 %v4672, %v4668
        %v4757 = vpack.c.b16 %v4673, %v4669
        %v4758 = vpack.c.b16 %v4674, %v4670
        %v4759 = vpack.c.b16 %v4679, %v4675
        %v4760 = vpack.c.b16 %v4680, %v4676
        %v4761 = vpack.c.b16 %v4681, %v4677
        %v4762 = vpack.c.b16 %v4682, %v4678
        %v4763 = vpack.c.b16 %v4687, %v4683
        %v4764 = vpack.c.b16 %v4688, %v4684
        %v4765 = vpack.c.b16 %v4689, %v4685
        %v4766 = vpack.c.b16 %v4690, %v4686
        %v4767 = vpack.c.b16 %v4695, %v4691
        %v4768 = vpack.c.b16 %v4696, %v4692
        %v4769 = vpack.c.b16 %v4697, %v4693
        %v4770 = vpack.c.b16 %v4698, %v4694
        %v4771 = vpack.c.b16 %v4703, %v4699
        %v4772 = vpack.c.b16 %v4704, %v4700
        %v4773 = vpack.c.b16 %v4705, %v4701
        %v4774 = vpack.c.b16 %v4706, %v4702
        %v4775 = vpack.c.b16 %v4711, %v4707
        %v4776 = vpack.c.b16 %v4712, %v4708
        %v4777 = vpack.c.b16 %v4713, %v4709
        %v4778 = vpack.c.b16 %v4714, %v4710
        %v4779 = vpack.c.b16 %v4719, %v4715
        %v4780 = vpack.c.b16 %v4720, %v4716
        %v4781 = vpack.c.b16 %v4721, %v4717
        %v4782 = vpack.c.b16 %v4722, %v4718
        %4843 = vmatpush.bf16.msra.mxu0 %v4751
        %4844 = vmatpush.bf16.msra.mxu0 %v4747
        %4845 = vmatpush.bf16.msra.mxu0 %v4743
        %4846 = vmatpush.bf16.msra.mxu0 %v4739
        %4847 = vmatpush.bf16.msra.mxu0 %v4735
        %4848 = vmatpush.bf16.msra.mxu0 %v4731
        %4849 = vmatpush.bf16.msra.mxu0 %v4727
        %4850 = vmatpush.bf16.msra.mxu0 %v4723
        %4851 = vmatmul.bf16.gmra.mxu0 %v1851
        %v4852 = vpop.f32.mrf.mxu0
        %v4853 = vadd.f32 0.0, %v4852
        %v4854 = vpop.f32.mrf.mxu0
        %v4855 = vadd.f32 0.0, %v4854
        %4856 = vmatmul.bf16.gmra.mxu0 %v1853
        %v4857 = vpop.f32.mrf.mxu0
        %v4858 = vadd.f32 0.0, %v4857
        %v4859 = vpop.f32.mrf.mxu0
        %v4860 = vadd.f32 0.0, %v4859
        %4861 = vmatmul.bf16.gmra.mxu0 %v1855
        %v4862 = vpop.f32.mrf.mxu0
        %v4863 = vadd.f32 0.0, %v4862
        %v4864 = vpop.f32.mrf.mxu0
        %v4865 = vadd.f32 0.0, %v4864
        %4866 = vmatmul.bf16.gmra.mxu0 %v1857
        %v4867 = vpop.f32.mrf.mxu0
        %v4868 = vadd.f32 0.0, %v4867
        %v4869 = vpop.f32.mrf.mxu0
        %v4870 = vadd.f32 0.0, %v4869
        %4871 = vmatmul.bf16.gmra.mxu0 %v1859
        %v4872 = vpop.f32.mrf.mxu0
        %v4873 = vadd.f32 0.0, %v4872
        %v4874 = vpop.f32.mrf.mxu0
        %v4875 = vadd.f32 0.0, %v4874
        %4876 = vmatmul.bf16.gmra.mxu0 %v1861
        %v4877 = vpop.f32.mrf.mxu0
        %v4878 = vadd.f32 0.0, %v4877
        %v4879 = vpop.f32.mrf.mxu0
        %v4880 = vadd.f32 0.0, %v4879
        %4881 = vmatmul.bf16.gmra.mxu0 %v1863
        %v4882 = vpop.f32.mrf.mxu0
        %v4883 = vadd.f32 0.0, %v4882
        %v4884 = vpop.f32.mrf.mxu0
        %v4885 = vadd.f32 0.0, %v4884
        %4886 = vmatmul.bf16.gmra.mxu0 %v1865
        %v4887 = vpop.f32.mrf.mxu0
        %v4888 = vadd.f32 0.0, %v4887
        %v4889 = vpop.f32.mrf.mxu0
        %v4890 = vadd.f32 0.0, %v4889
        %4891 = vdwg.mxu0
        %4892 = vmatpush.bf16.msra.mxu0 0
        %4893 = vmatpush.bf16.msra.mxu0 %v4779
        %4894 = vmatpush.bf16.msra.mxu0 %v4775
        %4895 = vmatpush.bf16.msra.mxu0 %v4771
        %4896 = vmatpush.bf16.msra.mxu0 %v4767
        %4897 = vmatpush.bf16.msra.mxu0 %v4763
        %4898 = vmatpush.bf16.msra.mxu0 %v4759
        %4899 = vmatpush.bf16.msra.mxu0 %v4755
        %4900 = vmatmul.bf16.gmra.mxu0 %v2177
        %v4901 = vpop.f32.mrf.mxu0
        %v4902 = vadd.f32 %v4853, %v4901
        %v4903 = vpop.f32.mrf.mxu0
        %v4904 = vadd.f32 %v4855, %v4903
        %4905 = vmatmul.bf16.gmra.mxu0 %v2180
        %v4906 = vpop.f32.mrf.mxu0
        %v4907 = vadd.f32 %v4858, %v4906
        %v4908 = vpop.f32.mrf.mxu0
        %v4909 = vadd.f32 %v4860, %v4908
        %4910 = vmatmul.bf16.gmra.mxu0 %v2183
        %v4911 = vpop.f32.mrf.mxu0
        %v4912 = vadd.f32 %v4863, %v4911
        %v4913 = vpop.f32.mrf.mxu0
        %v4914 = vadd.f32 %v4865, %v4913
        %4915 = vmatmul.bf16.gmra.mxu0 %v2186
        %v4916 = vpop.f32.mrf.mxu0
        %v4917 = vadd.f32 %v4868, %v4916
        %v4918 = vpop.f32.mrf.mxu0
        %v4919 = vadd.f32 %v4870, %v4918
        %4920 = vmatmul.bf16.gmra.mxu0 %v2189
        %v4921 = vpop.f32.mrf.mxu0
        %v4922 = vadd.f32 %v4873, %v4921
        %v4923 = vpop.f32.mrf.mxu0
        %v4924 = vadd.f32 %v4875, %v4923
        %4925 = vmatmul.bf16.gmra.mxu0 %v2192
        %v4926 = vpop.f32.mrf.mxu0
        %v4927 = vadd.f32 %v4878, %v4926
        %v4928 = vpop.f32.mrf.mxu0
        %v4929 = vadd.f32 %v4880, %v4928
        %4930 = vmatmul.bf16.gmra.mxu0 %v2195
        %v4931 = vpop.f32.mrf.mxu0
        %v4932 = vadd.f32 %v4883, %v4931
        %v4933 = vpop.f32.mrf.mxu0
        %v4934 = vadd.f32 %v4885, %v4933
        %4935 = vmatmul.bf16.gmra.mxu0 %v2198
        %v4936 = vpop.f32.mrf.mxu0
        %v4937 = vadd.f32 %v4888, %v4936
        %v4938 = vpop.f32.mrf.mxu0
        %v4939 = vadd.f32 %v4890, %v4938
        %4940 = vdwg.mxu0
        %4941 = vmatpush.bf16.msra.mxu0 %v4752
        %4942 = vmatpush.bf16.msra.mxu0 %v4748
        %4943 = vmatpush.bf16.msra.mxu0 %v4744
        %4944 = vmatpush.bf16.msra.mxu0 %v4740
        %4945 = vmatpush.bf16.msra.mxu0 %v4736
        %4946 = vmatpush.bf16.msra.mxu0 %v4732
        %4947 = vmatpush.bf16.msra.mxu0 %v4728
        %4948 = vmatpush.bf16.msra.mxu0 %v4724
        %4949 = vmatmul.bf16.gmra.mxu0 %v1851
        %v4950 = vpop.f32.mrf.mxu0
        %v4951 = vadd.f32 0.0, %v4950
        %v4952 = vpop.f32.mrf.mxu0
        %v4953 = vadd.f32 0.0, %v4952
        %4954 = vmatmul.bf16.gmra.mxu0 %v1853
        %v4955 = vpop.f32.mrf.mxu0
        %v4956 = vadd.f32 0.0, %v4955
        %v4957 = vpop.f32.mrf.mxu0
        %v4958 = vadd.f32 0.0, %v4957
        %4959 = vmatmul.bf16.gmra.mxu0 %v1855
        %v4960 = vpop.f32.mrf.mxu0
        %v4961 = vadd.f32 0.0, %v4960
        %v4962 = vpop.f32.mrf.mxu0
        %v4963 = vadd.f32 0.0, %v4962
        %4964 = vmatmul.bf16.gmra.mxu0 %v1857
        %v4965 = vpop.f32.mrf.mxu0
        %v4966 = vadd.f32 0.0, %v4965
        %v4967 = vpop.f32.mrf.mxu0
        %v4968 = vadd.f32 0.0, %v4967
        %4969 = vmatmul.bf16.gmra.mxu0 %v1859
        %v4970 = vpop.f32.mrf.mxu0
        %v4971 = vadd.f32 0.0, %v4970
        %v4972 = vpop.f32.mrf.mxu0
        %v4973 = vadd.f32 0.0, %v4972
        %4974 = vmatmul.bf16.gmra.mxu0 %v1861
        %v4975 = vpop.f32.mrf.mxu0
        %v4976 = vadd.f32 0.0, %v4975
        %v4977 = vpop.f32.mrf.mxu0
        %v4978 = vadd.f32 0.0, %v4977
        %4979 = vmatmul.bf16.gmra.mxu0 %v1863
        %v4980 = vpop.f32.mrf.mxu0
        %v4981 = vadd.f32 0.0, %v4980
        %v4982 = vpop.f32.mrf.mxu0
        %v4983 = vadd.f32 0.0, %v4982
        %4984 = vmatmul.bf16.gmra.mxu0 %v1865
        %v4985 = vpop.f32.mrf.mxu0
        %v4986 = vadd.f32 0.0, %v4985
        %v4987 = vpop.f32.mrf.mxu0
        %v4988 = vadd.f32 0.0, %v4987
        %4989 = vdwg.mxu0
        %4990 = vmatpush.bf16.msra.mxu0 0
        %4991 = vmatpush.bf16.msra.mxu0 %v4780
        %4992 = vmatpush.bf16.msra.mxu0 %v4776
        %4993 = vmatpush.bf16.msra.mxu0 %v4772
        %4994 = vmatpush.bf16.msra.mxu0 %v4768
        %4995 = vmatpush.bf16.msra.mxu0 %v4764
        %4996 = vmatpush.bf16.msra.mxu0 %v4760
        %4997 = vmatpush.bf16.msra.mxu0 %v4756
        %4998 = vmatmul.bf16.gmra.mxu0 %v2177
        %v4999 = vpop.f32.mrf.mxu0
        %v5000 = vadd.f32 %v4951, %v4999
        %v5001 = vpop.f32.mrf.mxu0
        %v5002 = vadd.f32 %v4953, %v5001
        %5003 = vmatmul.bf16.gmra.mxu0 %v2180
        %v5004 = vpop.f32.mrf.mxu0
        %v5005 = vadd.f32 %v4956, %v5004
        %v5006 = vpop.f32.mrf.mxu0
        %v5007 = vadd.f32 %v4958, %v5006
        %5008 = vmatmul.bf16.gmra.mxu0 %v2183
        %v5009 = vpop.f32.mrf.mxu0
        %v5010 = vadd.f32 %v4961, %v5009
        %v5011 = vpop.f32.mrf.mxu0
        %v5012 = vadd.f32 %v4963, %v5011
        %5013 = vmatmul.bf16.gmra.mxu0 %v2186
        %v5014 = vpop.f32.mrf.mxu0
        %v5015 = vadd.f32 %v4966, %v5014
        %v5016 = vpop.f32.mrf.mxu0
        %v5017 = vadd.f32 %v4968, %v5016
        %5018 = vmatmul.bf16.gmra.mxu0 %v2189
        %v5019 = vpop.f32.mrf.mxu0
        %v5020 = vadd.f32 %v4971, %v5019
        %v5021 = vpop.f32.mrf.mxu0
        %v5022 = vadd.f32 %v4973, %v5021
        %5023 = vmatmul.bf16.gmra.mxu0 %v2192
        %v5024 = vpop.f32.mrf.mxu0
        %v5025 = vadd.f32 %v4976, %v5024
        %v5026 = vpop.f32.mrf.mxu0
        %v5027 = vadd.f32 %v4978, %v5026
        %5028 = vmatmul.bf16.gmra.mxu0 %v2195
        %v5029 = vpop.f32.mrf.mxu0
        %v5030 = vadd.f32 %v4981, %v5029
        %v5031 = vpop.f32.mrf.mxu0
        %v5032 = vadd.f32 %v4983, %v5031
        %5033 = vmatmul.bf16.gmra.mxu0 %v2198
        %v5034 = vpop.f32.mrf.mxu0
        %v5035 = vadd.f32 %v4986, %v5034
        %v5036 = vpop.f32.mrf.mxu0
        %v5037 = vadd.f32 %v4988, %v5036
        %5038 = vdwg.mxu0
        %5039 = vmatpush.bf16.msra.mxu0 %v4753
        %5040 = vmatpush.bf16.msra.mxu0 %v4749
        %5041 = vmatpush.bf16.msra.mxu0 %v4745
        %5042 = vmatpush.bf16.msra.mxu0 %v4741
        %5043 = vmatpush.bf16.msra.mxu0 %v4737
        %5044 = vmatpush.bf16.msra.mxu0 %v4733
        %5045 = vmatpush.bf16.msra.mxu0 %v4729
        %5046 = vmatpush.bf16.msra.mxu0 %v4725
        %5047 = vmatmul.bf16.gmra.mxu0 %v1851
        %v5048 = vpop.f32.mrf.mxu0
        %v5049 = vadd.f32 0.0, %v5048
        %v5050 = vpop.f32.mrf.mxu0
        %v5051 = vadd.f32 0.0, %v5050
        %5052 = vmatmul.bf16.gmra.mxu0 %v1853
        %v5053 = vpop.f32.mrf.mxu0
        %v5054 = vadd.f32 0.0, %v5053
        %v5055 = vpop.f32.mrf.mxu0
        %v5056 = vadd.f32 0.0, %v5055
        %5057 = vmatmul.bf16.gmra.mxu0 %v1855
        %v5058 = vpop.f32.mrf.mxu0
        %v5059 = vadd.f32 0.0, %v5058
        %v5060 = vpop.f32.mrf.mxu0
        %v5061 = vadd.f32 0.0, %v5060
        %5062 = vmatmul.bf16.gmra.mxu0 %v1857
        %v5063 = vpop.f32.mrf.mxu0
        %v5064 = vadd.f32 0.0, %v5063
        %v5065 = vpop.f32.mrf.mxu0
        %v5066 = vadd.f32 0.0, %v5065
        %5067 = vmatmul.bf16.gmra.mxu0 %v1859
        %v5068 = vpop.f32.mrf.mxu0
        %v5069 = vadd.f32 0.0, %v5068
        %v5070 = vpop.f32.mrf.mxu0
        %v5071 = vadd.f32 0.0, %v5070
        %5072 = vmatmul.bf16.gmra.mxu0 %v1861
        %v5073 = vpop.f32.mrf.mxu0
        %v5074 = vadd.f32 0.0, %v5073
        %v5075 = vpop.f32.mrf.mxu0
        %v5076 = vadd.f32 0.0, %v5075
        %5077 = vmatmul.bf16.gmra.mxu0 %v1863
        %v5078 = vpop.f32.mrf.mxu0
        %v5079 = vadd.f32 0.0, %v5078
        %v5080 = vpop.f32.mrf.mxu0
        %v5081 = vadd.f32 0.0, %v5080
        %5082 = vmatmul.bf16.gmra.mxu0 %v1865
        %v5083 = vpop.f32.mrf.mxu0
        %v5084 = vadd.f32 0.0, %v5083
        %v5085 = vpop.f32.mrf.mxu0
        %v5086 = vadd.f32 0.0, %v5085
        %5087 = vdwg.mxu0
        %5088 = vmatpush.bf16.msra.mxu0 0
        %5089 = vmatpush.bf16.msra.mxu0 %v4781
        %5090 = vmatpush.bf16.msra.mxu0 %v4777
        %5091 = vmatpush.bf16.msra.mxu0 %v4773
        %5092 = vmatpush.bf16.msra.mxu0 %v4769
        %5093 = vmatpush.bf16.msra.mxu0 %v4765
        %5094 = vmatpush.bf16.msra.mxu0 %v4761
        %5095 = vmatpush.bf16.msra.mxu0 %v4757
        %5096 = vmatmul.bf16.gmra.mxu0 %v2177
        %v5097 = vpop.f32.mrf.mxu0
        %v5098 = vadd.f32 %v5049, %v5097
        %v5099 = vpop.f32.mrf.mxu0
        %v5100 = vadd.f32 %v5051, %v5099
        %5101 = vmatmul.bf16.gmra.mxu0 %v2180
        %v5102 = vpop.f32.mrf.mxu0
        %v5103 = vadd.f32 %v5054, %v5102
        %v5104 = vpop.f32.mrf.mxu0
        %v5105 = vadd.f32 %v5056, %v5104
        %5106 = vmatmul.bf16.gmra.mxu0 %v2183
        %v5107 = vpop.f32.mrf.mxu0
        %v5108 = vadd.f32 %v5059, %v5107
        %v5109 = vpop.f32.mrf.mxu0
        %v5110 = vadd.f32 %v5061, %v5109
        %5111 = vmatmul.bf16.gmra.mxu0 %v2186
        %v5112 = vpop.f32.mrf.mxu0
        %v5113 = vadd.f32 %v5064, %v5112
        %v5114 = vpop.f32.mrf.mxu0
        %v5115 = vadd.f32 %v5066, %v5114
        %5116 = vmatmul.bf16.gmra.mxu0 %v2189
        %v5117 = vpop.f32.mrf.mxu0
        %v5118 = vadd.f32 %v5069, %v5117
        %v5119 = vpop.f32.mrf.mxu0
        %v5120 = vadd.f32 %v5071, %v5119
        %5121 = vmatmul.bf16.gmra.mxu0 %v2192
        %v5122 = vpop.f32.mrf.mxu0
        %v5123 = vadd.f32 %v5074, %v5122
        %v5124 = vpop.f32.mrf.mxu0
        %v5125 = vadd.f32 %v5076, %v5124
        %5126 = vmatmul.bf16.gmra.mxu0 %v2195
        %v5127 = vpop.f32.mrf.mxu0
        %v5128 = vadd.f32 %v5079, %v5127
        %v5129 = vpop.f32.mrf.mxu0
        %v5130 = vadd.f32 %v5081, %v5129
        %5131 = vmatmul.bf16.gmra.mxu0 %v2198
        %v5132 = vpop.f32.mrf.mxu0
        %v5133 = vadd.f32 %v5084, %v5132
        %v5134 = vpop.f32.mrf.mxu0
        %v5135 = vadd.f32 %v5086, %v5134
        %5136 = vdwg.mxu0
        %5137 = vmatpush.bf16.msra.mxu0 %v4754
        %5138 = vmatpush.bf16.msra.mxu0 %v4750
        %5139 = vmatpush.bf16.msra.mxu0 %v4746
        %5140 = vmatpush.bf16.msra.mxu0 %v4742
        %5141 = vmatpush.bf16.msra.mxu0 %v4738
        %5142 = vmatpush.bf16.msra.mxu0 %v4734
        %5143 = vmatpush.bf16.msra.mxu0 %v4730
        %5144 = vmatpush.bf16.msra.mxu0 %v4726
        %5145 = vmatmul.bf16.gmra.mxu0 %v1851
        %v5146 = vpop.f32.mrf.mxu0
        %v5147 = vadd.f32 0.0, %v5146
        %v5148 = vpop.f32.mrf.mxu0
        %v5149 = vadd.f32 0.0, %v5148
        %5150 = vmatmul.bf16.gmra.mxu0 %v1853
        %v5151 = vpop.f32.mrf.mxu0
        %v5152 = vadd.f32 0.0, %v5151
        %v5153 = vpop.f32.mrf.mxu0
        %v5154 = vadd.f32 0.0, %v5153
        %5155 = vmatmul.bf16.gmra.mxu0 %v1855
        %v5156 = vpop.f32.mrf.mxu0
        %v5157 = vadd.f32 0.0, %v5156
        %v5158 = vpop.f32.mrf.mxu0
        %v5159 = vadd.f32 0.0, %v5158
        %5160 = vmatmul.bf16.gmra.mxu0 %v1857
        %v5161 = vpop.f32.mrf.mxu0
        %v5162 = vadd.f32 0.0, %v5161
        %v5163 = vpop.f32.mrf.mxu0
        %v5164 = vadd.f32 0.0, %v5163
        %5165 = vmatmul.bf16.gmra.mxu0 %v1859
        %v5166 = vpop.f32.mrf.mxu0
        %v5167 = vadd.f32 0.0, %v5166
        %v5168 = vpop.f32.mrf.mxu0
        %v5169 = vadd.f32 0.0, %v5168
        %5170 = vmatmul.bf16.gmra.mxu0 %v1861
        %v5171 = vpop.f32.mrf.mxu0
        %v5172 = vadd.f32 0.0, %v5171
        %v5173 = vpop.f32.mrf.mxu0
        %v5174 = vadd.f32 0.0, %v5173
        %5175 = vmatmul.bf16.gmra.mxu0 %v1863
        %v5176 = vpop.f32.mrf.mxu0
        %v5177 = vadd.f32 0.0, %v5176
        %v5178 = vpop.f32.mrf.mxu0
        %v5179 = vadd.f32 0.0, %v5178
        %5180 = vmatmul.bf16.gmra.mxu0 %v1865
        %v5181 = vpop.f32.mrf.mxu0
        %v5182 = vadd.f32 0.0, %v5181
        %v5183 = vpop.f32.mrf.mxu0
        %v5184 = vadd.f32 0.0, %v5183
        %5185 = vdwg.mxu0
        %5186 = vmatpush.bf16.msra.mxu0 0
        %5187 = vmatpush.bf16.msra.mxu0 %v4782
        %5188 = vmatpush.bf16.msra.mxu0 %v4778
        %5189 = vmatpush.bf16.msra.mxu0 %v4774
        %5190 = vmatpush.bf16.msra.mxu0 %v4770
        %5191 = vmatpush.bf16.msra.mxu0 %v4766
        %5192 = vmatpush.bf16.msra.mxu0 %v4762
        %5193 = vmatpush.bf16.msra.mxu0 %v4758
        %5194 = vmatmul.bf16.gmra.mxu0 %v2177
        %v5195 = vpop.f32.mrf.mxu0
        %v5196 = vadd.f32 %v5147, %v5195
        %v5197 = vpop.f32.mrf.mxu0
        %v5198 = vadd.f32 %v5149, %v5197
        %5199 = vmatmul.bf16.gmra.mxu0 %v2180
        %v5200 = vpop.f32.mrf.mxu0
        %v5201 = vadd.f32 %v5152, %v5200
        %v5202 = vpop.f32.mrf.mxu0
        %v5203 = vadd.f32 %v5154, %v5202
        %5204 = vmatmul.bf16.gmra.mxu0 %v2183
        %v5205 = vpop.f32.mrf.mxu0
        %v5206 = vadd.f32 %v5157, %v5205
        %v5207 = vpop.f32.mrf.mxu0
        %v5208 = vadd.f32 %v5159, %v5207
        %5209 = vmatmul.bf16.gmra.mxu0 %v2186
        %v5210 = vpop.f32.mrf.mxu0
        %v5211 = vadd.f32 %v5162, %v5210
        %v5212 = vpop.f32.mrf.mxu0
        %v5213 = vadd.f32 %v5164, %v5212
        %5214 = vmatmul.bf16.gmra.mxu0 %v2189
        %v5215 = vpop.f32.mrf.mxu0
        %v5216 = vadd.f32 %v5167, %v5215
        %v5217 = vpop.f32.mrf.mxu0
        %v5218 = vadd.f32 %v5169, %v5217
        %5219 = vmatmul.bf16.gmra.mxu0 %v2192
        %v5220 = vpop.f32.mrf.mxu0
        %v5221 = vadd.f32 %v5172, %v5220
        %v5222 = vpop.f32.mrf.mxu0
        %v5223 = vadd.f32 %v5174, %v5222
        %5224 = vmatmul.bf16.gmra.mxu0 %v2195
        %v5225 = vpop.f32.mrf.mxu0
        %v5226 = vadd.f32 %v5177, %v5225
        %v5227 = vpop.f32.mrf.mxu0
        %v5228 = vadd.f32 %v5179, %v5227
        %5229 = vmatmul.bf16.gmra.mxu0 %v2198
        %v5230 = vpop.f32.mrf.mxu0
        %v5231 = vadd.f32 %v5182, %v5230
        %v5232 = vpop.f32.mrf.mxu0
        %v5233 = vadd.f32 %v5184, %v5232
        %5234 = vdwg.mxu0
        %v5299 = vrot.slane %v4902, 3
        %v5300 = vrot.slane %v4904, 3
        %v5301 = vsel %vm1216, %v5299, %v5300
        %v5302 = vrot.slane %v5000, 3
        %v5303 = vrot.slane %v5002, 3
        %v5304 = vsel %vm1216, %v5302, %v5303
        %v5305 = vrot.slane %v5098, 3
        %v5306 = vrot.slane %v5100, 3
        %v5307 = vsel %vm1216, %v5305, %v5306
        %v5308 = vrot.slane %v5196, 3
        %v5309 = vrot.slane %v5198, 3
        %v5310 = vsel %vm1216, %v5308, %v5309
        %v5311 = vrot.slane %v4907, 3
        %v5312 = vrot.slane %v4909, 3
        %v5313 = vsel %vm1216, %v5311, %v5312
        %v5314 = vrot.slane %v5005, 3
        %v5315 = vrot.slane %v5007, 3
        %v5316 = vsel %vm1216, %v5314, %v5315
        %v5317 = vrot.slane %v5103, 3
        %v5318 = vrot.slane %v5105, 3
        %v5319 = vsel %vm1216, %v5317, %v5318
        %v5320 = vrot.slane %v5201, 3
        %v5321 = vrot.slane %v5203, 3
        %v5322 = vsel %vm1216, %v5320, %v5321
        %v5323 = vrot.slane %v4912, 3
        %v5324 = vrot.slane %v4914, 3
        %v5325 = vsel %vm1216, %v5323, %v5324
        %v5326 = vrot.slane %v5010, 3
        %v5327 = vrot.slane %v5012, 3
        %v5328 = vsel %vm1216, %v5326, %v5327
        %v5329 = vrot.slane %v5108, 3
        %v5330 = vrot.slane %v5110, 3
        %v5331 = vsel %vm1216, %v5329, %v5330
        %v5332 = vrot.slane %v5206, 3
        %v5333 = vrot.slane %v5208, 3
        %v5334 = vsel %vm1216, %v5332, %v5333
        %v5335 = vrot.slane %v4917, 3
        %v5336 = vrot.slane %v4919, 3
        %v5337 = vsel %vm1216, %v5335, %v5336
        %v5338 = vrot.slane %v5015, 3
        %v5339 = vrot.slane %v5017, 3
        %v5340 = vsel %vm1216, %v5338, %v5339
        %v5341 = vrot.slane %v5113, 3
        %v5342 = vrot.slane %v5115, 3
        %v5343 = vsel %vm1216, %v5341, %v5342
        %v5344 = vrot.slane %v5211, 3
        %v5345 = vrot.slane %v5213, 3
        %v5346 = vsel %vm1216, %v5344, %v5345
        %v5347 = vrot.slane %v4922, 3
        %v5348 = vrot.slane %v4924, 3
        %v5349 = vsel %vm1216, %v5347, %v5348
        %v5350 = vrot.slane %v5020, 3
        %v5351 = vrot.slane %v5022, 3
        %v5352 = vsel %vm1216, %v5350, %v5351
        %v5353 = vrot.slane %v5118, 3
        %v5354 = vrot.slane %v5120, 3
        %v5355 = vsel %vm1216, %v5353, %v5354
        %v5356 = vrot.slane %v5216, 3
        %v5357 = vrot.slane %v5218, 3
        %v5358 = vsel %vm1216, %v5356, %v5357
        %v5359 = vrot.slane %v4927, 3
        %v5360 = vrot.slane %v4929, 3
        %v5361 = vsel %vm1216, %v5359, %v5360
        %v5362 = vrot.slane %v5025, 3
        %v5363 = vrot.slane %v5027, 3
        %v5364 = vsel %vm1216, %v5362, %v5363
        %v5365 = vrot.slane %v5123, 3
        %v5366 = vrot.slane %v5125, 3
        %v5367 = vsel %vm1216, %v5365, %v5366
        %v5368 = vrot.slane %v5221, 3
        %v5369 = vrot.slane %v5223, 3
        %v5370 = vsel %vm1216, %v5368, %v5369
        %v5371 = vrot.slane %v4932, 3
        %v5372 = vrot.slane %v4934, 3
        %v5373 = vsel %vm1216, %v5371, %v5372
        %v5374 = vrot.slane %v5030, 3
        %v5375 = vrot.slane %v5032, 3
        %v5376 = vsel %vm1216, %v5374, %v5375
        %v5377 = vrot.slane %v5128, 3
        %v5378 = vrot.slane %v5130, 3
        %v5379 = vsel %vm1216, %v5377, %v5378
        %v5380 = vrot.slane %v5226, 3
        %v5381 = vrot.slane %v5228, 3
        %v5382 = vsel %vm1216, %v5380, %v5381
        %v5383 = vrot.slane %v4937, 3
        %v5384 = vrot.slane %v4939, 3
        %v5385 = vsel %vm1216, %v5383, %v5384
        %v5386 = vrot.slane %v5035, 3
        %v5387 = vrot.slane %v5037, 3
        %v5388 = vsel %vm1216, %v5386, %v5387
        %v5389 = vrot.slane %v5133, 3
        %v5390 = vrot.slane %v5135, 3
        %v5391 = vsel %vm1216, %v5389, %v5390
        %v5392 = vrot.slane %v5231, 3
        %v5393 = vrot.slane %v5233, 3
        %v5394 = vsel %vm1216, %v5392, %v5393
        %v5427 = vadd.f32 %v4450, %v5301
        %v5428 = vadd.f32 %v4451, %v5304
        %v5429 = vadd.f32 %v4452, %v5307
        %v5430 = vadd.f32 %v4453, %v5310
        %v5431 = vadd.f32 %v4454, %v5313
        %v5432 = vadd.f32 %v4455, %v5316
        %v5433 = vadd.f32 %v4456, %v5319
        %v5434 = vadd.f32 %v4457, %v5322
        %v5435 = vadd.f32 %v4458, %v5325
        %v5436 = vadd.f32 %v4459, %v5328
        %v5437 = vadd.f32 %v4460, %v5331
        %v5438 = vadd.f32 %v4461, %v5334
        %v5439 = vadd.f32 %v4462, %v5337
        %v5440 = vadd.f32 %v4463, %v5340
        %v5441 = vadd.f32 %v4464, %v5343
        %v5442 = vadd.f32 %v4465, %v5346
        %v5443 = vadd.f32 %v4466, %v5349
        %v5444 = vadd.f32 %v4467, %v5352
        %v5445 = vadd.f32 %v4468, %v5355
        %v5446 = vadd.f32 %v4469, %v5358
        %v5447 = vadd.f32 %v4470, %v5361
        %v5448 = vadd.f32 %v4471, %v5364
        %v5449 = vadd.f32 %v4472, %v5367
        %v5450 = vadd.f32 %v4473, %v5370
        %v5451 = vadd.f32 %v4474, %v5373
        %v5452 = vadd.f32 %v4475, %v5376
        %v5453 = vadd.f32 %v4476, %v5379
        %v5454 = vadd.f32 %v4477, %v5382
        %v5455 = vadd.f32 %v4478, %v5385
        %v5456 = vadd.f32 %v4479, %v5388
        %v5457 = vadd.f32 %v4480, %v5391
        %v5458 = vadd.f32 %v4481, %v5394
        %s5459 = scalar_lea.vmem [#allocation8], 1920
        %v5460 = vld [vmem:[%s5459] sm:$0xff]
        %v5461 = vld [vmem:[%s5459 + $0x8] sm:$0xff]
        %v5462 = vld [vmem:[%s5459 + $0x10] sm:$0xff]
        %v5463 = vld [vmem:[%s5459 + $0x18] sm:$0xff]
        %v5464 = vld [vmem:[%s5459 + $0x20] sm:$0xff]
        %v5465 = vld [vmem:[%s5459 + $0x28] sm:$0xff]
        %v5466 = vld [vmem:[%s5459 + $0x30] sm:$0xff]
        %v5467 = vld [vmem:[%s5459 + $0x38] sm:$0xff]
        %v5468 = vld [vmem:[%s5459 + $0x40] sm:$0xff]
        %v5469 = vld [vmem:[%s5459 + $0x48] sm:$0xff]
        %v5470 = vld [vmem:[%s5459 + $0x50] sm:$0xff]
        %v5471 = vld [vmem:[%s5459 + $0x58] sm:$0xff]
        %v5472 = vld [vmem:[%s5459 + $0x60] sm:$0xff]
        %v5473 = vld [vmem:[%s5459 + $0x68] sm:$0xff]
        %v5474 = vld [vmem:[%s5459 + $0x70] sm:$0xff]
        %v5475 = vld [vmem:[%s5459 + $0x78] sm:$0xff]
        %v5476 = vld [vmem:[%s5459 + $0x80] sm:$0xff]
        %v5477 = vld [vmem:[%s5459 + $0x88] sm:$0xff]
        %v5478 = vld [vmem:[%s5459 + $0x90] sm:$0xff]
        %v5479 = vld [vmem:[%s5459 + $0x98] sm:$0xff]
        %v5480 = vld [vmem:[%s5459 + $0xa0] sm:$0xff]
        %v5481 = vld [vmem:[%s5459 + $0xa8] sm:$0xff]
        %v5482 = vld [vmem:[%s5459 + $0xb0] sm:$0xff]
        %v5483 = vld [vmem:[%s5459 + $0xb8] sm:$0xff]
        %v5484 = vld [vmem:[%s5459 + $0xc0] sm:$0xff]
        %v5485 = vld [vmem:[%s5459 + $0xc8] sm:$0xff]
        %v5486 = vld [vmem:[%s5459 + $0xd0] sm:$0xff]
        %v5487 = vld [vmem:[%s5459 + $0xd8] sm:$0xff]
        %v5488 = vld [vmem:[%s5459 + $0xe0] sm:$0xff]
        %v5489 = vld [vmem:[%s5459 + $0xe8] sm:$0xff]
        %v5490 = vld [vmem:[%s5459 + $0xf0] sm:$0xff]
        %v5491 = vld [vmem:[%s5459 + $0xf8] sm:$0xff]
        %v5492 = vld [vmem:[%s5459 + $0x100] sm:$0xff]
        %v5493 = vld [vmem:[%s5459 + $0x108] sm:$0xff]
        %v5494 = vld [vmem:[%s5459 + $0x110] sm:$0xff]
        %v5495 = vld [vmem:[%s5459 + $0x118] sm:$0xff]
        %v5496 = vld [vmem:[%s5459 + $0x120] sm:$0xff]
        %v5497 = vld [vmem:[%s5459 + $0x128] sm:$0xff]
        %v5498 = vld [vmem:[%s5459 + $0x130] sm:$0xff]
        %v5499 = vld [vmem:[%s5459 + $0x138] sm:$0xff]
        %v5500 = vld [vmem:[%s5459 + $0x140] sm:$0xff]
        %v5501 = vld [vmem:[%s5459 + $0x148] sm:$0xff]
        %v5502 = vld [vmem:[%s5459 + $0x150] sm:$0xff]
        %v5503 = vld [vmem:[%s5459 + $0x158] sm:$0xff]
        %v5504 = vld [vmem:[%s5459 + $0x160] sm:$0xff]
        %v5505 = vld [vmem:[%s5459 + $0x168] sm:$0xff]
        %v5506 = vld [vmem:[%s5459 + $0x170] sm:$0xff]
        %v5507 = vld [vmem:[%s5459 + $0x178] sm:$0xff]
        %v5508 = vld [vmem:[%s5459 + $0x180] sm:$0xff]
        %v5509 = vld [vmem:[%s5459 + $0x188] sm:$0xff]
        %v5510 = vld [vmem:[%s5459 + $0x190] sm:$0xff]
        %v5511 = vld [vmem:[%s5459 + $0x198] sm:$0xff]
        %v5512 = vld [vmem:[%s5459 + $0x1a0] sm:$0xff]
        %v5513 = vld [vmem:[%s5459 + $0x1a8] sm:$0xff]
        %v5514 = vld [vmem:[%s5459 + $0x1b0] sm:$0xff]
        %v5515 = vld [vmem:[%s5459 + $0x1b8] sm:$0xff]
        %v5516 = vld [vmem:[%s5459 + $0x1c0] sm:$0xff]
        %v5517 = vld [vmem:[%s5459 + $0x1c8] sm:$0xff]
        %v5518 = vld [vmem:[%s5459 + $0x1d0] sm:$0xff]
        %v5519 = vld [vmem:[%s5459 + $0x1d8] sm:$0xff]
        %v5580 = vunpack.c.l.b16 %v5460
        %v5581 = vunpack.c.h.b16 %v5460
        %v5582 = vunpack.c.l.b16 %v5461
        %v5583 = vunpack.c.h.b16 %v5461
        %v5584 = vunpack.c.l.b16 %v5462
        %v5585 = vunpack.c.h.b16 %v5462
        %v5586 = vunpack.c.l.b16 %v5463
        %v5587 = vunpack.c.h.b16 %v5463
        %v5588 = vunpack.c.l.b16 %v5464
        %v5589 = vunpack.c.h.b16 %v5464
        %v5590 = vunpack.c.l.b16 %v5465
        %v5591 = vunpack.c.h.b16 %v5465
        %v5592 = vunpack.c.l.b16 %v5466
        %v5593 = vunpack.c.h.b16 %v5466
        %v5594 = vunpack.c.l.b16 %v5467
        %v5595 = vunpack.c.h.b16 %v5467
        %v5596 = vunpack.c.l.b16 %v5468
        %v5597 = vunpack.c.h.b16 %v5468
        %v5598 = vunpack.c.l.b16 %v5469
        %v5599 = vunpack.c.h.b16 %v5469
        %v5600 = vunpack.c.l.b16 %v5470
        %v5601 = vunpack.c.h.b16 %v5470
        %v5602 = vunpack.c.l.b16 %v5471
        %v5603 = vunpack.c.h.b16 %v5471
        %v5604 = vunpack.c.l.b16 %v5472
        %v5605 = vunpack.c.h.b16 %v5472
        %v5606 = vunpack.c.l.b16 %v5473
        %v5607 = vunpack.c.h.b16 %v5473
        %v5608 = vunpack.c.l.b16 %v5474
        %v5609 = vunpack.c.h.b16 %v5474
        %v5610 = vunpack.c.l.b16 %v5475
        %v5611 = vunpack.c.h.b16 %v5475
        %v5612 = vunpack.c.l.b16 %v5476
        %v5613 = vunpack.c.h.b16 %v5476
        %v5614 = vunpack.c.l.b16 %v5477
        %v5615 = vunpack.c.h.b16 %v5477
        %v5616 = vunpack.c.l.b16 %v5478
        %v5617 = vunpack.c.h.b16 %v5478
        %v5618 = vunpack.c.l.b16 %v5479
        %v5619 = vunpack.c.h.b16 %v5479
        %v5620 = vunpack.c.l.b16 %v5480
        %v5621 = vunpack.c.h.b16 %v5480
        %v5622 = vunpack.c.l.b16 %v5481
        %v5623 = vunpack.c.h.b16 %v5481
        %v5624 = vunpack.c.l.b16 %v5482
        %v5625 = vunpack.c.h.b16 %v5482
        %v5626 = vunpack.c.l.b16 %v5483
        %v5627 = vunpack.c.h.b16 %v5483
        %v5628 = vunpack.c.l.b16 %v5484
        %v5629 = vunpack.c.h.b16 %v5484
        %v5630 = vunpack.c.l.b16 %v5485
        %v5631 = vunpack.c.h.b16 %v5485
        %v5632 = vunpack.c.l.b16 %v5486
        %v5633 = vunpack.c.h.b16 %v5486
        %v5634 = vunpack.c.l.b16 %v5487
        %v5635 = vunpack.c.h.b16 %v5487
        %v5636 = vunpack.c.l.b16 %v5488
        %v5637 = vunpack.c.h.b16 %v5488
        %v5638 = vunpack.c.l.b16 %v5489
        %v5639 = vunpack.c.h.b16 %v5489
        %v5640 = vunpack.c.l.b16 %v5490
        %v5641 = vunpack.c.h.b16 %v5490
        %v5642 = vunpack.c.l.b16 %v5491
        %v5643 = vunpack.c.h.b16 %v5491
        %v5644 = vunpack.c.l.b16 %v5492
        %v5645 = vunpack.c.h.b16 %v5492
        %v5646 = vunpack.c.l.b16 %v5493
        %v5647 = vunpack.c.h.b16 %v5493
        %v5648 = vunpack.c.l.b16 %v5494
        %v5649 = vunpack.c.h.b16 %v5494
        %v5650 = vunpack.c.l.b16 %v5495
        %v5651 = vunpack.c.h.b16 %v5495
        %v5652 = vunpack.c.l.b16 %v5496
        %v5653 = vunpack.c.h.b16 %v5496
        %v5654 = vunpack.c.l.b16 %v5497
        %v5655 = vunpack.c.h.b16 %v5497
        %v5656 = vunpack.c.l.b16 %v5498
        %v5657 = vunpack.c.h.b16 %v5498
        %v5658 = vunpack.c.l.b16 %v5499
        %v5659 = vunpack.c.h.b16 %v5499
        %v5660 = vunpack.c.l.b16 %v5500
        %v5661 = vunpack.c.h.b16 %v5500
        %v5662 = vunpack.c.l.b16 %v5501
        %v5663 = vunpack.c.h.b16 %v5501
        %v5664 = vunpack.c.l.b16 %v5502
        %v5665 = vunpack.c.h.b16 %v5502
        %v5666 = vunpack.c.l.b16 %v5503
        %v5667 = vunpack.c.h.b16 %v5503
        %v5668 = vunpack.c.l.b16 %v5504
        %v5669 = vunpack.c.h.b16 %v5504
        %v5670 = vunpack.c.l.b16 %v5505
        %v5671 = vunpack.c.h.b16 %v5505
        %v5672 = vunpack.c.l.b16 %v5506
        %v5673 = vunpack.c.h.b16 %v5506
        %v5674 = vunpack.c.l.b16 %v5507
        %v5675 = vunpack.c.h.b16 %v5507
        %v5676 = vunpack.c.l.b16 %v5508
        %v5677 = vunpack.c.h.b16 %v5508
        %v5678 = vunpack.c.l.b16 %v5509
        %v5679 = vunpack.c.h.b16 %v5509
        %v5680 = vunpack.c.l.b16 %v5510
        %v5681 = vunpack.c.h.b16 %v5510
        %v5682 = vunpack.c.l.b16 %v5511
        %v5683 = vunpack.c.h.b16 %v5511
        %v5684 = vunpack.c.l.b16 %v5512
        %v5685 = vunpack.c.h.b16 %v5512
        %v5686 = vunpack.c.l.b16 %v5513
        %v5687 = vunpack.c.h.b16 %v5513
        %v5688 = vunpack.c.l.b16 %v5514
        %v5689 = vunpack.c.h.b16 %v5514
        %v5690 = vunpack.c.l.b16 %v5515
        %v5691 = vunpack.c.h.b16 %v5515
        %v5692 = vunpack.c.l.b16 %v5516
        %v5693 = vunpack.c.h.b16 %v5516
        %v5694 = vunpack.c.l.b16 %v5517
        %v5695 = vunpack.c.h.b16 %v5517
        %v5696 = vunpack.c.l.b16 %v5518
        %v5697 = vunpack.c.h.b16 %v5518
        %v5698 = vunpack.c.l.b16 %v5519
        %v5699 = vunpack.c.h.b16 %v5519
        %v5700 = vpack.c.b16 %v5584, %v5580
        %v5701 = vpack.c.b16 %v5585, %v5581
        %v5702 = vpack.c.b16 %v5586, %v5582
        %v5703 = vpack.c.b16 %v5587, %v5583
        %v5704 = vpack.c.b16 %v5592, %v5588
        %v5705 = vpack.c.b16 %v5593, %v5589
        %v5706 = vpack.c.b16 %v5594, %v5590
        %v5707 = vpack.c.b16 %v5595, %v5591
        %v5708 = vpack.c.b16 %v5600, %v5596
        %v5709 = vpack.c.b16 %v5601, %v5597
        %v5710 = vpack.c.b16 %v5602, %v5598
        %v5711 = vpack.c.b16 %v5603, %v5599
        %v5712 = vpack.c.b16 %v5608, %v5604
        %v5713 = vpack.c.b16 %v5609, %v5605
        %v5714 = vpack.c.b16 %v5610, %v5606
        %v5715 = vpack.c.b16 %v5611, %v5607
        %v5716 = vpack.c.b16 %v5616, %v5612
        %v5717 = vpack.c.b16 %v5617, %v5613
        %v5718 = vpack.c.b16 %v5618, %v5614
        %v5719 = vpack.c.b16 %v5619, %v5615
        %v5720 = vpack.c.b16 %v5624, %v5620
        %v5721 = vpack.c.b16 %v5625, %v5621
        %v5722 = vpack.c.b16 %v5626, %v5622
        %v5723 = vpack.c.b16 %v5627, %v5623
        %v5724 = vpack.c.b16 %v5632, %v5628
        %v5725 = vpack.c.b16 %v5633, %v5629
        %v5726 = vpack.c.b16 %v5634, %v5630
        %v5727 = vpack.c.b16 %v5635, %v5631
        %v5728 = vpack.c.b16 %v5640, %v5636
        %v5729 = vpack.c.b16 %v5641, %v5637
        %v5730 = vpack.c.b16 %v5642, %v5638
        %v5731 = vpack.c.b16 %v5643, %v5639
        %v5732 = vpack.c.b16 %v5648, %v5644
        %v5733 = vpack.c.b16 %v5649, %v5645
        %v5734 = vpack.c.b16 %v5650, %v5646
        %v5735 = vpack.c.b16 %v5651, %v5647
        %v5736 = vpack.c.b16 %v5656, %v5652
        %v5737 = vpack.c.b16 %v5657, %v5653
        %v5738 = vpack.c.b16 %v5658, %v5654
        %v5739 = vpack.c.b16 %v5659, %v5655
        %v5740 = vpack.c.b16 %v5664, %v5660
        %v5741 = vpack.c.b16 %v5665, %v5661
        %v5742 = vpack.c.b16 %v5666, %v5662
        %v5743 = vpack.c.b16 %v5667, %v5663
        %v5744 = vpack.c.b16 %v5672, %v5668
        %v5745 = vpack.c.b16 %v5673, %v5669
        %v5746 = vpack.c.b16 %v5674, %v5670
        %v5747 = vpack.c.b16 %v5675, %v5671
        %v5748 = vpack.c.b16 %v5680, %v5676
        %v5749 = vpack.c.b16 %v5681, %v5677
        %v5750 = vpack.c.b16 %v5682, %v5678
        %v5751 = vpack.c.b16 %v5683, %v5679
        %v5752 = vpack.c.b16 %v5688, %v5684
        %v5753 = vpack.c.b16 %v5689, %v5685
        %v5754 = vpack.c.b16 %v5690, %v5686
        %v5755 = vpack.c.b16 %v5691, %v5687
        %v5756 = vpack.c.b16 %v5696, %v5692
        %v5757 = vpack.c.b16 %v5697, %v5693
        %v5758 = vpack.c.b16 %v5698, %v5694
        %v5759 = vpack.c.b16 %v5699, %v5695
        %5820 = vmatpush.bf16.msra.mxu0 %v5728
        %5821 = vmatpush.bf16.msra.mxu0 %v5724
        %5822 = vmatpush.bf16.msra.mxu0 %v5720
        %5823 = vmatpush.bf16.msra.mxu0 %v5716
        %5824 = vmatpush.bf16.msra.mxu0 %v5712
        %5825 = vmatpush.bf16.msra.mxu0 %v5708
        %5826 = vmatpush.bf16.msra.mxu0 %v5704
        %5827 = vmatpush.bf16.msra.mxu0 %v5700
        %5828 = vmatmul.bf16.gmra.mxu0 %v1851
        %v5829 = vpop.f32.mrf.mxu0
        %v5830 = vadd.f32 0.0, %v5829
        %v5831 = vpop.f32.mrf.mxu0
        %v5832 = vadd.f32 0.0, %v5831
        %5833 = vmatmul.bf16.gmra.mxu0 %v1853
        %v5834 = vpop.f32.mrf.mxu0
        %v5835 = vadd.f32 0.0, %v5834
        %v5836 = vpop.f32.mrf.mxu0
        %v5837 = vadd.f32 0.0, %v5836
        %5838 = vmatmul.bf16.gmra.mxu0 %v1855
        %v5839 = vpop.f32.mrf.mxu0
        %v5840 = vadd.f32 0.0, %v5839
        %v5841 = vpop.f32.mrf.mxu0
        %v5842 = vadd.f32 0.0, %v5841
        %5843 = vmatmul.bf16.gmra.mxu0 %v1857
        %v5844 = vpop.f32.mrf.mxu0
        %v5845 = vadd.f32 0.0, %v5844
        %v5846 = vpop.f32.mrf.mxu0
        %v5847 = vadd.f32 0.0, %v5846
        %5848 = vmatmul.bf16.gmra.mxu0 %v1859
        %v5849 = vpop.f32.mrf.mxu0
        %v5850 = vadd.f32 0.0, %v5849
        %v5851 = vpop.f32.mrf.mxu0
        %v5852 = vadd.f32 0.0, %v5851
        %5853 = vmatmul.bf16.gmra.mxu0 %v1861
        %v5854 = vpop.f32.mrf.mxu0
        %v5855 = vadd.f32 0.0, %v5854
        %v5856 = vpop.f32.mrf.mxu0
        %v5857 = vadd.f32 0.0, %v5856
        %5858 = vmatmul.bf16.gmra.mxu0 %v1863
        %v5859 = vpop.f32.mrf.mxu0
        %v5860 = vadd.f32 0.0, %v5859
        %v5861 = vpop.f32.mrf.mxu0
        %v5862 = vadd.f32 0.0, %v5861
        %5863 = vmatmul.bf16.gmra.mxu0 %v1865
        %v5864 = vpop.f32.mrf.mxu0
        %v5865 = vadd.f32 0.0, %v5864
        %v5866 = vpop.f32.mrf.mxu0
        %v5867 = vadd.f32 0.0, %v5866
        %5868 = vdwg.mxu0
        %5869 = vmatpush.bf16.msra.mxu0 0
        %5870 = vmatpush.bf16.msra.mxu0 %v5756
        %5871 = vmatpush.bf16.msra.mxu0 %v5752
        %5872 = vmatpush.bf16.msra.mxu0 %v5748
        %5873 = vmatpush.bf16.msra.mxu0 %v5744
        %5874 = vmatpush.bf16.msra.mxu0 %v5740
        %5875 = vmatpush.bf16.msra.mxu0 %v5736
        %5876 = vmatpush.bf16.msra.mxu0 %v5732
        %5877 = vmatmul.bf16.gmra.mxu0 %v2177
        %v5878 = vpop.f32.mrf.mxu0
        %v5879 = vadd.f32 %v5830, %v5878
        %v5880 = vpop.f32.mrf.mxu0
        %v5881 = vadd.f32 %v5832, %v5880
        %5882 = vmatmul.bf16.gmra.mxu0 %v2180
        %v5883 = vpop.f32.mrf.mxu0
        %v5884 = vadd.f32 %v5835, %v5883
        %v5885 = vpop.f32.mrf.mxu0
        %v5886 = vadd.f32 %v5837, %v5885
        %5887 = vmatmul.bf16.gmra.mxu0 %v2183
        %v5888 = vpop.f32.mrf.mxu0
        %v5889 = vadd.f32 %v5840, %v5888
        %v5890 = vpop.f32.mrf.mxu0
        %v5891 = vadd.f32 %v5842, %v5890
        %5892 = vmatmul.bf16.gmra.mxu0 %v2186
        %v5893 = vpop.f32.mrf.mxu0
        %v5894 = vadd.f32 %v5845, %v5893
        %v5895 = vpop.f32.mrf.mxu0
        %v5896 = vadd.f32 %v5847, %v5895
        %5897 = vmatmul.bf16.gmra.mxu0 %v2189
        %v5898 = vpop.f32.mrf.mxu0
        %v5899 = vadd.f32 %v5850, %v5898
        %v5900 = vpop.f32.mrf.mxu0
        %v5901 = vadd.f32 %v5852, %v5900
        %5902 = vmatmul.bf16.gmra.mxu0 %v2192
        %v5903 = vpop.f32.mrf.mxu0
        %v5904 = vadd.f32 %v5855, %v5903
        %v5905 = vpop.f32.mrf.mxu0
        %v5906 = vadd.f32 %v5857, %v5905
        %5907 = vmatmul.bf16.gmra.mxu0 %v2195
        %v5908 = vpop.f32.mrf.mxu0
        %v5909 = vadd.f32 %v5860, %v5908
        %v5910 = vpop.f32.mrf.mxu0
        %v5911 = vadd.f32 %v5862, %v5910
        %5912 = vmatmul.bf16.gmra.mxu0 %v2198
        %v5913 = vpop.f32.mrf.mxu0
        %v5914 = vadd.f32 %v5865, %v5913
        %v5915 = vpop.f32.mrf.mxu0
        %v5916 = vadd.f32 %v5867, %v5915
        %5917 = vdwg.mxu0
        %5918 = vmatpush.bf16.msra.mxu0 %v5729
        %5919 = vmatpush.bf16.msra.mxu0 %v5725
        %5920 = vmatpush.bf16.msra.mxu0 %v5721
        %5921 = vmatpush.bf16.msra.mxu0 %v5717
        %5922 = vmatpush.bf16.msra.mxu0 %v5713
        %5923 = vmatpush.bf16.msra.mxu0 %v5709
        %5924 = vmatpush.bf16.msra.mxu0 %v5705
        %5925 = vmatpush.bf16.msra.mxu0 %v5701
        %5926 = vmatmul.bf16.gmra.mxu0 %v1851
        %v5927 = vpop.f32.mrf.mxu0
        %v5928 = vadd.f32 0.0, %v5927
        %v5929 = vpop.f32.mrf.mxu0
        %v5930 = vadd.f32 0.0, %v5929
        %5931 = vmatmul.bf16.gmra.mxu0 %v1853
        %v5932 = vpop.f32.mrf.mxu0
        %v5933 = vadd.f32 0.0, %v5932
        %v5934 = vpop.f32.mrf.mxu0
        %v5935 = vadd.f32 0.0, %v5934
        %5936 = vmatmul.bf16.gmra.mxu0 %v1855
        %v5937 = vpop.f32.mrf.mxu0
        %v5938 = vadd.f32 0.0, %v5937
        %v5939 = vpop.f32.mrf.mxu0
        %v5940 = vadd.f32 0.0, %v5939
        %5941 = vmatmul.bf16.gmra.mxu0 %v1857
        %v5942 = vpop.f32.mrf.mxu0
        %v5943 = vadd.f32 0.0, %v5942
        %v5944 = vpop.f32.mrf.mxu0
        %v5945 = vadd.f32 0.0, %v5944
        %5946 = vmatmul.bf16.gmra.mxu0 %v1859
        %v5947 = vpop.f32.mrf.mxu0
        %v5948 = vadd.f32 0.0, %v5947
        %v5949 = vpop.f32.mrf.mxu0
        %v5950 = vadd.f32 0.0, %v5949
        %5951 = vmatmul.bf16.gmra.mxu0 %v1861
        %v5952 = vpop.f32.mrf.mxu0
        %v5953 = vadd.f32 0.0, %v5952
        %v5954 = vpop.f32.mrf.mxu0
        %v5955 = vadd.f32 0.0, %v5954
        %5956 = vmatmul.bf16.gmra.mxu0 %v1863
        %v5957 = vpop.f32.mrf.mxu0
        %v5958 = vadd.f32 0.0, %v5957
        %v5959 = vpop.f32.mrf.mxu0
        %v5960 = vadd.f32 0.0, %v5959
        %5961 = vmatmul.bf16.gmra.mxu0 %v1865
        %v5962 = vpop.f32.mrf.mxu0
        %v5963 = vadd.f32 0.0, %v5962
        %v5964 = vpop.f32.mrf.mxu0
        %v5965 = vadd.f32 0.0, %v5964
        %5966 = vdwg.mxu0
        %5967 = vmatpush.bf16.msra.mxu0 0
        %5968 = vmatpush.bf16.msra.mxu0 %v5757
        %5969 = vmatpush.bf16.msra.mxu0 %v5753
        %5970 = vmatpush.bf16.msra.mxu0 %v5749
        %5971 = vmatpush.bf16.msra.mxu0 %v5745
        %5972 = vmatpush.bf16.msra.mxu0 %v5741
        %5973 = vmatpush.bf16.msra.mxu0 %v5737
        %5974 = vmatpush.bf16.msra.mxu0 %v5733
        %5975 = vmatmul.bf16.gmra.mxu0 %v2177
        %v5976 = vpop.f32.mrf.mxu0
        %v5977 = vadd.f32 %v5928, %v5976
        %v5978 = vpop.f32.mrf.mxu0
        %v5979 = vadd.f32 %v5930, %v5978
        %5980 = vmatmul.bf16.gmra.mxu0 %v2180
        %v5981 = vpop.f32.mrf.mxu0
        %v5982 = vadd.f32 %v5933, %v5981
        %v5983 = vpop.f32.mrf.mxu0
        %v5984 = vadd.f32 %v5935, %v5983
        %5985 = vmatmul.bf16.gmra.mxu0 %v2183
        %v5986 = vpop.f32.mrf.mxu0
        %v5987 = vadd.f32 %v5938, %v5986
        %v5988 = vpop.f32.mrf.mxu0
        %v5989 = vadd.f32 %v5940, %v5988
        %5990 = vmatmul.bf16.gmra.mxu0 %v2186
        %v5991 = vpop.f32.mrf.mxu0
        %v5992 = vadd.f32 %v5943, %v5991
        %v5993 = vpop.f32.mrf.mxu0
        %v5994 = vadd.f32 %v5945, %v5993
        %5995 = vmatmul.bf16.gmra.mxu0 %v2189
        %v5996 = vpop.f32.mrf.mxu0
        %v5997 = vadd.f32 %v5948, %v5996
        %v5998 = vpop.f32.mrf.mxu0
        %v5999 = vadd.f32 %v5950, %v5998
        %6000 = vmatmul.bf16.gmra.mxu0 %v2192
        %v6001 = vpop.f32.mrf.mxu0
        %v6002 = vadd.f32 %v5953, %v6001
        %v6003 = vpop.f32.mrf.mxu0
        %v6004 = vadd.f32 %v5955, %v6003
        %6005 = vmatmul.bf16.gmra.mxu0 %v2195
        %v6006 = vpop.f32.mrf.mxu0
        %v6007 = vadd.f32 %v5958, %v6006
        %v6008 = vpop.f32.mrf.mxu0
        %v6009 = vadd.f32 %v5960, %v6008
        %6010 = vmatmul.bf16.gmra.mxu0 %v2198
        %v6011 = vpop.f32.mrf.mxu0
        %v6012 = vadd.f32 %v5963, %v6011
        %v6013 = vpop.f32.mrf.mxu0
        %v6014 = vadd.f32 %v5965, %v6013
        %6015 = vdwg.mxu0
        %6016 = vmatpush.bf16.msra.mxu0 %v5730
        %6017 = vmatpush.bf16.msra.mxu0 %v5726
        %6018 = vmatpush.bf16.msra.mxu0 %v5722
        %6019 = vmatpush.bf16.msra.mxu0 %v5718
        %6020 = vmatpush.bf16.msra.mxu0 %v5714
        %6021 = vmatpush.bf16.msra.mxu0 %v5710
        %6022 = vmatpush.bf16.msra.mxu0 %v5706
        %6023 = vmatpush.bf16.msra.mxu0 %v5702
        %6024 = vmatmul.bf16.gmra.mxu0 %v1851
        %v6025 = vpop.f32.mrf.mxu0
        %v6026 = vadd.f32 0.0, %v6025
        %v6027 = vpop.f32.mrf.mxu0
        %v6028 = vadd.f32 0.0, %v6027
        %6029 = vmatmul.bf16.gmra.mxu0 %v1853
        %v6030 = vpop.f32.mrf.mxu0
        %v6031 = vadd.f32 0.0, %v6030
        %v6032 = vpop.f32.mrf.mxu0
        %v6033 = vadd.f32 0.0, %v6032
        %6034 = vmatmul.bf16.gmra.mxu0 %v1855
        %v6035 = vpop.f32.mrf.mxu0
        %v6036 = vadd.f32 0.0, %v6035
        %v6037 = vpop.f32.mrf.mxu0
        %v6038 = vadd.f32 0.0, %v6037
        %6039 = vmatmul.bf16.gmra.mxu0 %v1857
        %v6040 = vpop.f32.mrf.mxu0
        %v6041 = vadd.f32 0.0, %v6040
        %v6042 = vpop.f32.mrf.mxu0
        %v6043 = vadd.f32 0.0, %v6042
        %6044 = vmatmul.bf16.gmra.mxu0 %v1859
        %v6045 = vpop.f32.mrf.mxu0
        %v6046 = vadd.f32 0.0, %v6045
        %v6047 = vpop.f32.mrf.mxu0
        %v6048 = vadd.f32 0.0, %v6047
        %6049 = vmatmul.bf16.gmra.mxu0 %v1861
        %v6050 = vpop.f32.mrf.mxu0
        %v6051 = vadd.f32 0.0, %v6050
        %v6052 = vpop.f32.mrf.mxu0
        %v6053 = vadd.f32 0.0, %v6052
        %6054 = vmatmul.bf16.gmra.mxu0 %v1863
        %v6055 = vpop.f32.mrf.mxu0
        %v6056 = vadd.f32 0.0, %v6055
        %v6057 = vpop.f32.mrf.mxu0
        %v6058 = vadd.f32 0.0, %v6057
        %6059 = vmatmul.bf16.gmra.mxu0 %v1865
        %v6060 = vpop.f32.mrf.mxu0
        %v6061 = vadd.f32 0.0, %v6060
        %v6062 = vpop.f32.mrf.mxu0
        %v6063 = vadd.f32 0.0, %v6062
        %6064 = vdwg.mxu0
        %6065 = vmatpush.bf16.msra.mxu0 0
        %6066 = vmatpush.bf16.msra.mxu0 %v5758
        %6067 = vmatpush.bf16.msra.mxu0 %v5754
        %6068 = vmatpush.bf16.msra.mxu0 %v5750
        %6069 = vmatpush.bf16.msra.mxu0 %v5746
        %6070 = vmatpush.bf16.msra.mxu0 %v5742
        %6071 = vmatpush.bf16.msra.mxu0 %v5738
        %6072 = vmatpush.bf16.msra.mxu0 %v5734
        %6073 = vmatmul.bf16.gmra.mxu0 %v2177
        %v6074 = vpop.f32.mrf.mxu0
        %v6075 = vadd.f32 %v6026, %v6074
        %v6076 = vpop.f32.mrf.mxu0
        %v6077 = vadd.f32 %v6028, %v6076
        %6078 = vmatmul.bf16.gmra.mxu0 %v2180
        %v6079 = vpop.f32.mrf.mxu0
        %v6080 = vadd.f32 %v6031, %v6079
        %v6081 = vpop.f32.mrf.mxu0
        %v6082 = vadd.f32 %v6033, %v6081
        %6083 = vmatmul.bf16.gmra.mxu0 %v2183
        %v6084 = vpop.f32.mrf.mxu0
        %v6085 = vadd.f32 %v6036, %v6084
        %v6086 = vpop.f32.mrf.mxu0
        %v6087 = vadd.f32 %v6038, %v6086
        %6088 = vmatmul.bf16.gmra.mxu0 %v2186
        %v6089 = vpop.f32.mrf.mxu0
        %v6090 = vadd.f32 %v6041, %v6089
        %v6091 = vpop.f32.mrf.mxu0
        %v6092 = vadd.f32 %v6043, %v6091
        %6093 = vmatmul.bf16.gmra.mxu0 %v2189
        %v6094 = vpop.f32.mrf.mxu0
        %v6095 = vadd.f32 %v6046, %v6094
        %v6096 = vpop.f32.mrf.mxu0
        %v6097 = vadd.f32 %v6048, %v6096
        %6098 = vmatmul.bf16.gmra.mxu0 %v2192
        %v6099 = vpop.f32.mrf.mxu0
        %v6100 = vadd.f32 %v6051, %v6099
        %v6101 = vpop.f32.mrf.mxu0
        %v6102 = vadd.f32 %v6053, %v6101
        %6103 = vmatmul.bf16.gmra.mxu0 %v2195
        %v6104 = vpop.f32.mrf.mxu0
        %v6105 = vadd.f32 %v6056, %v6104
        %v6106 = vpop.f32.mrf.mxu0
        %v6107 = vadd.f32 %v6058, %v6106
        %6108 = vmatmul.bf16.gmra.mxu0 %v2198
        %v6109 = vpop.f32.mrf.mxu0
        %v6110 = vadd.f32 %v6061, %v6109
        %v6111 = vpop.f32.mrf.mxu0
        %v6112 = vadd.f32 %v6063, %v6111
        %6113 = vdwg.mxu0
        %6114 = vmatpush.bf16.msra.mxu0 %v5731
        %6115 = vmatpush.bf16.msra.mxu0 %v5727
        %6116 = vmatpush.bf16.msra.mxu0 %v5723
        %6117 = vmatpush.bf16.msra.mxu0 %v5719
        %6118 = vmatpush.bf16.msra.mxu0 %v5715
        %6119 = vmatpush.bf16.msra.mxu0 %v5711
        %6120 = vmatpush.bf16.msra.mxu0 %v5707
        %6121 = vmatpush.bf16.msra.mxu0 %v5703
        %6122 = vmatmul.bf16.gmra.mxu0 %v1851
        %v6123 = vpop.f32.mrf.mxu0
        %v6124 = vadd.f32 0.0, %v6123
        %v6125 = vpop.f32.mrf.mxu0
        %v6126 = vadd.f32 0.0, %v6125
        %6127 = vmatmul.bf16.gmra.mxu0 %v1853
        %v6128 = vpop.f32.mrf.mxu0
        %v6129 = vadd.f32 0.0, %v6128
        %v6130 = vpop.f32.mrf.mxu0
        %v6131 = vadd.f32 0.0, %v6130
        %6132 = vmatmul.bf16.gmra.mxu0 %v1855
        %v6133 = vpop.f32.mrf.mxu0
        %v6134 = vadd.f32 0.0, %v6133
        %v6135 = vpop.f32.mrf.mxu0
        %v6136 = vadd.f32 0.0, %v6135
        %6137 = vmatmul.bf16.gmra.mxu0 %v1857
        %v6138 = vpop.f32.mrf.mxu0
        %v6139 = vadd.f32 0.0, %v6138
        %v6140 = vpop.f32.mrf.mxu0
        %v6141 = vadd.f32 0.0, %v6140
        %6142 = vmatmul.bf16.gmra.mxu0 %v1859
        %v6143 = vpop.f32.mrf.mxu0
        %v6144 = vadd.f32 0.0, %v6143
        %v6145 = vpop.f32.mrf.mxu0
        %v6146 = vadd.f32 0.0, %v6145
        %6147 = vmatmul.bf16.gmra.mxu0 %v1861
        %v6148 = vpop.f32.mrf.mxu0
        %v6149 = vadd.f32 0.0, %v6148
        %v6150 = vpop.f32.mrf.mxu0
        %v6151 = vadd.f32 0.0, %v6150
        %6152 = vmatmul.bf16.gmra.mxu0 %v1863
        %v6153 = vpop.f32.mrf.mxu0
        %v6154 = vadd.f32 0.0, %v6153
        %v6155 = vpop.f32.mrf.mxu0
        %v6156 = vadd.f32 0.0, %v6155
        %6157 = vmatmul.bf16.gmra.mxu0 %v1865
        %v6158 = vpop.f32.mrf.mxu0
        %v6159 = vadd.f32 0.0, %v6158
        %v6160 = vpop.f32.mrf.mxu0
        %v6161 = vadd.f32 0.0, %v6160
        %6162 = vdwg.mxu0
        %6163 = vmatpush.bf16.msra.mxu0 0
        %6164 = vmatpush.bf16.msra.mxu0 %v5759
        %6165 = vmatpush.bf16.msra.mxu0 %v5755
        %6166 = vmatpush.bf16.msra.mxu0 %v5751
        %6167 = vmatpush.bf16.msra.mxu0 %v5747
        %6168 = vmatpush.bf16.msra.mxu0 %v5743
        %6169 = vmatpush.bf16.msra.mxu0 %v5739
        %6170 = vmatpush.bf16.msra.mxu0 %v5735
        %6171 = vmatmul.bf16.gmra.mxu0 %v2177
        %v6172 = vpop.f32.mrf.mxu0
        %v6173 = vadd.f32 %v6124, %v6172
        %v6174 = vpop.f32.mrf.mxu0
        %v6175 = vadd.f32 %v6126, %v6174
        %6176 = vmatmul.bf16.gmra.mxu0 %v2180
        %v6177 = vpop.f32.mrf.mxu0
        %v6178 = vadd.f32 %v6129, %v6177
        %v6179 = vpop.f32.mrf.mxu0
        %v6180 = vadd.f32 %v6131, %v6179
        %6181 = vmatmul.bf16.gmra.mxu0 %v2183
        %v6182 = vpop.f32.mrf.mxu0
        %v6183 = vadd.f32 %v6134, %v6182
        %v6184 = vpop.f32.mrf.mxu0
        %v6185 = vadd.f32 %v6136, %v6184
        %6186 = vmatmul.bf16.gmra.mxu0 %v2186
        %v6187 = vpop.f32.mrf.mxu0
        %v6188 = vadd.f32 %v6139, %v6187
        %v6189 = vpop.f32.mrf.mxu0
        %v6190 = vadd.f32 %v6141, %v6189
        %6191 = vmatmul.bf16.gmra.mxu0 %v2189
        %v6192 = vpop.f32.mrf.mxu0
        %v6193 = vadd.f32 %v6144, %v6192
        %v6194 = vpop.f32.mrf.mxu0
        %v6195 = vadd.f32 %v6146, %v6194
        %6196 = vmatmul.bf16.gmra.mxu0 %v2192
        %v6197 = vpop.f32.mrf.mxu0
        %v6198 = vadd.f32 %v6149, %v6197
        %v6199 = vpop.f32.mrf.mxu0
        %v6200 = vadd.f32 %v6151, %v6199
        %6201 = vmatmul.bf16.gmra.mxu0 %v2195
        %v6202 = vpop.f32.mrf.mxu0
        %v6203 = vadd.f32 %v6154, %v6202
        %v6204 = vpop.f32.mrf.mxu0
        %v6205 = vadd.f32 %v6156, %v6204
        %6206 = vmatmul.bf16.gmra.mxu0 %v2198
        %v6207 = vpop.f32.mrf.mxu0
        %v6208 = vadd.f32 %v6159, %v6207
        %v6209 = vpop.f32.mrf.mxu0
        %v6210 = vadd.f32 %v6161, %v6209
        %6211 = vdwg.mxu0
        %v6276 = vrot.slane %v5879, 4
        %v6277 = vrot.slane %v5881, 4
        %v6278 = vsel %vm1496, %v6276, %v6277
        %v6279 = vrot.slane %v5977, 4
        %v6280 = vrot.slane %v5979, 4
        %v6281 = vsel %vm1496, %v6279, %v6280
        %v6282 = vrot.slane %v6075, 4
        %v6283 = vrot.slane %v6077, 4
        %v6284 = vsel %vm1496, %v6282, %v6283
        %v6285 = vrot.slane %v6173, 4
        %v6286 = vrot.slane %v6175, 4
        %v6287 = vsel %vm1496, %v6285, %v6286
        %v6288 = vrot.slane %v5884, 4
        %v6289 = vrot.slane %v5886, 4
        %v6290 = vsel %vm1496, %v6288, %v6289
        %v6291 = vrot.slane %v5982, 4
        %v6292 = vrot.slane %v5984, 4
        %v6293 = vsel %vm1496, %v6291, %v6292
        %v6294 = vrot.slane %v6080, 4
        %v6295 = vrot.slane %v6082, 4
        %v6296 = vsel %vm1496, %v6294, %v6295
        %v6297 = vrot.slane %v6178, 4
        %v6298 = vrot.slane %v6180, 4
        %v6299 = vsel %vm1496, %v6297, %v6298
        %v6300 = vrot.slane %v5889, 4
        %v6301 = vrot.slane %v5891, 4
        %v6302 = vsel %vm1496, %v6300, %v6301
        %v6303 = vrot.slane %v5987, 4
        %v6304 = vrot.slane %v5989, 4
        %v6305 = vsel %vm1496, %v6303, %v6304
        %v6306 = vrot.slane %v6085, 4
        %v6307 = vrot.slane %v6087, 4
        %v6308 = vsel %vm1496, %v6306, %v6307
        %v6309 = vrot.slane %v6183, 4
        %v6310 = vrot.slane %v6185, 4
        %v6311 = vsel %vm1496, %v6309, %v6310
        %v6312 = vrot.slane %v5894, 4
        %v6313 = vrot.slane %v5896, 4
        %v6314 = vsel %vm1496, %v6312, %v6313
        %v6315 = vrot.slane %v5992, 4
        %v6316 = vrot.slane %v5994, 4
        %v6317 = vsel %vm1496, %v6315, %v6316
        %v6318 = vrot.slane %v6090, 4
        %v6319 = vrot.slane %v6092, 4
        %v6320 = vsel %vm1496, %v6318, %v6319
        %v6321 = vrot.slane %v6188, 4
        %v6322 = vrot.slane %v6190, 4
        %v6323 = vsel %vm1496, %v6321, %v6322
        %v6324 = vrot.slane %v5899, 4
        %v6325 = vrot.slane %v5901, 4
        %v6326 = vsel %vm1496, %v6324, %v6325
        %v6327 = vrot.slane %v5997, 4
        %v6328 = vrot.slane %v5999, 4
        %v6329 = vsel %vm1496, %v6327, %v6328
        %v6330 = vrot.slane %v6095, 4
        %v6331 = vrot.slane %v6097, 4
        %v6332 = vsel %vm1496, %v6330, %v6331
        %v6333 = vrot.slane %v6193, 4
        %v6334 = vrot.slane %v6195, 4
        %v6335 = vsel %vm1496, %v6333, %v6334
        %v6336 = vrot.slane %v5904, 4
        %v6337 = vrot.slane %v5906, 4
        %v6338 = vsel %vm1496, %v6336, %v6337
        %v6339 = vrot.slane %v6002, 4
        %v6340 = vrot.slane %v6004, 4
        %v6341 = vsel %vm1496, %v6339, %v6340
        %v6342 = vrot.slane %v6100, 4
        %v6343 = vrot.slane %v6102, 4
        %v6344 = vsel %vm1496, %v6342, %v6343
        %v6345 = vrot.slane %v6198, 4
        %v6346 = vrot.slane %v6200, 4
        %v6347 = vsel %vm1496, %v6345, %v6346
        %v6348 = vrot.slane %v5909, 4
        %v6349 = vrot.slane %v5911, 4
        %v6350 = vsel %vm1496, %v6348, %v6349
        %v6351 = vrot.slane %v6007, 4
        %v6352 = vrot.slane %v6009, 4
        %v6353 = vsel %vm1496, %v6351, %v6352
        %v6354 = vrot.slane %v6105, 4
        %v6355 = vrot.slane %v6107, 4
        %v6356 = vsel %vm1496, %v6354, %v6355
        %v6357 = vrot.slane %v6203, 4
        %v6358 = vrot.slane %v6205, 4
        %v6359 = vsel %vm1496, %v6357, %v6358
        %v6360 = vrot.slane %v5914, 4
        %v6361 = vrot.slane %v5916, 4
        %v6362 = vsel %vm1496, %v6360, %v6361
        %v6363 = vrot.slane %v6012, 4
        %v6364 = vrot.slane %v6014, 4
        %v6365 = vsel %vm1496, %v6363, %v6364
        %v6366 = vrot.slane %v6110, 4
        %v6367 = vrot.slane %v6112, 4
        %v6368 = vsel %vm1496, %v6366, %v6367
        %v6369 = vrot.slane %v6208, 4
        %v6370 = vrot.slane %v6210, 4
        %v6371 = vsel %vm1496, %v6369, %v6370
        %v6404 = vadd.f32 %v5427, %v6278
        %v6405 = vadd.f32 %v5428, %v6281
        %v6406 = vadd.f32 %v5429, %v6284
        %v6407 = vadd.f32 %v5430, %v6287
        %v6408 = vadd.f32 %v5431, %v6290
        %v6409 = vadd.f32 %v5432, %v6293
        %v6410 = vadd.f32 %v5433, %v6296
        %v6411 = vadd.f32 %v5434, %v6299
        %v6412 = vadd.f32 %v5435, %v6302
        %v6413 = vadd.f32 %v5436, %v6305
        %v6414 = vadd.f32 %v5437, %v6308
        %v6415 = vadd.f32 %v5438, %v6311
        %v6416 = vadd.f32 %v5439, %v6314
        %v6417 = vadd.f32 %v5440, %v6317
        %v6418 = vadd.f32 %v5441, %v6320
        %v6419 = vadd.f32 %v5442, %v6323
        %v6420 = vadd.f32 %v5443, %v6326
        %v6421 = vadd.f32 %v5444, %v6329
        %v6422 = vadd.f32 %v5445, %v6332
        %v6423 = vadd.f32 %v5446, %v6335
        %v6424 = vadd.f32 %v5447, %v6338
        %v6425 = vadd.f32 %v5448, %v6341
        %v6426 = vadd.f32 %v5449, %v6344
        %v6427 = vadd.f32 %v5450, %v6347
        %v6428 = vadd.f32 %v5451, %v6350
        %v6429 = vadd.f32 %v5452, %v6353
        %v6430 = vadd.f32 %v5453, %v6356
        %v6431 = vadd.f32 %v5454, %v6359
        %v6432 = vadd.f32 %v5455, %v6362
        %v6433 = vadd.f32 %v5456, %v6365
        %v6434 = vadd.f32 %v5457, %v6368
        %v6435 = vadd.f32 %v5458, %v6371
        %v6436 = vld [vmem:[#allocation9] sm:$0xf]
        %v6438 = vperm.slane %v6436, 0
        %v6439 = vperm.slane %v6436, 1
        %v6440 = vperm.slane %v6436, 2
        %v6441 = vperm.slane %v6436, 3
        %v6446 = vadd.f32 %v6404, %v6438
        %v6447 = vadd.f32 %v6405, %v6439
        %v6448 = vadd.f32 %v6406, %v6440
        %v6449 = vadd.f32 %v6407, %v6441
        %v6450 = vadd.f32 %v6408, %v6438
        %v6451 = vadd.f32 %v6409, %v6439
        %v6452 = vadd.f32 %v6410, %v6440
        %v6453 = vadd.f32 %v6411, %v6441
        %v6454 = vadd.f32 %v6412, %v6438
        %v6455 = vadd.f32 %v6413, %v6439
        %v6456 = vadd.f32 %v6414, %v6440
        %v6457 = vadd.f32 %v6415, %v6441
        %v6458 = vadd.f32 %v6416, %v6438
        %v6459 = vadd.f32 %v6417, %v6439
        %v6460 = vadd.f32 %v6418, %v6440
        %v6461 = vadd.f32 %v6419, %v6441
        %v6462 = vadd.f32 %v6420, %v6438
        %v6463 = vadd.f32 %v6421, %v6439
        %v6464 = vadd.f32 %v6422, %v6440
        %v6465 = vadd.f32 %v6423, %v6441
        %v6466 = vadd.f32 %v6424, %v6438
        %v6467 = vadd.f32 %v6425, %v6439
        %v6468 = vadd.f32 %v6426, %v6440
        %v6469 = vadd.f32 %v6427, %v6441
        %v6470 = vadd.f32 %v6428, %v6438
        %v6471 = vadd.f32 %v6429, %v6439
        %v6472 = vadd.f32 %v6430, %v6440
        %v6473 = vadd.f32 %v6431, %v6441
        %v6474 = vadd.f32 %v6432, %v6438
        %v6475 = vadd.f32 %v6433, %v6439
        %v6476 = vadd.f32 %v6434, %v6440
        %v6477 = vadd.f32 %v6435, %v6441
        %v6478 = vmax.f32 %v6446, 0.0
        %v6479 = vmax.f32 %v6447, 0.0
        %v6480 = vmax.f32 %v6448, 0.0
        %v6481 = vmax.f32 %v6449, 0.0
        %v6482 = vmax.f32 %v6450, 0.0
        %v6483 = vmax.f32 %v6451, 0.0
        %v6484 = vmax.f32 %v6452, 0.0
        %v6485 = vmax.f32 %v6453, 0.0
        %v6486 = vmax.f32 %v6454, 0.0
        %v6487 = vmax.f32 %v6455, 0.0
        %v6488 = vmax.f32 %v6456, 0.0
        %v6489 = vmax.f32 %v6457, 0.0
        %v6490 = vmax.f32 %v6458, 0.0
        %v6491 = vmax.f32 %v6459, 0.0
        %v6492 = vmax.f32 %v6460, 0.0
        %v6493 = vmax.f32 %v6461, 0.0
        %v6494 = vmax.f32 %v6462, 0.0
        %v6495 = vmax.f32 %v6463, 0.0
        %v6496 = vmax.f32 %v6464, 0.0
        %v6497 = vmax.f32 %v6465, 0.0
        %v6498 = vmax.f32 %v6466, 0.0
        %v6499 = vmax.f32 %v6467, 0.0
        %v6500 = vmax.f32 %v6468, 0.0
        %v6501 = vmax.f32 %v6469, 0.0
        %v6502 = vmax.f32 %v6470, 0.0
        %v6503 = vmax.f32 %v6471, 0.0
        %v6504 = vmax.f32 %v6472, 0.0
        %v6505 = vmax.f32 %v6473, 0.0
        %v6506 = vmax.f32 %v6474, 0.0
        %v6507 = vmax.f32 %v6475, 0.0
        %v6508 = vmax.f32 %v6476, 0.0
        %v6509 = vmax.f32 %v6477, 0.0
        %6510 = vst [vmem:[%s281] sm:$0xff] %v6478
        %6511 = vst [vmem:[%s281 + $0x8] sm:$0xff] %v6479
        %6512 = vst [vmem:[%s281 + $0x10] sm:$0xff] %v6480
        %6513 = vst [vmem:[%s281 + $0x18] sm:$0xff] %v6481
        %6514 = vst [vmem:[%s281 + $0x20] sm:$0xff] %v6482
        %6515 = vst [vmem:[%s281 + $0x28] sm:$0xff] %v6483
        %6516 = vst [vmem:[%s281 + $0x30] sm:$0xff] %v6484
        %6517 = vst [vmem:[%s281 + $0x38] sm:$0xff] %v6485
        %6518 = vst [vmem:[%s281 + $0x40] sm:$0xff] %v6486
        %6519 = vst [vmem:[%s281 + $0x48] sm:$0xff] %v6487
        %6520 = vst [vmem:[%s281 + $0x50] sm:$0xff] %v6488
        %6521 = vst [vmem:[%s281 + $0x58] sm:$0xff] %v6489
        %6522 = vst [vmem:[%s281 + $0x60] sm:$0xff] %v6490
        %6523 = vst [vmem:[%s281 + $0x68] sm:$0xff] %v6491
        %6524 = vst [vmem:[%s281 + $0x70] sm:$0xff] %v6492
        %6525 = vst [vmem:[%s281 + $0x78] sm:$0xff] %v6493
        %6526 = vst [vmem:[%s281 + $0x80] sm:$0xff] %v6494
        %6527 = vst [vmem:[%s281 + $0x88] sm:$0xff] %v6495
        %6528 = vst [vmem:[%s281 + $0x90] sm:$0xff] %v6496
        %6529 = vst [vmem:[%s281 + $0x98] sm:$0xff] %v6497
        %6530 = vst [vmem:[%s281 + $0xa0] sm:$0xff] %v6498
        %6531 = vst [vmem:[%s281 + $0xa8] sm:$0xff] %v6499
        %6532 = vst [vmem:[%s281 + $0xb0] sm:$0xff] %v6500
        %6533 = vst [vmem:[%s281 + $0xb8] sm:$0xff] %v6501
        %6534 = vst [vmem:[%s281 + $0xc0] sm:$0xff] %v6502
        %6535 = vst [vmem:[%s281 + $0xc8] sm:$0xff] %v6503
        %6536 = vst [vmem:[%s281 + $0xd0] sm:$0xff] %v6504
        %6537 = vst [vmem:[%s281 + $0xd8] sm:$0xff] %v6505
        %6538 = vst [vmem:[%s281 + $0xe0] sm:$0xff] %v6506
        %6539 = vst [vmem:[%s281 + $0xe8] sm:$0xff] %v6507
        %6540 = vst [vmem:[%s281 + $0xf0] sm:$0xff] %v6508
        %6541 = vst [vmem:[%s281 + $0xf8] sm:$0xff] %v6509
        %s6542 = sand.u32 %s140, 1
        %s6543 = scalar_lea.sflag [#allocation5], %s6542
        %s6544 = sand.u32 %s140, 1
        %s6545 = smul.addr %s6544, 256
        %s6546 = scalar_lea.vmem [#allocation11], %s6545
        // Predicated region
        $region57: #{tpu_custom_call.1} parent=39 // pred_check
          %p6547 = pneg %p150
        $region58: #{tpu_custom_call.1} parent=39 // pred_check_branch
          %6549 = sbr.rel (%p6547) target = $region60
        $region59: #{tpu_custom_call.1} parent=39 // pred_region
          %s6550 = smul.u32 8, %s22
          %6552 = vsyncadd %s6543, 0
          %s6553 = smul.addr %s6550, 4
          %s6554 = smul.addr %s6553, 8
          %s6555 = scalar_lea.hbm %s5, %s6554
          %s6556 = sshll.u32 %s6546, 4
          %s6557 = int_to_ptr.vmem [resolvable:$true] %s6556
          %s6558 = sshll.u32 %s6555, 4
          %s6559 = int_to_ptr.hbm [resolvable:$true] %s6558
          %6564 = dma.vmem_to_hbm [thread:$0]  %s6557, 4096, %s6559, %s6543, 512, 512, 32
        $region60: #{tpu_custom_call.1} parent=39 // pred_fallthru
          _
      $region40: #{tpu_custom_call.1} parent=5 // pred_fallthru
        _
      %p6565 = scmp.le.s32.totalorder 2, %s17
      // Predicated region
      $region61: #{tpu_custom_call.1} parent=5 // pred_check
        %p6566 = pneg %p6565
      $region62: #{tpu_custom_call.1} parent=5 // pred_check_branch
        %6568 = sbr.rel (%p6566) target = $region64
      $region63: #{tpu_custom_call.1} parent=5 // pred_region
        %s6569 = ssub.s32 %s17, 2
        // Predicated region
        $region65: #{tpu_custom_call.1} parent=63 // pred_check
          %p6570 = pneg %p156
        $region66: #{tpu_custom_call.1} parent=63 // pred_check_branch
          %6572 = sbr.rel (%p6570) target = $region68
        $region67: #{tpu_custom_call.1} parent=63 // pred_region
          %s6573 = sand.u32 %s141, 1
          %s6574 = scalar_lea.sflag [#allocation5], %s6573
          %s6575 = sand.u32 %s141, 1
          %s6576 = smul.addr %s6575, 256
          %s6577 = scalar_lea.vmem [#allocation11], %s6576
          %6579 = dma.done %s6574, 4096
        $region68: #{tpu_custom_call.1} parent=63 // pred_fallthru
          _
      $region64: #{tpu_custom_call.1} parent=5 // pred_fallthru
        _
    $region6: #{tpu_custom_call.1} parent=1 // loop_footer
      %s21 = sadd.s32 1, %s17
    $region7: #{tpu_custom_call.1} parent=1 // loop_footer_branch
      %16 = sbr.rel target = $region3
    $region8: #{tpu_custom_call.1} parent=1 // loop_exit
      _
    %6580 = vsyncpa [#allocation4], 1
    %s6581 = scalar_lea.sflag [#allocation4], 1
    %6582 = vsyncpa %s6581, 1
    %6583 = vsyncpa [#allocation7], 1
    %6584 = vsyncpa [#allocation10], 1
    %6585 = vsyncpa [#allocation5], 1
    %s6586 = scalar_lea.sflag [#allocation5], 1
    %6587 = vsyncpa %s6586, 1

</llo_original>
